<compile_context>
chip_gen: v5e
topology: v5e:2x2
jax: 0.10.0
libtpu: 0.0.40
codegen_flags: <defaults>
</compile_context>

<pallas_src>
import functools

import jax
import jax.numpy as jnp
from jax.experimental import pallas as pl
from jax.experimental.pallas import tpu as pltpu

AWQ_ORDER = (0, 2, 4, 6, 1, 3, 5, 7)  # AutoAWQ GEMM nibble order along out_features


# ----------------------------- AWQ packing glue ------------------------------
def pack_awq(int4_vals):
    """Pack int4 values [R, N] -> AWQ int32 [R, N//8] (AWQ nibble order)."""
    R, N = int4_vals.shape
    packed = jnp.zeros((R, N // 8), jnp.int32)
    for j, o in enumerate(AWQ_ORDER):
        packed = packed | (int4_vals[:, o::8].astype(jnp.int32) << (4 * j))
    return packed


def unpack_awq(packed):
    """Unpack AWQ int32 [R, N//8] -> int4 values [R, N] (int32 dtype)."""
    R, N8 = packed.shape
    out = jnp.zeros((R, N8 * 8), jnp.int32)
    for j, o in enumerate(AWQ_ORDER):
        out = out.at[:, o::8].set((packed >> (4 * j)) & 0xF)
    return out


def repack_qweight_for_tpu(qweight_awq, group_size):
    """AWQ qweight [K, N//8] -> kernel layout int32 [K//8, N].

    Within each K-group of size G, packed row r holds (at nibble j) the int4
    weight for k = group_start + j*(G//8) + r, so the in-kernel unpack is 8
    shift/mask ops whose chunks land contiguously along the sublane (K) axis.
    """
    w = unpack_awq(qweight_awq)                       # [K, N] int32 in [0, 16)
    K, N = w.shape
    G = group_size
    w = w.reshape(K // G, 8, G // 8, N)
    packed = jnp.zeros((K // G, G // 8, N), jnp.int32)
    for j in range(8):
        packed = packed | (w[:, j] << (4 * j))
    return packed.reshape(K // 8, N)


# ------------------------------- Pallas kernel -------------------------------
def _awq_gemm_kernel(x_ref, qw_ref, sb_ref, o_ref, acc_ref, w_ref, *,
                     kg, g8, n_groups, apply_gelu):
    """grid = (M//tm, N//tn, K//(kg*G)); reduction (K-block) axis last.

    x_ref:  (tm, kg*G)      bf16 activations
    qw_ref: (kg*G//8, tn)   int32 packed weights (K-blocked layout)
    sb_ref: (2*K//G, tn)    f32 [scales ; -zero*scale] stripe (resident per j)
    acc_ref:(tm, tn)        f32 accumulator scratch
    w_ref:  (kg*G, tn)      bf16 dequantized-weight scratch (one slab / group)
    """
    G = 8 * g8
    tn = w_ref.shape[-1]
    kb = pl.program_id(2)

    @pl.when(kb == 0)
    def _():
        acc_ref[...] = jnp.zeros_like(acc_ref)

    for g in range(kg):
        base = g * G                                   # this group's slab base
        qw = qw_ref[g * g8:(g + 1) * g8, :]            # (G//8, tn) int32
        grp = kb * kg + g                              # group row in stripe
        # Hoist one (g8, tn) broadcast per group (JAX does not CSE
        # broadcast_in_dim; keeping it inside the nibble loop would
        # re-materialize it 8x as pure VALU filler).
        s = jnp.broadcast_to(sb_ref[pl.ds(grp, 1), :], (g8, tn))            # scales
        b = jnp.broadcast_to(sb_ref[pl.ds(n_groups + grp, 1), :], (g8, tn))  # -z*s
        # Fused int4 unpack + dequant: (w - z) * s == w*s + (-z*s).
        for j in range(8):
            nib = ((qw >> (4 * j)) & 0xF).astype(jnp.float32)
            row = base + j * g8
            w_ref[row:row + g8, :] = (nib * s + b).astype(w_ref.dtype)
        # Per-group MXU dot right after this group's slab is ready so the MXU
        # of group g overlaps the VPU dequant of group g+1. Each group owns a
        # private slab of w_ref, so there is no WAR hazard between groups.
        acc_ref[...] += jnp.dot(x_ref[:, base:base + G],
                                w_ref[base:base + G, :],
                                preferred_element_type=jnp.float32)

    @pl.when(kb == pl.num_programs(2) - 1)
    def _():
        res = acc_ref[...]
        if apply_gelu:
            res = jax.nn.gelu(res)                     # EUP tanh: free slot
        o_ref[...] = res.astype(o_ref.dtype)


def _pick_tm(M, cap):
    """Largest divisor of M <= cap that is a multiple of 8 (or M itself)."""
    d = min(cap, M)
    while d >= 1:
        if M % d == 0 and (d % 8 == 0 or d == M):
            return d
        d -= 1
    return M


def awq_gemm(x, qw_kpack, scale_bias, group_size, *, tn=None,
             k_groups_per_block=None, tm_max=512, apply_gelu=False,
             out_dtype=jnp.float32):
    """x: [M, K] f32/bf16, qw_kpack: [K//8, N] int32,
    scale_bias: [2*K//G, N] f32 (rows [0:K//G] scales, rows [K//G:] -zero*scale)."""
    M, K = x.shape
    N = scale_bias.shape[-1]
    G = group_size
    n_groups = K // G

    if tn is None:
        tn = N
        for cand in (512, 256, 128):
            if N % cand == 0:
                tn = cand
                break
    assert N % tn == 0
    if k_groups_per_block is None:
        k_groups_per_block = 1
        for cand in (8, 4, 2):
            if n_groups % cand == 0:
                k_groups_per_block = cand
                break
    kg = k_groups_per_block
    KB = kg * G
    assert K % KB == 0
    # Largest divisor of M <= tm_max (never tm = M for ragged prefill M), so
    # prefill stays inside v7x's 64 MiB VMEM and the i axis keeps >1 tile for
    # the two v7x TensorCores whenever possible.
    tm = _pick_tm(M, tm_max)

    grid = (M // tm, N // tn, K // KB)
    kernel = functools.partial(_awq_gemm_kernel, kg=kg, g8=G // 8,
                               n_groups=n_groups, apply_gelu=apply_gelu)

    x_bf16 = x if x.dtype == jnp.bfloat16 else x.astype(jnp.bfloat16)

    return pl.pallas_call(
        kernel,
        out_shape=jax.ShapeDtypeStruct((M, N), out_dtype),
        grid_spec=pltpu.PrefetchScalarGridSpec(
            num_scalar_prefetch=0,
            grid=grid,
            in_specs=[
                pl.BlockSpec((tm, KB), lambda i, j, k: (i, k)),          # x (bf16)
                pl.BlockSpec((KB // 8, tn), lambda i, j, k: (k, j)),     # qweight
                pl.BlockSpec((2 * n_groups, tn), lambda i, j, k: (0, j)),  # scales & -z*s (resident per j)
            ],
            out_specs=pl.BlockSpec((tm, tn), lambda i, j, k: (i, j)),
            scratch_shapes=[
                pltpu.VMEM((tm, tn), jnp.float32),      # f32 accumulator
                pltpu.VMEM((KB, tn), jnp.bfloat16),     # dequantized weights
            ],
        ),
        compiler_params=pltpu.CompilerParams(
            dimension_semantics=("parallel", "parallel", "arbitrary"),
            vmem_limit_bytes=32 * 1024 * 1024,
        ),
    )(x_bf16, qw_kpack, scale_bias)


# --------------------------- synthetic quantized LM --------------------------
class BaseAWQForCausalLM:
    """forward() delegates to the (synthetic) AWQ-quantized causal LM."""

    def __init__(self, embed, proj_params, lm_head_params, group_size):
        self.embed = embed                      # [V, H] f32
        self.proj = proj_params                 # (qw_kpack, scale_bias)
        self.lm_head = lm_head_params           # (qw_kpack, scale_bias)
        self.group_size = group_size
        self.is_quantized = True

    def forward(self, input_ids):
        B, S = input_ids.shape
        x = self.embed[input_ids].reshape(B * S, -1)             # glue: embedding
        # gelu + bf16 cast fused into the first GEMM's epilogue -> the hidden
        # tensor makes a single bf16 round-trip to HBM.
        h = awq_gemm(x, *self.proj, self.group_size,
                     apply_gelu=True, out_dtype=jnp.bfloat16)    # Pallas hot path
        logits = awq_gemm(h, *self.lm_head, self.group_size,
                          apply_gelu=False, out_dtype=jnp.float32)  # Pallas hot path
        return logits.reshape(B, S, -1)

    __call__ = forward

    # TODO(synk): quantize()/pack()/save_quantized()/from_pretrained()/from_quantized()
    # are calibration & checkpoint-I/O utilities with no Pallas equivalent.
    # TODO(synk): a decode-specialized (tm < G) variant with post-dot rank-1
    # zero-point correction would further thin VPU work; omitted for clarity.


# --------------------------------- reference ---------------------------------
def dequantize_ref(qweight_awq, qzeros_awq, scales, group_size):
    w = unpack_awq(qweight_awq)                              # [K, N]
    z = unpack_awq(qzeros_awq)                               # [K//G, N]
    z_full = jnp.repeat(z, group_size, axis=0)
    s_full = jnp.repeat(scales, group_size, axis=0)
    return (w - z_full).astype(jnp.float32) * s_full


def reference_forward(input_ids, embed, awq1, awq2, group_size):
    B, S = input_ids.shape
    x = embed[input_ids].reshape(B * S, -1)
    w1 = dequantize_ref(*awq1, group_size)
    w2 = dequantize_ref(*awq2, group_size)
    h = jax.nn.gelu(x @ w1)
    return (h @ w2).reshape(B, S, -1)


# ----------------------------------- main ------------------------------------
def make_awq_layer(key, in_features, out_features, group_size):
    k_w, k_z, k_s = jax.random.split(key, 3)
    w_int4 = jax.random.randint(k_w, (in_features, out_features), 0, 16, jnp.int32)
    z_int4 = jax.random.randint(
        k_z, (in_features // group_size, out_features), 0, 16, jnp.int32)
    scales = (jax.random.uniform(
        k_s, (in_features // group_size, out_features), jnp.float32) * 0.01 + 0.005)
    qweight = pack_awq(w_int4)                               # AWQ storage format
    qzeros = pack_awq(z_int4)
    # kernel-side params (pure glue repack + zero-point folding). Scales and
    # the folded -z*s bias ride on ONE resident stripe per j tile.
    qw_kpack = repack_qweight_for_tpu(qweight, group_size)
    zeros = unpack_awq(qzeros)
    neg_zs = -(zeros.astype(jnp.float32) * scales)
    scale_bias = jnp.concatenate([scales, neg_zs], axis=0)  # [2*K//G, N] f32
    return (qw_kpack, scale_bias), (qweight, qzeros, scales)


if __name__ == "__main__":
    # batch, seq, vocab, hidden, group. H=512 gives 4 K-groups and exercises
    # the per-group dequant/dot interleave with a single fused K block.
    B, S, V, H, G = 2, 8, 512, 512, 128
    key = jax.random.PRNGKey(0)
    k_emb, k_ids, k_l1, k_l2 = jax.random.split(key, 4)

    embed = jax.random.normal(k_emb, (V, H), jnp.float32) * 0.1
    input_ids = jax.random.randint(k_ids, (B, S), 0, V, jnp.int32)

    proj_kernel, proj_awq = make_awq_layer(k_l1, H, H, G)
    head_kernel, head_awq = make_awq_layer(k_l2, H, V, G)

    model = BaseAWQForCausalLM(embed, proj_kernel, head_kernel, G)
    logits = model(input_ids)
    logits = jax.block_until_ready(logits)

    ref = reference_forward(input_ids, embed, proj_awq, head_awq, G)
    assert logits.shape == (B, S, V)
    # bf16 MXU inputs & bf16 hidden tensor vs. an all-f32 reference -> ~1e-3
    # level error; 5e-3 is a comfortable bound, still ~20-100x below any
    # indexing/dequant bug.
    assert jnp.allclose(logits, ref, atol=5e-3, rtol=5e-3), (
        float(jnp.max(jnp.abs(logits - ref))))
    print("KERNEL_OK")
</pallas_src>

<mosaic_0001>
module attributes {stable_mosaic.version = 11 : i64} {
  func.func @_awq_gemm_kernel(%arg0: i32, %arg1: i32, %arg2: i32, %arg3: memref<16x512xbf16, #tpu.memory_space<vmem>>, %arg4: memref<64x512xi32, #tpu.memory_space<vmem>>, %arg5: memref<8x512xf32, #tpu.memory_space<vmem>>, %arg6: memref<16x512xbf16, #tpu.memory_space<vmem>>, %arg7: memref<16x512xf32, #tpu.memory_space<vmem>>, %arg8: memref<512x512xbf16, #tpu.memory_space<vmem>>) attributes {dimension_semantics = [#tpu.dimension_semantics<parallel>, #tpu.dimension_semantics<parallel>, #tpu.dimension_semantics<arbitrary>], iteration_bounds = array<i64: 1, 1, 1>, scalar_prefetch = 0 : i64, scratch_operands = 2 : i64, tpu.core_type = #tpu.core_type<tc>, window_params = [{transform_indices = @transform_0, window_bounds = array<i64: 16, 512>}, {transform_indices = @transform_1, window_bounds = array<i64: 64, 512>}, {transform_indices = @transform_2, window_bounds = array<i64: 8, 512>}, {transform_indices = @transform_3, window_bounds = array<i64: 16, 512>}]} {
    %c0_i32 = arith.constant 0 : i32
    %0 = arith.cmpi eq, %arg2, %c0_i32 : i32
    %1 = arith.extui %0 : i1 to i32
    %c0_i32_0 = arith.constant 0 : i32
    %2 = arith.cmpi ne, %1, %c0_i32_0 : i32
    scf.if %2 {
      %cst_151 = arith.constant 0.000000e+00 : f32
      %366 = vector.broadcast %cst_151 : f32 to vector<16x512xf32>
      %c0_152 = arith.constant 0 : index
      %c0_153 = arith.constant 0 : index
      %367 = vector.load %arg7[%c0_152, %c0_153] : memref<16x512xf32, #tpu.memory_space<vmem>>, vector<16x512xf32>
      tpu.vector_store %arg7[%c0_152, %c0_153], %366 {strides = array<i32>} : memref<16x512xf32, #tpu.memory_space<vmem>>, vector<16x512xf32>,
    } else {
    }
    %c0 = arith.constant 0 : index
    %c0_1 = arith.constant 0 : index
    %3 = vector.load %arg4[%c0, %c0_1] : memref<64x512xi32, #tpu.memory_space<vmem>>, vector<16x512xi32>
    %c4_i32 = arith.constant 4 : i32
    %4 = arith.muli %arg2, %c4_i32 : i32
    %c0_i32_2 = arith.constant 0 : i32
    %5 = arith.addi %4, %c0_i32_2 : i32
    %6 = arith.index_cast %5 : i32 to index
    %c0_3 = arith.constant 0 : index
    %7 = vector.load %arg5[%6, %c0_3] : memref<8x512xf32, #tpu.memory_space<vmem>>, vector<1x512xf32>
    %8 = vector.shape_cast %7 : vector<1x512xf32> to vector<1x512xf32>
    %9 = vector.broadcast %8 : vector<1x512xf32> to vector<16x512xf32>
    %c4_i32_4 = arith.constant 4 : i32
    %10 = arith.addi %c4_i32_4, %5 : i32
    %11 = arith.index_cast %10 : i32 to index
    %c0_5 = arith.constant 0 : index
    %12 = vector.load %arg5[%11, %c0_5] : memref<8x512xf32, #tpu.memory_space<vmem>>, vector<1x512xf32>
    %13 = vector.shape_cast %12 : vector<1x512xf32> to vector<1x512xf32>
    %14 = vector.broadcast %13 : vector<1x512xf32> to vector<16x512xf32>
    %c0_i32_6 = arith.constant 0 : i32
    %15 = vector.broadcast %c0_i32_6 : i32 to vector<16x512xi32>
    %16 = arith.shrsi %3, %15 : vector<16x512xi32>
    %c15_i32 = arith.constant 15 : i32
    %17 = vector.broadcast %c15_i32 : i32 to vector<16x512xi32>
    %18 = arith.andi %16, %17 : vector<16x512xi32>
    %19 = arith.sitofp %18 : vector<16x512xi32> to vector<16x512xf32>
    %20 = arith.mulf %19, %9 : vector<16x512xf32>
    %21 = arith.addf %20, %14 : vector<16x512xf32>
    %22 = arith.truncf %21 : vector<16x512xf32> to vector<16x512xbf16>
    %c0_7 = arith.constant 0 : index
    %c0_8 = arith.constant 0 : index
    %23 = vector.load %arg8[%c0_7, %c0_8] : memref<512x512xbf16, #tpu.memory_space<vmem>>, vector<16x512xbf16>
    tpu.vector_store %arg8[%c0_7, %c0_8], %22 {strides = array<i32>} : memref<512x512xbf16, #tpu.memory_space<vmem>>, vector<16x512xbf16>,
    %c4_i32_9 = arith.constant 4 : i32
    %24 = vector.broadcast %c4_i32_9 : i32 to vector<16x512xi32>
    %25 = arith.shrsi %3, %24 : vector<16x512xi32>
    %c15_i32_10 = arith.constant 15 : i32
    %26 = vector.broadcast %c15_i32_10 : i32 to vector<16x512xi32>
    %27 = arith.andi %25, %26 : vector<16x512xi32>
    %28 = arith.sitofp %27 : vector<16x512xi32> to vector<16x512xf32>
    %29 = arith.mulf %28, %9 : vector<16x512xf32>
    %30 = arith.addf %29, %14 : vector<16x512xf32>
    %31 = arith.truncf %30 : vector<16x512xf32> to vector<16x512xbf16>
    %c16 = arith.constant 16 : index
    %c0_11 = arith.constant 0 : index
    %32 = vector.load %arg8[%c16, %c0_11] : memref<512x512xbf16, #tpu.memory_space<vmem>>, vector<16x512xbf16>
    tpu.vector_store %arg8[%c16, %c0_11], %31 {strides = array<i32>} : memref<512x512xbf16, #tpu.memory_space<vmem>>, vector<16x512xbf16>,
    %c8_i32 = arith.constant 8 : i32
    %33 = vector.broadcast %c8_i32 : i32 to vector<16x512xi32>
    %34 = arith.shrsi %3, %33 : vector<16x512xi32>
    %c15_i32_12 = arith.constant 15 : i32
    %35 = vector.broadcast %c15_i32_12 : i32 to vector<16x512xi32>
    %36 = arith.andi %34, %35 : vector<16x512xi32>
    %37 = arith.sitofp %36 : vector<16x512xi32> to vector<16x512xf32>
    %38 = arith.mulf %37, %9 : vector<16x512xf32>
    %39 = arith.addf %38, %14 : vector<16x512xf32>
    %40 = arith.truncf %39 : vector<16x512xf32> to vector<16x512xbf16>
    %c32 = arith.constant 32 : index
    %c0_13 = arith.constant 0 : index
    %41 = vector.load %arg8[%c32, %c0_13] : memref<512x512xbf16, #tpu.memory_space<vmem>>, vector<16x512xbf16>
    tpu.vector_store %arg8[%c32, %c0_13], %40 {strides = array<i32>} : memref<512x512xbf16, #tpu.memory_space<vmem>>, vector<16x512xbf16>,
    %c12_i32 = arith.constant 12 : i32
    %42 = vector.broadcast %c12_i32 : i32 to vector<16x512xi32>
    %43 = arith.shrsi %3, %42 : vector<16x512xi32>
    %c15_i32_14 = arith.constant 15 : i32
    %44 = vector.broadcast %c15_i32_14 : i32 to vector<16x512xi32>
    %45 = arith.andi %43, %44 : vector<16x512xi32>
    %46 = arith.sitofp %45 : vector<16x512xi32> to vector<16x512xf32>
    %47 = arith.mulf %46, %9 : vector<16x512xf32>
    %48 = arith.addf %47, %14 : vector<16x512xf32>
    %49 = arith.truncf %48 : vector<16x512xf32> to vector<16x512xbf16>
    %c48 = arith.constant 48 : index
    %c0_15 = arith.constant 0 : index
    %50 = vector.load %arg8[%c48, %c0_15] : memref<512x512xbf16, #tpu.memory_space<vmem>>, vector<16x512xbf16>
    tpu.vector_store %arg8[%c48, %c0_15], %49 {strides = array<i32>} : memref<512x512xbf16, #tpu.memory_space<vmem>>, vector<16x512xbf16>,
    %c16_i32 = arith.constant 16 : i32
    %51 = vector.broadcast %c16_i32 : i32 to vector<16x512xi32>
    %52 = arith.shrsi %3, %51 : vector<16x512xi32>
    %c15_i32_16 = arith.constant 15 : i32
    %53 = vector.broadcast %c15_i32_16 : i32 to vector<16x512xi32>
    %54 = arith.andi %52, %53 : vector<16x512xi32>
    %55 = arith.sitofp %54 : vector<16x512xi32> to vector<16x512xf32>
    %56 = arith.mulf %55, %9 : vector<16x512xf32>
    %57 = arith.addf %56, %14 : vector<16x512xf32>
    %58 = arith.truncf %57 : vector<16x512xf32> to vector<16x512xbf16>
    %c64 = arith.constant 64 : index
    %c0_17 = arith.constant 0 : index
    %59 = vector.load %arg8[%c64, %c0_17] : memref<512x512xbf16, #tpu.memory_space<vmem>>, vector<16x512xbf16>
    tpu.vector_store %arg8[%c64, %c0_17], %58 {strides = array<i32>} : memref<512x512xbf16, #tpu.memory_space<vmem>>, vector<16x512xbf16>,
    %c20_i32 = arith.constant 20 : i32
    %60 = vector.broadcast %c20_i32 : i32 to vector<16x512xi32>
    %61 = arith.shrsi %3, %60 : vector<16x512xi32>
    %c15_i32_18 = arith.constant 15 : i32
    %62 = vector.broadcast %c15_i32_18 : i32 to vector<16x512xi32>
    %63 = arith.andi %61, %62 : vector<16x512xi32>
    %64 = arith.sitofp %63 : vector<16x512xi32> to vector<16x512xf32>
    %65 = arith.mulf %64, %9 : vector<16x512xf32>
    %66 = arith.addf %65, %14 : vector<16x512xf32>
    %67 = arith.truncf %66 : vector<16x512xf32> to vector<16x512xbf16>
    %c80 = arith.constant 80 : index
    %c0_19 = arith.constant 0 : index
    %68 = vector.load %arg8[%c80, %c0_19] : memref<512x512xbf16, #tpu.memory_space<vmem>>, vector<16x512xbf16>
    tpu.vector_store %arg8[%c80, %c0_19], %67 {strides = array<i32>} : memref<512x512xbf16, #tpu.memory_space<vmem>>, vector<16x512xbf16>,
    %c24_i32 = arith.constant 24 : i32
    %69 = vector.broadcast %c24_i32 : i32 to vector<16x512xi32>
    %70 = arith.shrsi %3, %69 : vector<16x512xi32>
    %c15_i32_20 = arith.constant 15 : i32
    %71 = vector.broadcast %c15_i32_20 : i32 to vector<16x512xi32>
    %72 = arith.andi %70, %71 : vector<16x512xi32>
    %73 = arith.sitofp %72 : vector<16x512xi32> to vector<16x512xf32>
    %74 = arith.mulf %73, %9 : vector<16x512xf32>
    %75 = arith.addf %74, %14 : vector<16x512xf32>
    %76 = arith.truncf %75 : vector<16x512xf32> to vector<16x512xbf16>
    %c96 = arith.constant 96 : index
    %c0_21 = arith.constant 0 : index
    %77 = vector.load %arg8[%c96, %c0_21] : memref<512x512xbf16, #tpu.memory_space<vmem>>, vector<16x512xbf16>
    tpu.vector_store %arg8[%c96, %c0_21], %76 {strides = array<i32>} : memref<512x512xbf16, #tpu.memory_space<vmem>>, vector<16x512xbf16>,
    %c28_i32 = arith.constant 28 : i32
    %78 = vector.broadcast %c28_i32 : i32 to vector<16x512xi32>
    %79 = arith.shrsi %3, %78 : vector<16x512xi32>
    %c15_i32_22 = arith.constant 15 : i32
    %80 = vector.broadcast %c15_i32_22 : i32 to vector<16x512xi32>
    %81 = arith.andi %79, %80 : vector<16x512xi32>
    %82 = arith.sitofp %81 : vector<16x512xi32> to vector<16x512xf32>
    %83 = arith.mulf %82, %9 : vector<16x512xf32>
    %84 = arith.addf %83, %14 : vector<16x512xf32>
    %85 = arith.truncf %84 : vector<16x512xf32> to vector<16x512xbf16>
    %c112 = arith.constant 112 : index
    %c0_23 = arith.constant 0 : index
    %86 = vector.load %arg8[%c112, %c0_23] : memref<512x512xbf16, #tpu.memory_space<vmem>>, vector<16x512xbf16>
    tpu.vector_store %arg8[%c112, %c0_23], %85 {strides = array<i32>} : memref<512x512xbf16, #tpu.memory_space<vmem>>, vector<16x512xbf16>,
    %c0_24 = arith.constant 0 : index
    %c0_25 = arith.constant 0 : index
    %87 = vector.load %arg7[%c0_24, %c0_25] : memref<16x512xf32, #tpu.memory_space<vmem>>, vector<16x512xf32>
    %c0_26 = arith.constant 0 : index
    %c0_27 = arith.constant 0 : index
    %88 = vector.load %arg3[%c0_26, %c0_27] : memref<16x512xbf16, #tpu.memory_space<vmem>>, vector<16x128xbf16>
    %c0_28 = arith.constant 0 : index
    %c0_29 = arith.constant 0 : index
    %89 = vector.load %arg8[%c0_28, %c0_29] : memref<512x512xbf16, #tpu.memory_space<vmem>>, vector<128x512xbf16>
    %cst = arith.constant dense<0.000000e+00> : vector<16x512xf32>
    %90 = tpu.matmul %88, %89, %cst {dimension_numbers = #tpu.dot_dimension_numbers<[1], [0], [0], [1], [0, 0, 1, 1], [], []>} : vector<16x128xbf16>, vector<128x512xbf16>, vector<16x512xf32> -> vector<16x512xf32>
    %91 = arith.addf %87, %90 : vector<16x512xf32>
    %c0_30 = arith.constant 0 : index
    %c0_31 = arith.constant 0 : index
    %92 = vector.load %arg7[%c0_30, %c0_31] : memref<16x512xf32, #tpu.memory_space<vmem>>, vector<16x512xf32>
    tpu.vector_store %arg7[%c0_30, %c0_31], %91 {strides = array<i32>} : memref<16x512xf32, #tpu.memory_space<vmem>>, vector<16x512xf32>,
    %c16_32 = arith.constant 16 : index
    %c0_33 = arith.constant 0 : index
    %93 = vector.load %arg4[%c16_32, %c0_33] : memref<64x512xi32, #tpu.memory_space<vmem>>, vector<16x512xi32>
    %c4_i32_34 = arith.constant 4 : i32
    %94 = arith.muli %arg2, %c4_i32_34 : i32
    %c1_i32 = arith.constant 1 : i32
    %95 = arith.addi %94, %c1_i32 : i32
    %96 = arith.index_cast %95 : i32 to index
    %c0_35 = arith.constant 0 : index
    %97 = vector.load %arg5[%96, %c0_35] : memref<8x512xf32, #tpu.memory_space<vmem>>, vector<1x512xf32>
    %98 = vector.shape_cast %97 : vector<1x512xf32> to vector<1x512xf32>
    %99 = vector.broadcast %98 : vector<1x512xf32> to vector<16x512xf32>
    %c4_i32_36 = arith.constant 4 : i32
    %100 = arith.addi %c4_i32_36, %95 : i32
    %101 = arith.index_cast %100 : i32 to index
    %c0_37 = arith.constant 0 : index
    %102 = vector.load %arg5[%101, %c0_37] : memref<8x512xf32, #tpu.memory_space<vmem>>, vector<1x512xf32>
    %103 = vector.shape_cast %102 : vector<1x512xf32> to vector<1x512xf32>
    %104 = vector.broadcast %103 : vector<1x512xf32> to vector<16x512xf32>
    %c0_i32_38 = arith.constant 0 : i32
    %105 = vector.broadcast %c0_i32_38 : i32 to vector<16x512xi32>
    %106 = arith.shrsi %93, %105 : vector<16x512xi32>
    %c15_i32_39 = arith.constant 15 : i32
    %107 = vector.broadcast %c15_i32_39 : i32 to vector<16x512xi32>
    %108 = arith.andi %106, %107 : vector<16x512xi32>
    %109 = arith.sitofp %108 : vector<16x512xi32> to vector<16x512xf32>
    %110 = arith.mulf %109, %99 : vector<16x512xf32>
    %111 = arith.addf %110, %104 : vector<16x512xf32>
    %112 = arith.truncf %111 : vector<16x512xf32> to vector<16x512xbf16>
    %c128 = arith.constant 128 : index
    %c0_40 = arith.constant 0 : index
    %113 = vector.load %arg8[%c128, %c0_40] : memref<512x512xbf16, #tpu.memory_space<vmem>>, vector<16x512xbf16>
    tpu.vector_store %arg8[%c128, %c0_40], %112 {strides = array<i32>} : memref<512x512xbf16, #tpu.memory_space<vmem>>, vector<16x512xbf16>,
    %c4_i32_41 = arith.constant 4 : i32
    %114 = vector.broadcast %c4_i32_41 : i32 to vector<16x512xi32>
    %115 = arith.shrsi %93, %114 : vector<16x512xi32>
    %c15_i32_42 = arith.constant 15 : i32
    %116 = vector.broadcast %c15_i32_42 : i32 to vector<16x512xi32>
    %117 = arith.andi %115, %116 : vector<16x512xi32>
    %118 = arith.sitofp %117 : vector<16x512xi32> to vector<16x512xf32>
    %119 = arith.mulf %118, %99 : vector<16x512xf32>
    %120 = arith.addf %119, %104 : vector<16x512xf32>
    %121 = arith.truncf %120 : vector<16x512xf32> to vector<16x512xbf16>
    %c144 = arith.constant 144 : index
    %c0_43 = arith.constant 0 : index
    %122 = vector.load %arg8[%c144, %c0_43] : memref<512x512xbf16, #tpu.memory_space<vmem>>, vector<16x512xbf16>
    tpu.vector_store %arg8[%c144, %c0_43], %121 {strides = array<i32>} : memref<512x512xbf16, #tpu.memory_space<vmem>>, vector<16x512xbf16>,
    %c8_i32_44 = arith.constant 8 : i32
    %123 = vector.broadcast %c8_i32_44 : i32 to vector<16x512xi32>
    %124 = arith.shrsi %93, %123 : vector<16x512xi32>
    %c15_i32_45 = arith.constant 15 : i32
    %125 = vector.broadcast %c15_i32_45 : i32 to vector<16x512xi32>
    %126 = arith.andi %124, %125 : vector<16x512xi32>
    %127 = arith.sitofp %126 : vector<16x512xi32> to vector<16x512xf32>
    %128 = arith.mulf %127, %99 : vector<16x512xf32>
    %129 = arith.addf %128, %104 : vector<16x512xf32>
    %130 = arith.truncf %129 : vector<16x512xf32> to vector<16x512xbf16>
    %c160 = arith.constant 160 : index
    %c0_46 = arith.constant 0 : index
    %131 = vector.load %arg8[%c160, %c0_46] : memref<512x512xbf16, #tpu.memory_space<vmem>>, vector<16x512xbf16>
    tpu.vector_store %arg8[%c160, %c0_46], %130 {strides = array<i32>} : memref<512x512xbf16, #tpu.memory_space<vmem>>, vector<16x512xbf16>,
    %c12_i32_47 = arith.constant 12 : i32
    %132 = vector.broadcast %c12_i32_47 : i32 to vector<16x512xi32>
    %133 = arith.shrsi %93, %132 : vector<16x512xi32>
    %c15_i32_48 = arith.constant 15 : i32
    %134 = vector.broadcast %c15_i32_48 : i32 to vector<16x512xi32>
    %135 = arith.andi %133, %134 : vector<16x512xi32>
    %136 = arith.sitofp %135 : vector<16x512xi32> to vector<16x512xf32>
    %137 = arith.mulf %136, %99 : vector<16x512xf32>
    %138 = arith.addf %137, %104 : vector<16x512xf32>
    %139 = arith.truncf %138 : vector<16x512xf32> to vector<16x512xbf16>
    %c176 = arith.constant 176 : index
    %c0_49 = arith.constant 0 : index
    %140 = vector.load %arg8[%c176, %c0_49] : memref<512x512xbf16, #tpu.memory_space<vmem>>, vector<16x512xbf16>
    tpu.vector_store %arg8[%c176, %c0_49], %139 {strides = array<i32>} : memref<512x512xbf16, #tpu.memory_space<vmem>>, vector<16x512xbf16>,
    %c16_i32_50 = arith.constant 16 : i32
    %141 = vector.broadcast %c16_i32_50 : i32 to vector<16x512xi32>
    %142 = arith.shrsi %93, %141 : vector<16x512xi32>
    %c15_i32_51 = arith.constant 15 : i32
    %143 = vector.broadcast %c15_i32_51 : i32 to vector<16x512xi32>
    %144 = arith.andi %142, %143 : vector<16x512xi32>
    %145 = arith.sitofp %144 : vector<16x512xi32> to vector<16x512xf32>
    %146 = arith.mulf %145, %99 : vector<16x512xf32>
    %147 = arith.addf %146, %104 : vector<16x512xf32>
    %148 = arith.truncf %147 : vector<16x512xf32> to vector<16x512xbf16>
    %c192 = arith.constant 192 : index
    %c0_52 = arith.constant 0 : index
    %149 = vector.load %arg8[%c192, %c0_52] : memref<512x512xbf16, #tpu.memory_space<vmem>>, vector<16x512xbf16>
    tpu.vector_store %arg8[%c192, %c0_52], %148 {strides = array<i32>} : memref<512x512xbf16, #tpu.memory_space<vmem>>, vector<16x512xbf16>,
    %c20_i32_53 = arith.constant 20 : i32
    %150 = vector.broadcast %c20_i32_53 : i32 to vector<16x512xi32>
    %151 = arith.shrsi %93, %150 : vector<16x512xi32>
    %c15_i32_54 = arith.constant 15 : i32
    %152 = vector.broadcast %c15_i32_54 : i32 to vector<16x512xi32>
    %153 = arith.andi %151, %152 : vector<16x512xi32>
    %154 = arith.sitofp %153 : vector<16x512xi32> to vector<16x512xf32>
    %155 = arith.mulf %154, %99 : vector<16x512xf32>
    %156 = arith.addf %155, %104 : vector<16x512xf32>
    %157 = arith.truncf %156 : vector<16x512xf32> to vector<16x512xbf16>
    %c208 = arith.constant 208 : index
    %c0_55 = arith.constant 0 : index
    %158 = vector.load %arg8[%c208, %c0_55] : memref<512x512xbf16, #tpu.memory_space<vmem>>, vector<16x512xbf16>
    tpu.vector_store %arg8[%c208, %c0_55], %157 {strides = array<i32>} : memref<512x512xbf16, #tpu.memory_space<vmem>>, vector<16x512xbf16>,
    %c24_i32_56 = arith.constant 24 : i32
    %159 = vector.broadcast %c24_i32_56 : i32 to vector<16x512xi32>
    %160 = arith.shrsi %93, %159 : vector<16x512xi32>
    %c15_i32_57 = arith.constant 15 : i32
    %161 = vector.broadcast %c15_i32_57 : i32 to vector<16x512xi32>
    %162 = arith.andi %160, %161 : vector<16x512xi32>
    %163 = arith.sitofp %162 : vector<16x512xi32> to vector<16x512xf32>
    %164 = arith.mulf %163, %99 : vector<16x512xf32>
    %165 = arith.addf %164, %104 : vector<16x512xf32>
    %166 = arith.truncf %165 : vector<16x512xf32> to vector<16x512xbf16>
    %c224 = arith.constant 224 : index
    %c0_58 = arith.constant 0 : index
    %167 = vector.load %arg8[%c224, %c0_58] : memref<512x512xbf16, #tpu.memory_space<vmem>>, vector<16x512xbf16>
    tpu.vector_store %arg8[%c224, %c0_58], %166 {strides = array<i32>} : memref<512x512xbf16, #tpu.memory_space<vmem>>, vector<16x512xbf16>,
    %c28_i32_59 = arith.constant 28 : i32
    %168 = vector.broadcast %c28_i32_59 : i32 to vector<16x512xi32>
    %169 = arith.shrsi %93, %168 : vector<16x512xi32>
    %c15_i32_60 = arith.constant 15 : i32
    %170 = vector.broadcast %c15_i32_60 : i32 to vector<16x512xi32>
    %171 = arith.andi %169, %170 : vector<16x512xi32>
    %172 = arith.sitofp %171 : vector<16x512xi32> to vector<16x512xf32>
    %173 = arith.mulf %172, %99 : vector<16x512xf32>
    %174 = arith.addf %173, %104 : vector<16x512xf32>
    %175 = arith.truncf %174 : vector<16x512xf32> to vector<16x512xbf16>
    %c240 = arith.constant 240 : index
    %c0_61 = arith.constant 0 : index
    %176 = vector.load %arg8[%c240, %c0_61] : memref<512x512xbf16, #tpu.memory_space<vmem>>, vector<16x512xbf16>
    tpu.vector_store %arg8[%c240, %c0_61], %175 {strides = array<i32>} : memref<512x512xbf16, #tpu.memory_space<vmem>>, vector<16x512xbf16>,
    %c0_62 = arith.constant 0 : index
    %c0_63 = arith.constant 0 : index
    %177 = vector.load %arg7[%c0_62, %c0_63] : memref<16x512xf32, #tpu.memory_space<vmem>>, vector<16x512xf32>
    %c0_64 = arith.constant 0 : index
    %c128_65 = arith.constant 128 : index
    %178 = vector.load %arg3[%c0_64, %c128_65] : memref<16x512xbf16, #tpu.memory_space<vmem>>, vector<16x128xbf16>
    %c128_66 = arith.constant 128 : index
    %c0_67 = arith.constant 0 : index
    %179 = vector.load %arg8[%c128_66, %c0_67] : memref<512x512xbf16, #tpu.memory_space<vmem>>, vector<128x512xbf16>
    %cst_68 = arith.constant dense<0.000000e+00> : vector<16x512xf32>
    %180 = tpu.matmul %178, %179, %cst_68 {dimension_numbers = #tpu.dot_dimension_numbers<[1], [0], [0], [1], [0, 0, 1, 1], [], []>} : vector<16x128xbf16>, vector<128x512xbf16>, vector<16x512xf32> -> vector<16x512xf32>
    %181 = arith.addf %177, %180 : vector<16x512xf32>
    %c0_69 = arith.constant 0 : index
    %c0_70 = arith.constant 0 : index
    %182 = vector.load %arg7[%c0_69, %c0_70] : memref<16x512xf32, #tpu.memory_space<vmem>>, vector<16x512xf32>
    tpu.vector_store %arg7[%c0_69, %c0_70], %181 {strides = array<i32>} : memref<16x512xf32, #tpu.memory_space<vmem>>, vector<16x512xf32>,
    %c32_71 = arith.constant 32 : index
    %c0_72 = arith.constant 0 : index
    %183 = vector.load %arg4[%c32_71, %c0_72] : memref<64x512xi32, #tpu.memory_space<vmem>>, vector<16x512xi32>
    %c4_i32_73 = arith.constant 4 : i32
    %184 = arith.muli %arg2, %c4_i32_73 : i32
    %c2_i32 = arith.constant 2 : i32
    %185 = arith.addi %184, %c2_i32 : i32
    %186 = arith.index_cast %185 : i32 to index
    %c0_74 = arith.constant 0 : index
    %187 = vector.load %arg5[%186, %c0_74] : memref<8x512xf32, #tpu.memory_space<vmem>>, vector<1x512xf32>
    %188 = vector.shape_cast %187 : vector<1x512xf32> to vector<1x512xf32>
    %189 = vector.broadcast %188 : vector<1x512xf32> to vector<16x512xf32>
    %c4_i32_75 = arith.constant 4 : i32
    %190 = arith.addi %c4_i32_75, %185 : i32
    %191 = arith.index_cast %190 : i32 to index
    %c0_76 = arith.constant 0 : index
    %192 = vector.load %arg5[%191, %c0_76] : memref<8x512xf32, #tpu.memory_space<vmem>>, vector<1x512xf32>
    %193 = vector.shape_cast %192 : vector<1x512xf32> to vector<1x512xf32>
    %194 = vector.broadcast %193 : vector<1x512xf32> to vector<16x512xf32>
    %c0_i32_77 = arith.constant 0 : i32
    %195 = vector.broadcast %c0_i32_77 : i32 to vector<16x512xi32>
    %196 = arith.shrsi %183, %195 : vector<16x512xi32>
    %c15_i32_78 = arith.constant 15 : i32
    %197 = vector.broadcast %c15_i32_78 : i32 to vector<16x512xi32>
    %198 = arith.andi %196, %197 : vector<16x512xi32>
    %199 = arith.sitofp %198 : vector<16x512xi32> to vector<16x512xf32>
    %200 = arith.mulf %199, %189 : vector<16x512xf32>
    %201 = arith.addf %200, %194 : vector<16x512xf32>
    %202 = arith.truncf %201 : vector<16x512xf32> to vector<16x512xbf16>
    %c256 = arith.constant 256 : index
    %c0_79 = arith.constant 0 : index
    %203 = vector.load %arg8[%c256, %c0_79] : memref<512x512xbf16, #tpu.memory_space<vmem>>, vector<16x512xbf16>
    tpu.vector_store %arg8[%c256, %c0_79], %202 {strides = array<i32>} : memref<512x512xbf16, #tpu.memory_space<vmem>>, vector<16x512xbf16>,
    %c4_i32_80 = arith.constant 4 : i32
    %204 = vector.broadcast %c4_i32_80 : i32 to vector<16x512xi32>
    %205 = arith.shrsi %183, %204 : vector<16x512xi32>
    %c15_i32_81 = arith.constant 15 : i32
    %206 = vector.broadcast %c15_i32_81 : i32 to vector<16x512xi32>
    %207 = arith.andi %205, %206 : vector<16x512xi32>
    %208 = arith.sitofp %207 : vector<16x512xi32> to vector<16x512xf32>
    %209 = arith.mulf %208, %189 : vector<16x512xf32>
    %210 = arith.addf %209, %194 : vector<16x512xf32>
    %211 = arith.truncf %210 : vector<16x512xf32> to vector<16x512xbf16>
    %c272 = arith.constant 272 : index
    %c0_82 = arith.constant 0 : index
    %212 = vector.load %arg8[%c272, %c0_82] : memref<512x512xbf16, #tpu.memory_space<vmem>>, vector<16x512xbf16>
    tpu.vector_store %arg8[%c272, %c0_82], %211 {strides = array<i32>} : memref<512x512xbf16, #tpu.memory_space<vmem>>, vector<16x512xbf16>,
    %c8_i32_83 = arith.constant 8 : i32
    %213 = vector.broadcast %c8_i32_83 : i32 to vector<16x512xi32>
    %214 = arith.shrsi %183, %213 : vector<16x512xi32>
    %c15_i32_84 = arith.constant 15 : i32
    %215 = vector.broadcast %c15_i32_84 : i32 to vector<16x512xi32>
    %216 = arith.andi %214, %215 : vector<16x512xi32>
    %217 = arith.sitofp %216 : vector<16x512xi32> to vector<16x512xf32>
    %218 = arith.mulf %217, %189 : vector<16x512xf32>
    %219 = arith.addf %218, %194 : vector<16x512xf32>
    %220 = arith.truncf %219 : vector<16x512xf32> to vector<16x512xbf16>
    %c288 = arith.constant 288 : index
    %c0_85 = arith.constant 0 : index
    %221 = vector.load %arg8[%c288, %c0_85] : memref<512x512xbf16, #tpu.memory_space<vmem>>, vector<16x512xbf16>
    tpu.vector_store %arg8[%c288, %c0_85], %220 {strides = array<i32>} : memref<512x512xbf16, #tpu.memory_space<vmem>>, vector<16x512xbf16>,
    %c12_i32_86 = arith.constant 12 : i32
    %222 = vector.broadcast %c12_i32_86 : i32 to vector<16x512xi32>
    %223 = arith.shrsi %183, %222 : vector<16x512xi32>
    %c15_i32_87 = arith.constant 15 : i32
    %224 = vector.broadcast %c15_i32_87 : i32 to vector<16x512xi32>
    %225 = arith.andi %223, %224 : vector<16x512xi32>
    %226 = arith.sitofp %225 : vector<16x512xi32> to vector<16x512xf32>
    %227 = arith.mulf %226, %189 : vector<16x512xf32>
    %228 = arith.addf %227, %194 : vector<16x512xf32>
    %229 = arith.truncf %228 : vector<16x512xf32> to vector<16x512xbf16>
    %c304 = arith.constant 304 : index
    %c0_88 = arith.constant 0 : index
    %230 = vector.load %arg8[%c304, %c0_88] : memref<512x512xbf16, #tpu.memory_space<vmem>>, vector<16x512xbf16>
    tpu.vector_store %arg8[%c304, %c0_88], %229 {strides = array<i32>} : memref<512x512xbf16, #tpu.memory_space<vmem>>, vector<16x512xbf16>,
    %c16_i32_89 = arith.constant 16 : i32
    %231 = vector.broadcast %c16_i32_89 : i32 to vector<16x512xi32>
    %232 = arith.shrsi %183, %231 : vector<16x512xi32>
    %c15_i32_90 = arith.constant 15 : i32
    %233 = vector.broadcast %c15_i32_90 : i32 to vector<16x512xi32>
    %234 = arith.andi %232, %233 : vector<16x512xi32>
    %235 = arith.sitofp %234 : vector<16x512xi32> to vector<16x512xf32>
    %236 = arith.mulf %235, %189 : vector<16x512xf32>
    %237 = arith.addf %236, %194 : vector<16x512xf32>
    %238 = arith.truncf %237 : vector<16x512xf32> to vector<16x512xbf16>
    %c320 = arith.constant 320 : index
    %c0_91 = arith.constant 0 : index
    %239 = vector.load %arg8[%c320, %c0_91] : memref<512x512xbf16, #tpu.memory_space<vmem>>, vector<16x512xbf16>
    tpu.vector_store %arg8[%c320, %c0_91], %238 {strides = array<i32>} : memref<512x512xbf16, #tpu.memory_space<vmem>>, vector<16x512xbf16>,
    %c20_i32_92 = arith.constant 20 : i32
    %240 = vector.broadcast %c20_i32_92 : i32 to vector<16x512xi32>
    %241 = arith.shrsi %183, %240 : vector<16x512xi32>
    %c15_i32_93 = arith.constant 15 : i32
    %242 = vector.broadcast %c15_i32_93 : i32 to vector<16x512xi32>
    %243 = arith.andi %241, %242 : vector<16x512xi32>
    %244 = arith.sitofp %243 : vector<16x512xi32> to vector<16x512xf32>
    %245 = arith.mulf %244, %189 : vector<16x512xf32>
    %246 = arith.addf %245, %194 : vector<16x512xf32>
    %247 = arith.truncf %246 : vector<16x512xf32> to vector<16x512xbf16>
    %c336 = arith.constant 336 : index
    %c0_94 = arith.constant 0 : index
    %248 = vector.load %arg8[%c336, %c0_94] : memref<512x512xbf16, #tpu.memory_space<vmem>>, vector<16x512xbf16>
    tpu.vector_store %arg8[%c336, %c0_94], %247 {strides = array<i32>} : memref<512x512xbf16, #tpu.memory_space<vmem>>, vector<16x512xbf16>,
    %c24_i32_95 = arith.constant 24 : i32
    %249 = vector.broadcast %c24_i32_95 : i32 to vector<16x512xi32>
    %250 = arith.shrsi %183, %249 : vector<16x512xi32>
    %c15_i32_96 = arith.constant 15 : i32
    %251 = vector.broadcast %c15_i32_96 : i32 to vector<16x512xi32>
    %252 = arith.andi %250, %251 : vector<16x512xi32>
    %253 = arith.sitofp %252 : vector<16x512xi32> to vector<16x512xf32>
    %254 = arith.mulf %253, %189 : vector<16x512xf32>
    %255 = arith.addf %254, %194 : vector<16x512xf32>
    %256 = arith.truncf %255 : vector<16x512xf32> to vector<16x512xbf16>
    %c352 = arith.constant 352 : index
    %c0_97 = arith.constant 0 : index
    %257 = vector.load %arg8[%c352, %c0_97] : memref<512x512xbf16, #tpu.memory_space<vmem>>, vector<16x512xbf16>
    tpu.vector_store %arg8[%c352, %c0_97], %256 {strides = array<i32>} : memref<512x512xbf16, #tpu.memory_space<vmem>>, vector<16x512xbf16>,
    %c28_i32_98 = arith.constant 28 : i32
    %258 = vector.broadcast %c28_i32_98 : i32 to vector<16x512xi32>
    %259 = arith.shrsi %183, %258 : vector<16x512xi32>
    %c15_i32_99 = arith.constant 15 : i32
    %260 = vector.broadcast %c15_i32_99 : i32 to vector<16x512xi32>
    %261 = arith.andi %259, %260 : vector<16x512xi32>
    %262 = arith.sitofp %261 : vector<16x512xi32> to vector<16x512xf32>
    %263 = arith.mulf %262, %189 : vector<16x512xf32>
    %264 = arith.addf %263, %194 : vector<16x512xf32>
    %265 = arith.truncf %264 : vector<16x512xf32> to vector<16x512xbf16>
    %c368 = arith.constant 368 : index
    %c0_100 = arith.constant 0 : index
    %266 = vector.load %arg8[%c368, %c0_100] : memref<512x512xbf16, #tpu.memory_space<vmem>>, vector<16x512xbf16>
    tpu.vector_store %arg8[%c368, %c0_100], %265 {strides = array<i32>} : memref<512x512xbf16, #tpu.memory_space<vmem>>, vector<16x512xbf16>,
    %c0_101 = arith.constant 0 : index
    %c0_102 = arith.constant 0 : index
    %267 = vector.load %arg7[%c0_101, %c0_102] : memref<16x512xf32, #tpu.memory_space<vmem>>, vector<16x512xf32>
    %c0_103 = arith.constant 0 : index
    %c256_104 = arith.constant 256 : index
    %268 = vector.load %arg3[%c0_103, %c256_104] : memref<16x512xbf16, #tpu.memory_space<vmem>>, vector<16x128xbf16>
    %c256_105 = arith.constant 256 : index
    %c0_106 = arith.constant 0 : index
    %269 = vector.load %arg8[%c256_105, %c0_106] : memref<512x512xbf16, #tpu.memory_space<vmem>>, vector<128x512xbf16>
    %cst_107 = arith.constant dense<0.000000e+00> : vector<16x512xf32>
    %270 = tpu.matmul %268, %269, %cst_107 {dimension_numbers = #tpu.dot_dimension_numbers<[1], [0], [0], [1], [0, 0, 1, 1], [], []>} : vector<16x128xbf16>, vector<128x512xbf16>, vector<16x512xf32> -> vector<16x512xf32>
    %271 = arith.addf %267, %270 : vector<16x512xf32>
    %c0_108 = arith.constant 0 : index
    %c0_109 = arith.constant 0 : index
    %272 = vector.load %arg7[%c0_108, %c0_109] : memref<16x512xf32, #tpu.memory_space<vmem>>, vector<16x512xf32>
    tpu.vector_store %arg7[%c0_108, %c0_109], %271 {strides = array<i32>} : memref<16x512xf32, #tpu.memory_space<vmem>>, vector<16x512xf32>,
    %c48_110 = arith.constant 48 : index
    %c0_111 = arith.constant 0 : index
    %273 = vector.load %arg4[%c48_110, %c0_111] : memref<64x512xi32, #tpu.memory_space<vmem>>, vector<16x512xi32>
    %c4_i32_112 = arith.constant 4 : i32
    %274 = arith.muli %arg2, %c4_i32_112 : i32
    %c3_i32 = arith.constant 3 : i32
    %275 = arith.addi %274, %c3_i32 : i32
    %276 = arith.index_cast %275 : i32 to index
    %c0_113 = arith.constant 0 : index
    %277 = vector.load %arg5[%276, %c0_113] : memref<8x512xf32, #tpu.memory_space<vmem>>, vector<1x512xf32>
    %278 = vector.shape_cast %277 : vector<1x512xf32> to vector<1x512xf32>
    %279 = vector.broadcast %278 : vector<1x512xf32> to vector<16x512xf32>
    %c4_i32_114 = arith.constant 4 : i32
    %280 = arith.addi %c4_i32_114, %275 : i32
    %281 = arith.index_cast %280 : i32 to index
    %c0_115 = arith.constant 0 : index
    %282 = vector.load %arg5[%281, %c0_115] : memref<8x512xf32, #tpu.memory_space<vmem>>, vector<1x512xf32>
    %283 = vector.shape_cast %282 : vector<1x512xf32> to vector<1x512xf32>
    %284 = vector.broadcast %283 : vector<1x512xf32> to vector<16x512xf32>
    %c0_i32_116 = arith.constant 0 : i32
    %285 = vector.broadcast %c0_i32_116 : i32 to vector<16x512xi32>
    %286 = arith.shrsi %273, %285 : vector<16x512xi32>
    %c15_i32_117 = arith.constant 15 : i32
    %287 = vector.broadcast %c15_i32_117 : i32 to vector<16x512xi32>
    %288 = arith.andi %286, %287 : vector<16x512xi32>
    %289 = arith.sitofp %288 : vector<16x512xi32> to vector<16x512xf32>
    %290 = arith.mulf %289, %279 : vector<16x512xf32>
    %291 = arith.addf %290, %284 : vector<16x512xf32>
    %292 = arith.truncf %291 : vector<16x512xf32> to vector<16x512xbf16>
    %c384 = arith.constant 384 : index
    %c0_118 = arith.constant 0 : index
    %293 = vector.load %arg8[%c384, %c0_118] : memref<512x512xbf16, #tpu.memory_space<vmem>>, vector<16x512xbf16>
    tpu.vector_store %arg8[%c384, %c0_118], %292 {strides = array<i32>} : memref<512x512xbf16, #tpu.memory_space<vmem>>, vector<16x512xbf16>,
    %c4_i32_119 = arith.constant 4 : i32
    %294 = vector.broadcast %c4_i32_119 : i32 to vector<16x512xi32>
    %295 = arith.shrsi %273, %294 : vector<16x512xi32>
    %c15_i32_120 = arith.constant 15 : i32
    %296 = vector.broadcast %c15_i32_120 : i32 to vector<16x512xi32>
    %297 = arith.andi %295, %296 : vector<16x512xi32>
    %298 = arith.sitofp %297 : vector<16x512xi32> to vector<16x512xf32>
    %299 = arith.mulf %298, %279 : vector<16x512xf32>
    %300 = arith.addf %299, %284 : vector<16x512xf32>
    %301 = arith.truncf %300 : vector<16x512xf32> to vector<16x512xbf16>
    %c400 = arith.constant 400 : index
    %c0_121 = arith.constant 0 : index
    %302 = vector.load %arg8[%c400, %c0_121] : memref<512x512xbf16, #tpu.memory_space<vmem>>, vector<16x512xbf16>
    tpu.vector_store %arg8[%c400, %c0_121], %301 {strides = array<i32>} : memref<512x512xbf16, #tpu.memory_space<vmem>>, vector<16x512xbf16>,
    %c8_i32_122 = arith.constant 8 : i32
    %303 = vector.broadcast %c8_i32_122 : i32 to vector<16x512xi32>
    %304 = arith.shrsi %273, %303 : vector<16x512xi32>
    %c15_i32_123 = arith.constant 15 : i32
    %305 = vector.broadcast %c15_i32_123 : i32 to vector<16x512xi32>
    %306 = arith.andi %304, %305 : vector<16x512xi32>
    %307 = arith.sitofp %306 : vector<16x512xi32> to vector<16x512xf32>
    %308 = arith.mulf %307, %279 : vector<16x512xf32>
    %309 = arith.addf %308, %284 : vector<16x512xf32>
    %310 = arith.truncf %309 : vector<16x512xf32> to vector<16x512xbf16>
    %c416 = arith.constant 416 : index
    %c0_124 = arith.constant 0 : index
    %311 = vector.load %arg8[%c416, %c0_124] : memref<512x512xbf16, #tpu.memory_space<vmem>>, vector<16x512xbf16>
    tpu.vector_store %arg8[%c416, %c0_124], %310 {strides = array<i32>} : memref<512x512xbf16, #tpu.memory_space<vmem>>, vector<16x512xbf16>,
    %c12_i32_125 = arith.constant 12 : i32
    %312 = vector.broadcast %c12_i32_125 : i32 to vector<16x512xi32>
    %313 = arith.shrsi %273, %312 : vector<16x512xi32>
    %c15_i32_126 = arith.constant 15 : i32
    %314 = vector.broadcast %c15_i32_126 : i32 to vector<16x512xi32>
    %315 = arith.andi %313, %314 : vector<16x512xi32>
    %316 = arith.sitofp %315 : vector<16x512xi32> to vector<16x512xf32>
    %317 = arith.mulf %316, %279 : vector<16x512xf32>
    %318 = arith.addf %317, %284 : vector<16x512xf32>
    %319 = arith.truncf %318 : vector<16x512xf32> to vector<16x512xbf16>
    %c432 = arith.constant 432 : index
    %c0_127 = arith.constant 0 : index
    %320 = vector.load %arg8[%c432, %c0_127] : memref<512x512xbf16, #tpu.memory_space<vmem>>, vector<16x512xbf16>
    tpu.vector_store %arg8[%c432, %c0_127], %319 {strides = array<i32>} : memref<512x512xbf16, #tpu.memory_space<vmem>>, vector<16x512xbf16>,
    %c16_i32_128 = arith.constant 16 : i32
    %321 = vector.broadcast %c16_i32_128 : i32 to vector<16x512xi32>
    %322 = arith.shrsi %273, %321 : vector<16x512xi32>
    %c15_i32_129 = arith.constant 15 : i32
    %323 = vector.broadcast %c15_i32_129 : i32 to vector<16x512xi32>
    %324 = arith.andi %322, %323 : vector<16x512xi32>
    %325 = arith.sitofp %324 : vector<16x512xi32> to vector<16x512xf32>
    %326 = arith.mulf %325, %279 : vector<16x512xf32>
    %327 = arith.addf %326, %284 : vector<16x512xf32>
    %328 = arith.truncf %327 : vector<16x512xf32> to vector<16x512xbf16>
    %c448 = arith.constant 448 : index
    %c0_130 = arith.constant 0 : index
    %329 = vector.load %arg8[%c448, %c0_130] : memref<512x512xbf16, #tpu.memory_space<vmem>>, vector<16x512xbf16>
    tpu.vector_store %arg8[%c448, %c0_130], %328 {strides = array<i32>} : memref<512x512xbf16, #tpu.memory_space<vmem>>, vector<16x512xbf16>,
    %c20_i32_131 = arith.constant 20 : i32
    %330 = vector.broadcast %c20_i32_131 : i32 to vector<16x512xi32>
    %331 = arith.shrsi %273, %330 : vector<16x512xi32>
    %c15_i32_132 = arith.constant 15 : i32
    %332 = vector.broadcast %c15_i32_132 : i32 to vector<16x512xi32>
    %333 = arith.andi %331, %332 : vector<16x512xi32>
    %334 = arith.sitofp %333 : vector<16x512xi32> to vector<16x512xf32>
    %335 = arith.mulf %334, %279 : vector<16x512xf32>
    %336 = arith.addf %335, %284 : vector<16x512xf32>
    %337 = arith.truncf %336 : vector<16x512xf32> to vector<16x512xbf16>
    %c464 = arith.constant 464 : index
    %c0_133 = arith.constant 0 : index
    %338 = vector.load %arg8[%c464, %c0_133] : memref<512x512xbf16, #tpu.memory_space<vmem>>, vector<16x512xbf16>
    tpu.vector_store %arg8[%c464, %c0_133], %337 {strides = array<i32>} : memref<512x512xbf16, #tpu.memory_space<vmem>>, vector<16x512xbf16>,
    %c24_i32_134 = arith.constant 24 : i32
    %339 = vector.broadcast %c24_i32_134 : i32 to vector<16x512xi32>
    %340 = arith.shrsi %273, %339 : vector<16x512xi32>
    %c15_i32_135 = arith.constant 15 : i32
    %341 = vector.broadcast %c15_i32_135 : i32 to vector<16x512xi32>
    %342 = arith.andi %340, %341 : vector<16x512xi32>
    %343 = arith.sitofp %342 : vector<16x512xi32> to vector<16x512xf32>
    %344 = arith.mulf %343, %279 : vector<16x512xf32>
    %345 = arith.addf %344, %284 : vector<16x512xf32>
    %346 = arith.truncf %345 : vector<16x512xf32> to vector<16x512xbf16>
    %c480 = arith.constant 480 : index
    %c0_136 = arith.constant 0 : index
    %347 = vector.load %arg8[%c480, %c0_136] : memref<512x512xbf16, #tpu.memory_space<vmem>>, vector<16x512xbf16>
    tpu.vector_store %arg8[%c480, %c0_136], %346 {strides = array<i32>} : memref<512x512xbf16, #tpu.memory_space<vmem>>, vector<16x512xbf16>,
    %c28_i32_137 = arith.constant 28 : i32
    %348 = vector.broadcast %c28_i32_137 : i32 to vector<16x512xi32>
    %349 = arith.shrsi %273, %348 : vector<16x512xi32>
    %c15_i32_138 = arith.constant 15 : i32
    %350 = vector.broadcast %c15_i32_138 : i32 to vector<16x512xi32>
    %351 = arith.andi %349, %350 : vector<16x512xi32>
    %352 = arith.sitofp %351 : vector<16x512xi32> to vector<16x512xf32>
    %353 = arith.mulf %352, %279 : vector<16x512xf32>
    %354 = arith.addf %353, %284 : vector<16x512xf32>
    %355 = arith.truncf %354 : vector<16x512xf32> to vector<16x512xbf16>
    %c496 = arith.constant 496 : index
    %c0_139 = arith.constant 0 : index
    %356 = vector.load %arg8[%c496, %c0_139] : memref<512x512xbf16, #tpu.memory_space<vmem>>, vector<16x512xbf16>
    tpu.vector_store %arg8[%c496, %c0_139], %355 {strides = array<i32>} : memref<512x512xbf16, #tpu.memory_space<vmem>>, vector<16x512xbf16>,
    %c0_140 = arith.constant 0 : index
    %c0_141 = arith.constant 0 : index
    %357 = vector.load %arg7[%c0_140, %c0_141] : memref<16x512xf32, #tpu.memory_space<vmem>>, vector<16x512xf32>
    %c0_142 = arith.constant 0 : index
    %c384_143 = arith.constant 384 : index
    %358 = vector.load %arg3[%c0_142, %c384_143] : memref<16x512xbf16, #tpu.memory_space<vmem>>, vector<16x128xbf16>
    %c384_144 = arith.constant 384 : index
    %c0_145 = arith.constant 0 : index
    %359 = vector.load %arg8[%c384_144, %c0_145] : memref<512x512xbf16, #tpu.memory_space<vmem>>, vector<128x512xbf16>
    %cst_146 = arith.constant dense<0.000000e+00> : vector<16x512xf32>
    %360 = tpu.matmul %358, %359, %cst_146 {dimension_numbers = #tpu.dot_dimension_numbers<[1], [0], [0], [1], [0, 0, 1, 1], [], []>} : vector<16x128xbf16>, vector<128x512xbf16>, vector<16x512xf32> -> vector<16x512xf32>
    %361 = arith.addf %357, %360 : vector<16x512xf32>
    %c0_147 = arith.constant 0 : index
    %c0_148 = arith.constant 0 : index
    %362 = vector.load %arg7[%c0_147, %c0_148] : memref<16x512xf32, #tpu.memory_space<vmem>>, vector<16x512xf32>
    tpu.vector_store %arg7[%c0_147, %c0_148], %361 {strides = array<i32>} : memref<16x512xf32, #tpu.memory_space<vmem>>, vector<16x512xf32>,
    %c0_i32_149 = arith.constant 0 : i32
    %363 = arith.cmpi eq, %arg2, %c0_i32_149 : i32
    %364 = arith.extui %363 : i1 to i32
    %c0_i32_150 = arith.constant 0 : i32
    %365 = arith.cmpi ne, %364, %c0_i32_150 : i32
    scf.if %365 {
      %c0_151 = arith.constant 0 : index
      %c0_152 = arith.constant 0 : index
      %366 = vector.load %arg7[%c0_151, %c0_152] : memref<16x512xf32, #tpu.memory_space<vmem>>, vector<16x512xf32>
      %367 = arith.mulf %366, %366 : vector<16x512xf32>
      %368 = arith.mulf %366, %367 : vector<16x512xf32>
      %cst_153 = arith.constant 4.471500e-02 : f32
      %369 = vector.broadcast %cst_153 : f32 to vector<16x512xf32>
      %370 = arith.mulf %369, %368 : vector<16x512xf32>
      %371 = arith.addf %366, %370 : vector<16x512xf32>
      %cst_154 = arith.constant 0.797884583 : f32
      %372 = vector.broadcast %cst_154 : f32 to vector<16x512xf32>
      %373 = arith.mulf %372, %371 : vector<16x512xf32>
      %374 = math.tanh %373 : vector<16x512xf32>
      %cst_155 = arith.constant 1.000000e+00 : f32
      %375 = vector.broadcast %cst_155 : f32 to vector<16x512xf32>
      %376 = arith.addf %375, %374 : vector<16x512xf32>
      %cst_156 = arith.constant 5.000000e-01 : f32
      %377 = vector.broadcast %cst_156 : f32 to vector<16x512xf32>
      %378 = arith.mulf %377, %376 : vector<16x512xf32>
      %379 = arith.mulf %366, %378 : vector<16x512xf32>
      %380 = arith.truncf %379 : vector<16x512xf32> to vector<16x512xbf16>
      %c0_157 = arith.constant 0 : index
      %c0_158 = arith.constant 0 : index
      %381 = vector.load %arg6[%c0_157, %c0_158] : memref<16x512xbf16, #tpu.memory_space<vmem>>, vector<16x512xbf16>
      tpu.vector_store %arg6[%c0_157, %c0_158], %380 {strides = array<i32>} : memref<16x512xbf16, #tpu.memory_space<vmem>>, vector<16x512xbf16>,
    } else {
    }
    return
  }
  func.func @transform_0(%arg0: i32, %arg1: i32, %arg2: i32) -> (i32, i32) {
    %c0_i32 = arith.constant 0 : i32
    return %arg0, %arg2 : i32, i32
  }
  func.func @transform_1(%arg0: i32, %arg1: i32, %arg2: i32) -> (i32, i32) {
    %c0_i32 = arith.constant 0 : i32
    return %arg2, %arg1 : i32, i32
  }
  func.func @transform_2(%arg0: i32, %arg1: i32, %arg2: i32) -> (i32, i32) {
    %c0_i32 = arith.constant 0 : i32
    %c0_i32_0 = arith.constant 0 : i32
    return %c0_i32, %arg1 : i32, i32
  }
  func.func @transform_3(%arg0: i32, %arg1: i32, %arg2: i32) -> (i32, i32) {
    %c0_i32 = arith.constant 0 : i32
    return %arg0, %arg1 : i32, i32
  }
}

</mosaic_0001>

<llo_original>
// kernel: tpu_custom_call.1
$region0: #{tpu_custom_call.1}
  #allocation0 [shape = 'u32[]', space=smem, size = 0x4, offset = 0x4, fixed_abs, tag = 'smem constant byte address 0x4 - core index']
  #allocation1 [shape = 'u32[72,128]{1,0:T(1,128)}', space=vmem, size = 0x9000, scoped, tag = 'internal scratch']
  #allocation2 [shape = 'f32[16,512]{1,0:T(8,128)}', space=vmem, size = 0x8000, scoped, tag = 'scratch operand']
  #allocation3 [shape = 'bf16[512,512]{1,0:T(8,128)(2,1)}', space=vmem, size = 0x80000, scoped, tag = 'scratch operand']
  %s0 = inlined_call_operand.hbm [shape: bf16[16,512], index: 0, kind: input, shape index: {}]
  %s1 = inlined_call_operand.hbm [shape: s32[64,512], index: 1, kind: input, shape index: {}]
  %s2 = inlined_call_operand.hbm [shape: f32[8,512], index: 2, kind: input, shape index: {}]
  %s3 = inlined_call_operand.hbm [shape: bf16[16,512], index: 3, kind: output, shape index: {}]
  %s4 = sld [smem:[#allocation0]]
  $region42: #{tpu_custom_call.1} parent=0
    _
  %s6 = ssub.s32 1, %s4
  %s7 = scalar_select 0, %s6, %s4
  $region1: #{tpu_custom_call.1} parent=0
    #allocation4 [shape = 'u8[16384]{0}', space=vmem, size = 0x4000, scoped, tag = 'input window, operand 0, single buffered']
    #allocation5 [shape = 's32[1]{0}', space=sflag, size = 0x4, scoped, tag = 'scoped memory for tpu_custom_call.1']
    #allocation6 [shape = 's32[1]{0}', space=sflag, size = 0x4, scoped, tag = 'scoped memory for tpu_custom_call.1']
    #allocation7 [shape = 'u8[131072]{0}', space=vmem, size = 0x20000, scoped, tag = 'input window, operand 1, single buffered']
    #allocation8 [shape = 's32[1]{0}', space=sflag, size = 0x4, scoped, tag = 'scoped memory for tpu_custom_call.1']
    #allocation9 [shape = 'u8[16384]{0}', space=vmem, size = 0x4000, scoped, tag = 'input window, operand 2, single buffered']
    #allocation10 [shape = 'u8[16384]{0}', space=vmem, size = 0x4000, scoped, tag = 'output window, operand 0, single buffered']
    %8 = vsyncpa [#allocation5], 0
    %9 = vsyncpa [#allocation8], 0
    %10 = vsyncpa [#allocation6], 0
    // Predicated region
    $region2: #{tpu_custom_call.1} parent=1 // pred_check
      _
    $region3: #{tpu_custom_call.1} parent=1 // pred_check_branch
      %12 = sbr.rel (0) target = $region5
    $region4: #{tpu_custom_call.1} parent=1 // pred_region
      %14 = vsyncadd [#allocation5], 0
      %s15 = sshll.u32 %s0, 4
      %s16 = int_to_ptr.hbm [resolvable:$true] %s15
      %s17 = sshll.u32 [#allocation4], 4
      %s18 = int_to_ptr.vmem [resolvable:$true] %s17
      %23 = dma.hbm_to_vmem [thread:$0]  %s16, 512, %s18, [#allocation5], 256, 256, 16
    $region5: #{tpu_custom_call.1} parent=1 // pred_fallthru
      _
    // Predicated region
    $region6: #{tpu_custom_call.1} parent=1 // pred_check
      _
    $region7: #{tpu_custom_call.1} parent=1 // pred_check_branch
      %25 = sbr.rel (0) target = $region9
    $region8: #{tpu_custom_call.1} parent=1 // pred_region
      %27 = vsyncadd [#allocation8], 0
      %s28 = sshll.u32 %s1, 4
      %s29 = int_to_ptr.hbm [resolvable:$true] %s28
      %s30 = sshll.u32 [#allocation7], 4
      %s31 = int_to_ptr.vmem [resolvable:$true] %s30
      %36 = dma.hbm_to_vmem [thread:$0]  %s29, 4096, %s31, [#allocation8], 512, 512, 32
    $region9: #{tpu_custom_call.1} parent=1 // pred_fallthru
      _
    // Predicated region
    $region10: #{tpu_custom_call.1} parent=1 // pred_check
      _
    $region11: #{tpu_custom_call.1} parent=1 // pred_check_branch
      %38 = sbr.rel (0) target = $region13
    $region12: #{tpu_custom_call.1} parent=1 // pred_region
      %40 = vsyncadd [#allocation8], 0
      %s42 = sshll.u32 %s2, 4
      %s43 = int_to_ptr.hbm [resolvable:$true] %s42
      %s44 = sshll.u32 [#allocation9], 4
      %s45 = int_to_ptr.vmem [resolvable:$true] %s44
      %47 = dma.hbm_to_vmem [thread:$0]  %s43, 512, %s45, [#allocation8]
    $region13: #{tpu_custom_call.1} parent=1 // pred_fallthru
      _
    // Predicated region
    $region14: #{tpu_custom_call.1} parent=1 // pred_check
      _
    $region15: #{tpu_custom_call.1} parent=1 // pred_check_branch
      %49 = sbr.rel (0) target = $region17
    $region16: #{tpu_custom_call.1} parent=1 // pred_region
      %51 = dma.done [#allocation5], 512
    $region17: #{tpu_custom_call.1} parent=1 // pred_fallthru
      _
    // Predicated region
    $region18: #{tpu_custom_call.1} parent=1 // pred_check
      _
    $region19: #{tpu_custom_call.1} parent=1 // pred_check_branch
      %53 = sbr.rel (0) target = $region21
    $region20: #{tpu_custom_call.1} parent=1 // pred_region
      %55 = dma.done [#allocation8], 4096
    $region21: #{tpu_custom_call.1} parent=1 // pred_fallthru
      _
    // Predicated region
    $region22: #{tpu_custom_call.1} parent=1 // pred_check
      _
    $region23: #{tpu_custom_call.1} parent=1 // pred_check_branch
      %57 = sbr.rel (0) target = $region25
    $region24: #{tpu_custom_call.1} parent=1 // pred_region
      %59 = dma.done [#allocation8], 512
    $region25: #{tpu_custom_call.1} parent=1 // pred_fallthru
      _
    %p60 = scmp.eq.s32.totalorder 0, 0
    // Predicated region
    $region26: #{tpu_custom_call.1} parent=1 // pred_check
      %p61 = pneg %p60
    $region27: #{tpu_custom_call.1} parent=1 // pred_check_branch
      %63 = sbr.rel (%p61) target = $region29
    $region28: #{tpu_custom_call.1} parent=1 // pred_region
      %64 = vst [vmem:[#allocation2] sm:$0xff] 0.0
      %65 = vst [vmem:[#allocation2 + $0x8] sm:$0xff] 0.0
      %66 = vst [vmem:[#allocation2 + $0x10] sm:$0xff] 0.0
      %67 = vst [vmem:[#allocation2 + $0x18] sm:$0xff] 0.0
      %68 = vst [vmem:[#allocation2 + $0x20] sm:$0xff] 0.0
      %69 = vst [vmem:[#allocation2 + $0x28] sm:$0xff] 0.0
      %70 = vst [vmem:[#allocation2 + $0x30] sm:$0xff] 0.0
      %71 = vst [vmem:[#allocation2 + $0x38] sm:$0xff] 0.0
    $region29: #{tpu_custom_call.1} parent=1 // pred_fallthru
      _
    %v72 = vld [vmem:[#allocation7] sm:$0xff]
    %v73 = vld [vmem:[#allocation7 + $0x8] sm:$0xff]
    %v74 = vld [vmem:[#allocation7 + $0x10] sm:$0xff]
    %v75 = vld [vmem:[#allocation7 + $0x18] sm:$0xff]
    %v76 = vld [vmem:[#allocation7 + $0x20] sm:$0xff]
    %v77 = vld [vmem:[#allocation7 + $0x28] sm:$0xff]
    %v78 = vld [vmem:[#allocation7 + $0x30] sm:$0xff]
    %v79 = vld [vmem:[#allocation7 + $0x38] sm:$0xff]
    %s80 = smul.u32 0, 4
    %s81 = sshra.s32 %s80, 3
    %s82 = sand.u32 %s80, 7
    %s83 = sshra.s32 %s80, 3
    %s84 = sand.u32 %s80, 7
    %s85 = smul.u32 %s81, 4
    %s86 = smul.u32 %s85, 8
    %s87 = sadd.s32 %s86, %s84
    %s88 = scalar_lea.vmem [#allocation9], %s87
    %v89 = vld [vmem:[%s88] ss:$8 sm:$0xf]
    %v91 = vperm.slane %v89, 0
    %v92 = vperm.slane %v89, 1
    %v93 = vperm.slane %v89, 2
    %v94 = vperm.slane %v89, 3
    %s99 = sadd.s32 %s80, 4
    %s100 = sshra.s32 %s99, 3
    %s101 = sand.u32 %s99, 7
    %s102 = sshra.s32 %s99, 3
    %s103 = sand.u32 %s99, 7
    %s104 = smul.u32 %s100, 4
    %s105 = smul.u32 %s104, 8
    %s106 = sadd.s32 %s105, %s103
    %s107 = scalar_lea.vmem [#allocation9], %s106
    %v108 = vld [vmem:[%s107] ss:$8 sm:$0xf]
    %v110 = vperm.slane %v108, 0
    %v111 = vperm.slane %v108, 1
    %v112 = vperm.slane %v108, 2
    %v113 = vperm.slane %v108, 3
    %v118 = vand.u32 %v72, 15
    %v119 = vand.u32 %v73, 15
    %v120 = vand.u32 %v74, 15
    %v121 = vand.u32 %v75, 15
    %v122 = vand.u32 %v76, 15
    %v123 = vand.u32 %v77, 15
    %v124 = vand.u32 %v78, 15
    %v125 = vand.u32 %v79, 15
    %v126 = vcvt.s32.f32 %v118
    %v127 = vcvt.s32.f32 %v119
    %v128 = vcvt.s32.f32 %v120
    %v129 = vcvt.s32.f32 %v121
    %v130 = vcvt.s32.f32 %v122
    %v131 = vcvt.s32.f32 %v123
    %v132 = vcvt.s32.f32 %v124
    %v133 = vcvt.s32.f32 %v125
    %v134 = vmul.f32 %v126, %v91
    %v135 = vmul.f32 %v127, %v92
    %v136 = vmul.f32 %v128, %v93
    %v137 = vmul.f32 %v129, %v94
    %v138 = vmul.f32 %v130, %v91
    %v139 = vmul.f32 %v131, %v92
    %v140 = vmul.f32 %v132, %v93
    %v141 = vmul.f32 %v133, %v94
    %v142 = vadd.f32 %v134, %v110
    %v143 = vadd.f32 %v135, %v111
    %v144 = vadd.f32 %v136, %v112
    %v145 = vadd.f32 %v137, %v113
    %v146 = vadd.f32 %v138, %v110
    %v147 = vadd.f32 %v139, %v111
    %v148 = vadd.f32 %v140, %v112
    %v149 = vadd.f32 %v141, %v113
    %v150 = vpack.c.bf16 %v143, %v142
    %v151 = vpack.c.bf16 %v145, %v144
    %v152 = vpack.c.bf16 %v147, %v146
    %v153 = vpack.c.bf16 %v149, %v148
    %154 = vst [vmem:[#allocation3] sm:$0xff] %v150
    %155 = vst [vmem:[#allocation3 + $0x8] sm:$0xff] %v151
    %156 = vst [vmem:[#allocation3 + $0x10] sm:$0xff] %v152
    %157 = vst [vmem:[#allocation3 + $0x18] sm:$0xff] %v153
    %v158 = vshra.s32 %v72, 4
    %v159 = vshra.s32 %v73, 4
    %v160 = vshra.s32 %v74, 4
    %v161 = vshra.s32 %v75, 4
    %v162 = vshra.s32 %v76, 4
    %v163 = vshra.s32 %v77, 4
    %v164 = vshra.s32 %v78, 4
    %v165 = vshra.s32 %v79, 4
    %v166 = vand.u32 %v158, 15
    %v167 = vand.u32 %v159, 15
    %v168 = vand.u32 %v160, 15
    %v169 = vand.u32 %v161, 15
    %v170 = vand.u32 %v162, 15
    %v171 = vand.u32 %v163, 15
    %v172 = vand.u32 %v164, 15
    %v173 = vand.u32 %v165, 15
    %v174 = vcvt.s32.f32 %v166
    %v175 = vcvt.s32.f32 %v167
    %v176 = vcvt.s32.f32 %v168
    %v177 = vcvt.s32.f32 %v169
    %v178 = vcvt.s32.f32 %v170
    %v179 = vcvt.s32.f32 %v171
    %v180 = vcvt.s32.f32 %v172
    %v181 = vcvt.s32.f32 %v173
    %v182 = vmul.f32 %v174, %v91
    %v183 = vmul.f32 %v175, %v92
    %v184 = vmul.f32 %v176, %v93
    %v185 = vmul.f32 %v177, %v94
    %v186 = vmul.f32 %v178, %v91
    %v187 = vmul.f32 %v179, %v92
    %v188 = vmul.f32 %v180, %v93
    %v189 = vmul.f32 %v181, %v94
    %v190 = vadd.f32 %v182, %v110
    %v191 = vadd.f32 %v183, %v111
    %v192 = vadd.f32 %v184, %v112
    %v193 = vadd.f32 %v185, %v113
    %v194 = vadd.f32 %v186, %v110
    %v195 = vadd.f32 %v187, %v111
    %v196 = vadd.f32 %v188, %v112
    %v197 = vadd.f32 %v189, %v113
    %v198 = vpack.c.bf16 %v191, %v190
    %v199 = vpack.c.bf16 %v193, %v192
    %v200 = vpack.c.bf16 %v195, %v194
    %v201 = vpack.c.bf16 %v197, %v196
    %202 = vst [vmem:[#allocation3 + $0x20] sm:$0xff] %v198
    %203 = vst [vmem:[#allocation3 + $0x28] sm:$0xff] %v199
    %204 = vst [vmem:[#allocation3 + $0x30] sm:$0xff] %v200
    %205 = vst [vmem:[#allocation3 + $0x38] sm:$0xff] %v201
    %v206 = vshra.s32 %v72, 8
    %v207 = vshra.s32 %v73, 8
    %v208 = vshra.s32 %v74, 8
    %v209 = vshra.s32 %v75, 8
    %v210 = vshra.s32 %v76, 8
    %v211 = vshra.s32 %v77, 8
    %v212 = vshra.s32 %v78, 8
    %v213 = vshra.s32 %v79, 8
    %v214 = vand.u32 %v206, 15
    %v215 = vand.u32 %v207, 15
    %v216 = vand.u32 %v208, 15
    %v217 = vand.u32 %v209, 15
    %v218 = vand.u32 %v210, 15
    %v219 = vand.u32 %v211, 15
    %v220 = vand.u32 %v212, 15
    %v221 = vand.u32 %v213, 15
    %v222 = vcvt.s32.f32 %v214
    %v223 = vcvt.s32.f32 %v215
    %v224 = vcvt.s32.f32 %v216
    %v225 = vcvt.s32.f32 %v217
    %v226 = vcvt.s32.f32 %v218
    %v227 = vcvt.s32.f32 %v219
    %v228 = vcvt.s32.f32 %v220
    %v229 = vcvt.s32.f32 %v221
    %v230 = vmul.f32 %v222, %v91
    %v231 = vmul.f32 %v223, %v92
    %v232 = vmul.f32 %v224, %v93
    %v233 = vmul.f32 %v225, %v94
    %v234 = vmul.f32 %v226, %v91
    %v235 = vmul.f32 %v227, %v92
    %v236 = vmul.f32 %v228, %v93
    %v237 = vmul.f32 %v229, %v94
    %v238 = vadd.f32 %v230, %v110
    %v239 = vadd.f32 %v231, %v111
    %v240 = vadd.f32 %v232, %v112
    %v241 = vadd.f32 %v233, %v113
    %v242 = vadd.f32 %v234, %v110
    %v243 = vadd.f32 %v235, %v111
    %v244 = vadd.f32 %v236, %v112
    %v245 = vadd.f32 %v237, %v113
    %v246 = vpack.c.bf16 %v239, %v238
    %v247 = vpack.c.bf16 %v241, %v240
    %v248 = vpack.c.bf16 %v243, %v242
    %v249 = vpack.c.bf16 %v245, %v244
    %250 = vst [vmem:[#allocation3 + $0x40] sm:$0xff] %v246
    %251 = vst [vmem:[#allocation3 + $0x48] sm:$0xff] %v247
    %252 = vst [vmem:[#allocation3 + $0x50] sm:$0xff] %v248
    %253 = vst [vmem:[#allocation3 + $0x58] sm:$0xff] %v249
    %v254 = vshra.s32 %v72, 12
    %v255 = vshra.s32 %v73, 12
    %v256 = vshra.s32 %v74, 12
    %v257 = vshra.s32 %v75, 12
    %v258 = vshra.s32 %v76, 12
    %v259 = vshra.s32 %v77, 12
    %v260 = vshra.s32 %v78, 12
    %v261 = vshra.s32 %v79, 12
    %v262 = vand.u32 %v254, 15
    %v263 = vand.u32 %v255, 15
    %v264 = vand.u32 %v256, 15
    %v265 = vand.u32 %v257, 15
    %v266 = vand.u32 %v258, 15
    %v267 = vand.u32 %v259, 15
    %v268 = vand.u32 %v260, 15
    %v269 = vand.u32 %v261, 15
    %v270 = vcvt.s32.f32 %v262
    %v271 = vcvt.s32.f32 %v263
    %v272 = vcvt.s32.f32 %v264
    %v273 = vcvt.s32.f32 %v265
    %v274 = vcvt.s32.f32 %v266
    %v275 = vcvt.s32.f32 %v267
    %v276 = vcvt.s32.f32 %v268
    %v277 = vcvt.s32.f32 %v269
    %v278 = vmul.f32 %v270, %v91
    %v279 = vmul.f32 %v271, %v92
    %v280 = vmul.f32 %v272, %v93
    %v281 = vmul.f32 %v273, %v94
    %v282 = vmul.f32 %v274, %v91
    %v283 = vmul.f32 %v275, %v92
    %v284 = vmul.f32 %v276, %v93
    %v285 = vmul.f32 %v277, %v94
    %v286 = vadd.f32 %v278, %v110
    %v287 = vadd.f32 %v279, %v111
    %v288 = vadd.f32 %v280, %v112
    %v289 = vadd.f32 %v281, %v113
    %v290 = vadd.f32 %v282, %v110
    %v291 = vadd.f32 %v283, %v111
    %v292 = vadd.f32 %v284, %v112
    %v293 = vadd.f32 %v285, %v113
    %v294 = vpack.c.bf16 %v287, %v286
    %v295 = vpack.c.bf16 %v289, %v288
    %v296 = vpack.c.bf16 %v291, %v290
    %v297 = vpack.c.bf16 %v293, %v292
    %298 = vst [vmem:[#allocation3 + $0x60] sm:$0xff] %v294
    %299 = vst [vmem:[#allocation3 + $0x68] sm:$0xff] %v295
    %300 = vst [vmem:[#allocation3 + $0x70] sm:$0xff] %v296
    %301 = vst [vmem:[#allocation3 + $0x78] sm:$0xff] %v297
    %v302 = vshra.s32 %v72, 16
    %v303 = vshra.s32 %v73, 16
    %v304 = vshra.s32 %v74, 16
    %v305 = vshra.s32 %v75, 16
    %v306 = vshra.s32 %v76, 16
    %v307 = vshra.s32 %v77, 16
    %v308 = vshra.s32 %v78, 16
    %v309 = vshra.s32 %v79, 16
    %v310 = vand.u32 %v302, 15
    %v311 = vand.u32 %v303, 15
    %v312 = vand.u32 %v304, 15
    %v313 = vand.u32 %v305, 15
    %v314 = vand.u32 %v306, 15
    %v315 = vand.u32 %v307, 15
    %v316 = vand.u32 %v308, 15
    %v317 = vand.u32 %v309, 15
    %v318 = vcvt.s32.f32 %v310
    %v319 = vcvt.s32.f32 %v311
    %v320 = vcvt.s32.f32 %v312
    %v321 = vcvt.s32.f32 %v313
    %v322 = vcvt.s32.f32 %v314
    %v323 = vcvt.s32.f32 %v315
    %v324 = vcvt.s32.f32 %v316
    %v325 = vcvt.s32.f32 %v317
    %v326 = vmul.f32 %v318, %v91
    %v327 = vmul.f32 %v319, %v92
    %v328 = vmul.f32 %v320, %v93
    %v329 = vmul.f32 %v321, %v94
    %v330 = vmul.f32 %v322, %v91
    %v331 = vmul.f32 %v323, %v92
    %v332 = vmul.f32 %v324, %v93
    %v333 = vmul.f32 %v325, %v94
    %v334 = vadd.f32 %v326, %v110
    %v335 = vadd.f32 %v327, %v111
    %v336 = vadd.f32 %v328, %v112
    %v337 = vadd.f32 %v329, %v113
    %v338 = vadd.f32 %v330, %v110
    %v339 = vadd.f32 %v331, %v111
    %v340 = vadd.f32 %v332, %v112
    %v341 = vadd.f32 %v333, %v113
    %v342 = vpack.c.bf16 %v335, %v334
    %v343 = vpack.c.bf16 %v337, %v336
    %v344 = vpack.c.bf16 %v339, %v338
    %v345 = vpack.c.bf16 %v341, %v340
    %346 = vst [vmem:[#allocation3 + $0x80] sm:$0xff] %v342
    %347 = vst [vmem:[#allocation3 + $0x88] sm:$0xff] %v343
    %348 = vst [vmem:[#allocation3 + $0x90] sm:$0xff] %v344
    %349 = vst [vmem:[#allocation3 + $0x98] sm:$0xff] %v345
    %v350 = vshra.s32 %v72, 20
    %v351 = vshra.s32 %v73, 20
    %v352 = vshra.s32 %v74, 20
    %v353 = vshra.s32 %v75, 20
    %v354 = vshra.s32 %v76, 20
    %v355 = vshra.s32 %v77, 20
    %v356 = vshra.s32 %v78, 20
    %v357 = vshra.s32 %v79, 20
    %v358 = vand.u32 %v350, 15
    %v359 = vand.u32 %v351, 15
    %v360 = vand.u32 %v352, 15
    %v361 = vand.u32 %v353, 15
    %v362 = vand.u32 %v354, 15
    %v363 = vand.u32 %v355, 15
    %v364 = vand.u32 %v356, 15
    %v365 = vand.u32 %v357, 15
    %v366 = vcvt.s32.f32 %v358
    %v367 = vcvt.s32.f32 %v359
    %v368 = vcvt.s32.f32 %v360
    %v369 = vcvt.s32.f32 %v361
    %v370 = vcvt.s32.f32 %v362
    %v371 = vcvt.s32.f32 %v363
    %v372 = vcvt.s32.f32 %v364
    %v373 = vcvt.s32.f32 %v365
    %v374 = vmul.f32 %v366, %v91
    %v375 = vmul.f32 %v367, %v92
    %v376 = vmul.f32 %v368, %v93
    %v377 = vmul.f32 %v369, %v94
    %v378 = vmul.f32 %v370, %v91
    %v379 = vmul.f32 %v371, %v92
    %v380 = vmul.f32 %v372, %v93
    %v381 = vmul.f32 %v373, %v94
    %v382 = vadd.f32 %v374, %v110
    %v383 = vadd.f32 %v375, %v111
    %v384 = vadd.f32 %v376, %v112
    %v385 = vadd.f32 %v377, %v113
    %v386 = vadd.f32 %v378, %v110
    %v387 = vadd.f32 %v379, %v111
    %v388 = vadd.f32 %v380, %v112
    %v389 = vadd.f32 %v381, %v113
    %v390 = vpack.c.bf16 %v383, %v382
    %v391 = vpack.c.bf16 %v385, %v384
    %v392 = vpack.c.bf16 %v387, %v386
    %v393 = vpack.c.bf16 %v389, %v388
    %394 = vst [vmem:[#allocation3 + $0xa0] sm:$0xff] %v390
    %395 = vst [vmem:[#allocation3 + $0xa8] sm:$0xff] %v391
    %396 = vst [vmem:[#allocation3 + $0xb0] sm:$0xff] %v392
    %397 = vst [vmem:[#allocation3 + $0xb8] sm:$0xff] %v393
    %v398 = vshra.s32 %v72, 24
    %v399 = vshra.s32 %v73, 24
    %v400 = vshra.s32 %v74, 24
    %v401 = vshra.s32 %v75, 24
    %v402 = vshra.s32 %v76, 24
    %v403 = vshra.s32 %v77, 24
    %v404 = vshra.s32 %v78, 24
    %v405 = vshra.s32 %v79, 24
    %v406 = vand.u32 %v398, 15
    %v407 = vand.u32 %v399, 15
    %v408 = vand.u32 %v400, 15
    %v409 = vand.u32 %v401, 15
    %v410 = vand.u32 %v402, 15
    %v411 = vand.u32 %v403, 15
    %v412 = vand.u32 %v404, 15
    %v413 = vand.u32 %v405, 15
    %v414 = vcvt.s32.f32 %v406
    %v415 = vcvt.s32.f32 %v407
    %v416 = vcvt.s32.f32 %v408
    %v417 = vcvt.s32.f32 %v409
    %v418 = vcvt.s32.f32 %v410
    %v419 = vcvt.s32.f32 %v411
    %v420 = vcvt.s32.f32 %v412
    %v421 = vcvt.s32.f32 %v413
    %v422 = vmul.f32 %v414, %v91
    %v423 = vmul.f32 %v415, %v92
    %v424 = vmul.f32 %v416, %v93
    %v425 = vmul.f32 %v417, %v94
    %v426 = vmul.f32 %v418, %v91
    %v427 = vmul.f32 %v419, %v92
    %v428 = vmul.f32 %v420, %v93
    %v429 = vmul.f32 %v421, %v94
    %v430 = vadd.f32 %v422, %v110
    %v431 = vadd.f32 %v423, %v111
    %v432 = vadd.f32 %v424, %v112
    %v433 = vadd.f32 %v425, %v113
    %v434 = vadd.f32 %v426, %v110
    %v435 = vadd.f32 %v427, %v111
    %v436 = vadd.f32 %v428, %v112
    %v437 = vadd.f32 %v429, %v113
    %v438 = vpack.c.bf16 %v431, %v430
    %v439 = vpack.c.bf16 %v433, %v432
    %v440 = vpack.c.bf16 %v435, %v434
    %v441 = vpack.c.bf16 %v437, %v436
    %442 = vst [vmem:[#allocation3 + $0xc0] sm:$0xff] %v438
    %443 = vst [vmem:[#allocation3 + $0xc8] sm:$0xff] %v439
    %444 = vst [vmem:[#allocation3 + $0xd0] sm:$0xff] %v440
    %445 = vst [vmem:[#allocation3 + $0xd8] sm:$0xff] %v441
    %v446 = vshra.s32 %v72, 28
    %v447 = vshra.s32 %v73, 28
    %v448 = vshra.s32 %v74, 28
    %v449 = vshra.s32 %v75, 28
    %v450 = vshra.s32 %v76, 28
    %v451 = vshra.s32 %v77, 28
    %v452 = vshra.s32 %v78, 28
    %v453 = vshra.s32 %v79, 28
    %v454 = vand.u32 %v446, 15
    %v455 = vand.u32 %v447, 15
    %v456 = vand.u32 %v448, 15
    %v457 = vand.u32 %v449, 15
    %v458 = vand.u32 %v450, 15
    %v459 = vand.u32 %v451, 15
    %v460 = vand.u32 %v452, 15
    %v461 = vand.u32 %v453, 15
    %v462 = vcvt.s32.f32 %v454
    %v463 = vcvt.s32.f32 %v455
    %v464 = vcvt.s32.f32 %v456
    %v465 = vcvt.s32.f32 %v457
    %v466 = vcvt.s32.f32 %v458
    %v467 = vcvt.s32.f32 %v459
    %v468 = vcvt.s32.f32 %v460
    %v469 = vcvt.s32.f32 %v461
    %v470 = vmul.f32 %v462, %v91
    %v471 = vmul.f32 %v463, %v92
    %v472 = vmul.f32 %v464, %v93
    %v473 = vmul.f32 %v465, %v94
    %v474 = vmul.f32 %v466, %v91
    %v475 = vmul.f32 %v467, %v92
    %v476 = vmul.f32 %v468, %v93
    %v477 = vmul.f32 %v469, %v94
    %v478 = vadd.f32 %v470, %v110
    %v479 = vadd.f32 %v471, %v111
    %v480 = vadd.f32 %v472, %v112
    %v481 = vadd.f32 %v473, %v113
    %v482 = vadd.f32 %v474, %v110
    %v483 = vadd.f32 %v475, %v111
    %v484 = vadd.f32 %v476, %v112
    %v485 = vadd.f32 %v477, %v113
    %v486 = vpack.c.bf16 %v479, %v478
    %v487 = vpack.c.bf16 %v481, %v480
    %v488 = vpack.c.bf16 %v483, %v482
    %v489 = vpack.c.bf16 %v485, %v484
    %490 = vst [vmem:[#allocation3 + $0xe0] sm:$0xff] %v486
    %491 = vst [vmem:[#allocation3 + $0xe8] sm:$0xff] %v487
    %492 = vst [vmem:[#allocation3 + $0xf0] sm:$0xff] %v488
    %493 = vst [vmem:[#allocation3 + $0xf8] sm:$0xff] %v489
    %v494 = vld [vmem:[#allocation2] sm:$0xff]
    %v495 = vld [vmem:[#allocation2 + $0x8] sm:$0xff]
    %v496 = vld [vmem:[#allocation2 + $0x10] sm:$0xff]
    %v497 = vld [vmem:[#allocation2 + $0x18] sm:$0xff]
    %v498 = vld [vmem:[#allocation2 + $0x20] sm:$0xff]
    %v499 = vld [vmem:[#allocation2 + $0x28] sm:$0xff]
    %v500 = vld [vmem:[#allocation2 + $0x30] sm:$0xff]
    %v501 = vld [vmem:[#allocation2 + $0x38] sm:$0xff]
    %v502 = vld [vmem:[#allocation4] sm:$0xf]
    %v503 = vld [vmem:[#allocation4 + $0x10] sm:$0xf]
    %v504 = vld [vmem:[#allocation3] sm:$0xff]
    %v505 = vld [vmem:[#allocation3 + $0x8] sm:$0xff]
    %v506 = vld [vmem:[#allocation3 + $0x10] sm:$0xff]
    %v507 = vld [vmem:[#allocation3 + $0x18] sm:$0xff]
    %v508 = vld [vmem:[#allocation3 + $0x20] sm:$0xff]
    %v509 = vld [vmem:[#allocation3 + $0x28] sm:$0xff]
    %v510 = vld [vmem:[#allocation3 + $0x30] sm:$0xff]
    %v511 = vld [vmem:[#allocation3 + $0x38] sm:$0xff]
    %v512 = vld [vmem:[#allocation3 + $0x40] sm:$0xff]
    %v513 = vld [vmem:[#allocation3 + $0x48] sm:$0xff]
    %v514 = vld [vmem:[#allocation3 + $0x50] sm:$0xff]
    %v515 = vld [vmem:[#allocation3 + $0x58] sm:$0xff]
    %v516 = vld [vmem:[#allocation3 + $0x60] sm:$0xff]
    %v517 = vld [vmem:[#allocation3 + $0x68] sm:$0xff]
    %v518 = vld [vmem:[#allocation3 + $0x70] sm:$0xff]
    %v519 = vld [vmem:[#allocation3 + $0x78] sm:$0xff]
    %v520 = vld [vmem:[#allocation3 + $0x80] sm:$0xff]
    %v521 = vld [vmem:[#allocation3 + $0x88] sm:$0xff]
    %v522 = vld [vmem:[#allocation3 + $0x90] sm:$0xff]
    %v523 = vld [vmem:[#allocation3 + $0x98] sm:$0xff]
    %v524 = vld [vmem:[#allocation3 + $0xa0] sm:$0xff]
    %v525 = vld [vmem:[#allocation3 + $0xa8] sm:$0xff]
    %v526 = vld [vmem:[#allocation3 + $0xb0] sm:$0xff]
    %v527 = vld [vmem:[#allocation3 + $0xb8] sm:$0xff]
    %v528 = vld [vmem:[#allocation3 + $0xc0] sm:$0xff]
    %v529 = vld [vmem:[#allocation3 + $0xc8] sm:$0xff]
    %v530 = vld [vmem:[#allocation3 + $0xd0] sm:$0xff]
    %v531 = vld [vmem:[#allocation3 + $0xd8] sm:$0xff]
    %v532 = vld [vmem:[#allocation3 + $0xe0] sm:$0xff]
    %v533 = vld [vmem:[#allocation3 + $0xe8] sm:$0xff]
    %v534 = vld [vmem:[#allocation3 + $0xf0] sm:$0xff]
    %v535 = vld [vmem:[#allocation3 + $0xf8] sm:$0xff]
    %v538 = vunpack.c.l.b16 %v502
    %v539 = vunpack.c.l.b16 %v503
    %v540 = vpack.c.b16 %v539, %v538
    %v574 = vunpack.c.l.b16 %v504
    %v575 = vunpack.c.h.b16 %v504
    %v576 = vunpack.c.l.b16 %v505
    %v577 = vunpack.c.h.b16 %v505
    %v578 = vunpack.c.l.b16 %v506
    %v579 = vunpack.c.h.b16 %v506
    %v580 = vunpack.c.l.b16 %v507
    %v581 = vunpack.c.h.b16 %v507
    %v582 = vunpack.c.l.b16 %v508
    %v583 = vunpack.c.h.b16 %v508
    %v584 = vunpack.c.l.b16 %v509
    %v585 = vunpack.c.h.b16 %v509
    %v586 = vunpack.c.l.b16 %v510
    %v587 = vunpack.c.h.b16 %v510
    %v588 = vunpack.c.l.b16 %v511
    %v589 = vunpack.c.h.b16 %v511
    %v590 = vunpack.c.l.b16 %v512
    %v591 = vunpack.c.h.b16 %v512
    %v592 = vunpack.c.l.b16 %v513
    %v593 = vunpack.c.h.b16 %v513
    %v594 = vunpack.c.l.b16 %v514
    %v595 = vunpack.c.h.b16 %v514
    %v596 = vunpack.c.l.b16 %v515
    %v597 = vunpack.c.h.b16 %v515
    %v598 = vunpack.c.l.b16 %v516
    %v599 = vunpack.c.h.b16 %v516
    %v600 = vunpack.c.l.b16 %v517
    %v601 = vunpack.c.h.b16 %v517
    %v602 = vunpack.c.l.b16 %v518
    %v603 = vunpack.c.h.b16 %v518
    %v604 = vunpack.c.l.b16 %v519
    %v605 = vunpack.c.h.b16 %v519
    %v606 = vunpack.c.l.b16 %v520
    %v607 = vunpack.c.h.b16 %v520
    %v608 = vunpack.c.l.b16 %v521
    %v609 = vunpack.c.h.b16 %v521
    %v610 = vunpack.c.l.b16 %v522
    %v611 = vunpack.c.h.b16 %v522
    %v612 = vunpack.c.l.b16 %v523
    %v613 = vunpack.c.h.b16 %v523
    %v614 = vunpack.c.l.b16 %v524
    %v615 = vunpack.c.h.b16 %v524
    %v616 = vunpack.c.l.b16 %v525
    %v617 = vunpack.c.h.b16 %v525
    %v618 = vunpack.c.l.b16 %v526
    %v619 = vunpack.c.h.b16 %v526
    %v620 = vunpack.c.l.b16 %v527
    %v621 = vunpack.c.h.b16 %v527
    %v622 = vunpack.c.l.b16 %v528
    %v623 = vunpack.c.h.b16 %v528
    %v624 = vunpack.c.l.b16 %v529
    %v625 = vunpack.c.h.b16 %v529
    %v626 = vunpack.c.l.b16 %v530
    %v627 = vunpack.c.h.b16 %v530
    %v628 = vunpack.c.l.b16 %v531
    %v629 = vunpack.c.h.b16 %v531
    %v630 = vunpack.c.l.b16 %v532
    %v631 = vunpack.c.h.b16 %v532
    %v632 = vunpack.c.l.b16 %v533
    %v633 = vunpack.c.h.b16 %v533
    %v634 = vunpack.c.l.b16 %v534
    %v635 = vunpack.c.h.b16 %v534
    %v636 = vunpack.c.l.b16 %v535
    %v637 = vunpack.c.h.b16 %v535
    %v638 = vpack.c.b16 %v578, %v574
    %v639 = vpack.c.b16 %v579, %v575
    %v640 = vpack.c.b16 %v580, %v576
    %v641 = vpack.c.b16 %v581, %v577
    %v642 = vpack.c.b16 %v586, %v582
    %v643 = vpack.c.b16 %v587, %v583
    %v644 = vpack.c.b16 %v588, %v584
    %v645 = vpack.c.b16 %v589, %v585
    %v646 = vpack.c.b16 %v594, %v590
    %v647 = vpack.c.b16 %v595, %v591
    %v648 = vpack.c.b16 %v596, %v592
    %v649 = vpack.c.b16 %v597, %v593
    %v650 = vpack.c.b16 %v602, %v598
    %v651 = vpack.c.b16 %v603, %v599
    %v652 = vpack.c.b16 %v604, %v600
    %v653 = vpack.c.b16 %v605, %v601
    %v654 = vpack.c.b16 %v610, %v606
    %v655 = vpack.c.b16 %v611, %v607
    %v656 = vpack.c.b16 %v612, %v608
    %v657 = vpack.c.b16 %v613, %v609
    %v658 = vpack.c.b16 %v618, %v614
    %v659 = vpack.c.b16 %v619, %v615
    %v660 = vpack.c.b16 %v620, %v616
    %v661 = vpack.c.b16 %v621, %v617
    %v662 = vpack.c.b16 %v626, %v622
    %v663 = vpack.c.b16 %v627, %v623
    %v664 = vpack.c.b16 %v628, %v624
    %v665 = vpack.c.b16 %v629, %v625
    %v666 = vpack.c.b16 %v634, %v630
    %v667 = vpack.c.b16 %v635, %v631
    %v668 = vpack.c.b16 %v636, %v632
    %v669 = vpack.c.b16 %v637, %v633
    %702 = vmatpush.bf16.msra.mxu0 %v666
    %703 = vmatpush.bf16.msra.mxu0 %v662
    %704 = vmatpush.bf16.msra.mxu0 %v658
    %705 = vmatpush.bf16.msra.mxu0 %v654
    %706 = vmatpush.bf16.msra.mxu0 %v650
    %707 = vmatpush.bf16.msra.mxu0 %v646
    %708 = vmatpush.bf16.msra.mxu0 %v642
    %709 = vmatpush.bf16.msra.mxu0 %v638
    %710 = vmatmul.bf16.gmra.mxu0 %v540
    %v711 = vpop.f32.mrf.mxu0
    %v712 = vadd.f32 0.0, %v711
    %v713 = vpop.f32.mrf.mxu0
    %v714 = vadd.f32 0.0, %v713
    %715 = vdwg.mxu0
    %716 = vmatpush.bf16.msra.mxu0 %v667
    %717 = vmatpush.bf16.msra.mxu0 %v663
    %718 = vmatpush.bf16.msra.mxu0 %v659
    %719 = vmatpush.bf16.msra.mxu0 %v655
    %720 = vmatpush.bf16.msra.mxu0 %v651
    %721 = vmatpush.bf16.msra.mxu0 %v647
    %722 = vmatpush.bf16.msra.mxu0 %v643
    %723 = vmatpush.bf16.msra.mxu0 %v639
    %724 = vmatmul.bf16.gmra.mxu0 %v540
    %v725 = vpop.f32.mrf.mxu0
    %v726 = vadd.f32 0.0, %v725
    %v727 = vpop.f32.mrf.mxu0
    %v728 = vadd.f32 0.0, %v727
    %729 = vdwg.mxu0
    %730 = vmatpush.bf16.msra.mxu0 %v668
    %731 = vmatpush.bf16.msra.mxu0 %v664
    %732 = vmatpush.bf16.msra.mxu0 %v660
    %733 = vmatpush.bf16.msra.mxu0 %v656
    %734 = vmatpush.bf16.msra.mxu0 %v652
    %735 = vmatpush.bf16.msra.mxu0 %v648
    %736 = vmatpush.bf16.msra.mxu0 %v644
    %737 = vmatpush.bf16.msra.mxu0 %v640
    %738 = vmatmul.bf16.gmra.mxu0 %v540
    %v739 = vpop.f32.mrf.mxu0
    %v740 = vadd.f32 0.0, %v739
    %v741 = vpop.f32.mrf.mxu0
    %v742 = vadd.f32 0.0, %v741
    %743 = vdwg.mxu0
    %744 = vmatpush.bf16.msra.mxu0 %v669
    %745 = vmatpush.bf16.msra.mxu0 %v665
    %746 = vmatpush.bf16.msra.mxu0 %v661
    %747 = vmatpush.bf16.msra.mxu0 %v657
    %748 = vmatpush.bf16.msra.mxu0 %v653
    %749 = vmatpush.bf16.msra.mxu0 %v649
    %750 = vmatpush.bf16.msra.mxu0 %v645
    %751 = vmatpush.bf16.msra.mxu0 %v641
    %752 = vmatmul.bf16.gmra.mxu0 %v540
    %v753 = vpop.f32.mrf.mxu0
    %v754 = vadd.f32 0.0, %v753
    %v755 = vpop.f32.mrf.mxu0
    %v756 = vadd.f32 0.0, %v755
    %757 = vdwg.mxu0
    %v758 = vadd.f32 %v494, %v712
    %v759 = vadd.f32 %v495, %v726
    %v760 = vadd.f32 %v496, %v740
    %v761 = vadd.f32 %v497, %v754
    %v762 = vadd.f32 %v498, %v714
    %v763 = vadd.f32 %v499, %v728
    %v764 = vadd.f32 %v500, %v742
    %v765 = vadd.f32 %v501, %v756
    %766 = vst [vmem:[#allocation2] sm:$0xff] %v758
    %767 = vst [vmem:[#allocation2 + $0x8] sm:$0xff] %v759
    %768 = vst [vmem:[#allocation2 + $0x10] sm:$0xff] %v760
    %769 = vst [vmem:[#allocation2 + $0x18] sm:$0xff] %v761
    %770 = vst [vmem:[#allocation2 + $0x20] sm:$0xff] %v762
    %771 = vst [vmem:[#allocation2 + $0x28] sm:$0xff] %v763
    %772 = vst [vmem:[#allocation2 + $0x30] sm:$0xff] %v764
    %773 = vst [vmem:[#allocation2 + $0x38] sm:$0xff] %v765
    %v774 = vld [vmem:[#allocation7 + $0x40] sm:$0xff]
    %v775 = vld [vmem:[#allocation7 + $0x48] sm:$0xff]
    %v776 = vld [vmem:[#allocation7 + $0x50] sm:$0xff]
    %v777 = vld [vmem:[#allocation7 + $0x58] sm:$0xff]
    %v778 = vld [vmem:[#allocation7 + $0x60] sm:$0xff]
    %v779 = vld [vmem:[#allocation7 + $0x68] sm:$0xff]
    %v780 = vld [vmem:[#allocation7 + $0x70] sm:$0xff]
    %v781 = vld [vmem:[#allocation7 + $0x78] sm:$0xff]
    %s782 = sadd.s32 %s80, 1
    %s783 = sshra.s32 %s782, 3
    %s784 = sand.u32 %s782, 7
    %s785 = sshra.s32 %s782, 3
    %s786 = sand.u32 %s782, 7
    %s787 = smul.u32 %s783, 4
    %s788 = smul.u32 %s787, 8
    %s789 = sadd.s32 %s788, %s786
    %s790 = scalar_lea.vmem [#allocation9], %s789
    %v791 = vld [vmem:[%s790] ss:$8 sm:$0xf]
    %v793 = vperm.slane %v791, 0
    %v794 = vperm.slane %v791, 1
    %v795 = vperm.slane %v791, 2
    %v796 = vperm.slane %v791, 3
    %s801 = sadd.s32 %s80, 5
    %s802 = sshra.s32 %s801, 3
    %s803 = sand.u32 %s801, 7
    %s804 = sshra.s32 %s801, 3
    %s805 = sand.u32 %s801, 7
    %s806 = smul.u32 %s802, 4
    %s807 = smul.u32 %s806, 8
    %s808 = sadd.s32 %s807, %s805
    %s809 = scalar_lea.vmem [#allocation9], %s808
    %v810 = vld [vmem:[%s809] ss:$8 sm:$0xf]
    %v812 = vperm.slane %v810, 0
    %v813 = vperm.slane %v810, 1
    %v814 = vperm.slane %v810, 2
    %v815 = vperm.slane %v810, 3
    %v820 = vand.u32 %v774, 15
    %v821 = vand.u32 %v775, 15
    %v822 = vand.u32 %v776, 15
    %v823 = vand.u32 %v777, 15
    %v824 = vand.u32 %v778, 15
    %v825 = vand.u32 %v779, 15
    %v826 = vand.u32 %v780, 15
    %v827 = vand.u32 %v781, 15
    %v828 = vcvt.s32.f32 %v820
    %v829 = vcvt.s32.f32 %v821
    %v830 = vcvt.s32.f32 %v822
    %v831 = vcvt.s32.f32 %v823
    %v832 = vcvt.s32.f32 %v824
    %v833 = vcvt.s32.f32 %v825
    %v834 = vcvt.s32.f32 %v826
    %v835 = vcvt.s32.f32 %v827
    %v836 = vmul.f32 %v828, %v793
    %v837 = vmul.f32 %v829, %v794
    %v838 = vmul.f32 %v830, %v795
    %v839 = vmul.f32 %v831, %v796
    %v840 = vmul.f32 %v832, %v793
    %v841 = vmul.f32 %v833, %v794
    %v842 = vmul.f32 %v834, %v795
    %v843 = vmul.f32 %v835, %v796
    %v844 = vadd.f32 %v836, %v812
    %v845 = vadd.f32 %v837, %v813
    %v846 = vadd.f32 %v838, %v814
    %v847 = vadd.f32 %v839, %v815
    %v848 = vadd.f32 %v840, %v812
    %v849 = vadd.f32 %v841, %v813
    %v850 = vadd.f32 %v842, %v814
    %v851 = vadd.f32 %v843, %v815
    %v852 = vpack.c.bf16 %v845, %v844
    %v853 = vpack.c.bf16 %v847, %v846
    %v854 = vpack.c.bf16 %v849, %v848
    %v855 = vpack.c.bf16 %v851, %v850
    %856 = vst [vmem:[#allocation3 + $0x100] sm:$0xff] %v852
    %857 = vst [vmem:[#allocation3 + $0x108] sm:$0xff] %v853
    %858 = vst [vmem:[#allocation3 + $0x110] sm:$0xff] %v854
    %859 = vst [vmem:[#allocation3 + $0x118] sm:$0xff] %v855
    %v860 = vshra.s32 %v774, 4
    %v861 = vshra.s32 %v775, 4
    %v862 = vshra.s32 %v776, 4
    %v863 = vshra.s32 %v777, 4
    %v864 = vshra.s32 %v778, 4
    %v865 = vshra.s32 %v779, 4
    %v866 = vshra.s32 %v780, 4
    %v867 = vshra.s32 %v781, 4
    %v868 = vand.u32 %v860, 15
    %v869 = vand.u32 %v861, 15
    %v870 = vand.u32 %v862, 15
    %v871 = vand.u32 %v863, 15
    %v872 = vand.u32 %v864, 15
    %v873 = vand.u32 %v865, 15
    %v874 = vand.u32 %v866, 15
    %v875 = vand.u32 %v867, 15
    %v876 = vcvt.s32.f32 %v868
    %v877 = vcvt.s32.f32 %v869
    %v878 = vcvt.s32.f32 %v870
    %v879 = vcvt.s32.f32 %v871
    %v880 = vcvt.s32.f32 %v872
    %v881 = vcvt.s32.f32 %v873
    %v882 = vcvt.s32.f32 %v874
    %v883 = vcvt.s32.f32 %v875
    %v884 = vmul.f32 %v876, %v793
    %v885 = vmul.f32 %v877, %v794
    %v886 = vmul.f32 %v878, %v795
    %v887 = vmul.f32 %v879, %v796
    %v888 = vmul.f32 %v880, %v793
    %v889 = vmul.f32 %v881, %v794
    %v890 = vmul.f32 %v882, %v795
    %v891 = vmul.f32 %v883, %v796
    %v892 = vadd.f32 %v884, %v812
    %v893 = vadd.f32 %v885, %v813
    %v894 = vadd.f32 %v886, %v814
    %v895 = vadd.f32 %v887, %v815
    %v896 = vadd.f32 %v888, %v812
    %v897 = vadd.f32 %v889, %v813
    %v898 = vadd.f32 %v890, %v814
    %v899 = vadd.f32 %v891, %v815
    %v900 = vpack.c.bf16 %v893, %v892
    %v901 = vpack.c.bf16 %v895, %v894
    %v902 = vpack.c.bf16 %v897, %v896
    %v903 = vpack.c.bf16 %v899, %v898
    %904 = vst [vmem:[#allocation3 + $0x120] sm:$0xff] %v900
    %905 = vst [vmem:[#allocation3 + $0x128] sm:$0xff] %v901
    %906 = vst [vmem:[#allocation3 + $0x130] sm:$0xff] %v902
    %907 = vst [vmem:[#allocation3 + $0x138] sm:$0xff] %v903
    %v908 = vshra.s32 %v774, 8
    %v909 = vshra.s32 %v775, 8
    %v910 = vshra.s32 %v776, 8
    %v911 = vshra.s32 %v777, 8
    %v912 = vshra.s32 %v778, 8
    %v913 = vshra.s32 %v779, 8
    %v914 = vshra.s32 %v780, 8
    %v915 = vshra.s32 %v781, 8
    %v916 = vand.u32 %v908, 15
    %v917 = vand.u32 %v909, 15
    %v918 = vand.u32 %v910, 15
    %v919 = vand.u32 %v911, 15
    %v920 = vand.u32 %v912, 15
    %v921 = vand.u32 %v913, 15
    %v922 = vand.u32 %v914, 15
    %v923 = vand.u32 %v915, 15
    %v924 = vcvt.s32.f32 %v916
    %v925 = vcvt.s32.f32 %v917
    %v926 = vcvt.s32.f32 %v918
    %v927 = vcvt.s32.f32 %v919
    %v928 = vcvt.s32.f32 %v920
    %v929 = vcvt.s32.f32 %v921
    %v930 = vcvt.s32.f32 %v922
    %v931 = vcvt.s32.f32 %v923
    %v932 = vmul.f32 %v924, %v793
    %v933 = vmul.f32 %v925, %v794
    %v934 = vmul.f32 %v926, %v795
    %v935 = vmul.f32 %v927, %v796
    %v936 = vmul.f32 %v928, %v793
    %v937 = vmul.f32 %v929, %v794
    %v938 = vmul.f32 %v930, %v795
    %v939 = vmul.f32 %v931, %v796
    %v940 = vadd.f32 %v932, %v812
    %v941 = vadd.f32 %v933, %v813
    %v942 = vadd.f32 %v934, %v814
    %v943 = vadd.f32 %v935, %v815
    %v944 = vadd.f32 %v936, %v812
    %v945 = vadd.f32 %v937, %v813
    %v946 = vadd.f32 %v938, %v814
    %v947 = vadd.f32 %v939, %v815
    %v948 = vpack.c.bf16 %v941, %v940
    %v949 = vpack.c.bf16 %v943, %v942
    %v950 = vpack.c.bf16 %v945, %v944
    %v951 = vpack.c.bf16 %v947, %v946
    %952 = vst [vmem:[#allocation3 + $0x140] sm:$0xff] %v948
    %953 = vst [vmem:[#allocation3 + $0x148] sm:$0xff] %v949
    %954 = vst [vmem:[#allocation3 + $0x150] sm:$0xff] %v950
    %955 = vst [vmem:[#allocation3 + $0x158] sm:$0xff] %v951
    %v956 = vshra.s32 %v774, 12
    %v957 = vshra.s32 %v775, 12
    %v958 = vshra.s32 %v776, 12
    %v959 = vshra.s32 %v777, 12
    %v960 = vshra.s32 %v778, 12
    %v961 = vshra.s32 %v779, 12
    %v962 = vshra.s32 %v780, 12
    %v963 = vshra.s32 %v781, 12
    %v964 = vand.u32 %v956, 15
    %v965 = vand.u32 %v957, 15
    %v966 = vand.u32 %v958, 15
    %v967 = vand.u32 %v959, 15
    %v968 = vand.u32 %v960, 15
    %v969 = vand.u32 %v961, 15
    %v970 = vand.u32 %v962, 15
    %v971 = vand.u32 %v963, 15
    %v972 = vcvt.s32.f32 %v964
    %v973 = vcvt.s32.f32 %v965
    %v974 = vcvt.s32.f32 %v966
    %v975 = vcvt.s32.f32 %v967
    %v976 = vcvt.s32.f32 %v968
    %v977 = vcvt.s32.f32 %v969
    %v978 = vcvt.s32.f32 %v970
    %v979 = vcvt.s32.f32 %v971
    %v980 = vmul.f32 %v972, %v793
    %v981 = vmul.f32 %v973, %v794
    %v982 = vmul.f32 %v974, %v795
    %v983 = vmul.f32 %v975, %v796
    %v984 = vmul.f32 %v976, %v793
    %v985 = vmul.f32 %v977, %v794
    %v986 = vmul.f32 %v978, %v795
    %v987 = vmul.f32 %v979, %v796
    %v988 = vadd.f32 %v980, %v812
    %v989 = vadd.f32 %v981, %v813
    %v990 = vadd.f32 %v982, %v814
    %v991 = vadd.f32 %v983, %v815
    %v992 = vadd.f32 %v984, %v812
    %v993 = vadd.f32 %v985, %v813
    %v994 = vadd.f32 %v986, %v814
    %v995 = vadd.f32 %v987, %v815
    %v996 = vpack.c.bf16 %v989, %v988
    %v997 = vpack.c.bf16 %v991, %v990
    %v998 = vpack.c.bf16 %v993, %v992
    %v999 = vpack.c.bf16 %v995, %v994
    %1000 = vst [vmem:[#allocation3 + $0x160] sm:$0xff] %v996
    %1001 = vst [vmem:[#allocation3 + $0x168] sm:$0xff] %v997
    %1002 = vst [vmem:[#allocation3 + $0x170] sm:$0xff] %v998
    %1003 = vst [vmem:[#allocation3 + $0x178] sm:$0xff] %v999
    %v1004 = vshra.s32 %v774, 16
    %v1005 = vshra.s32 %v775, 16
    %v1006 = vshra.s32 %v776, 16
    %v1007 = vshra.s32 %v777, 16
    %v1008 = vshra.s32 %v778, 16
    %v1009 = vshra.s32 %v779, 16
    %v1010 = vshra.s32 %v780, 16
    %v1011 = vshra.s32 %v781, 16
    %v1012 = vand.u32 %v1004, 15
    %v1013 = vand.u32 %v1005, 15
    %v1014 = vand.u32 %v1006, 15
    %v1015 = vand.u32 %v1007, 15
    %v1016 = vand.u32 %v1008, 15
    %v1017 = vand.u32 %v1009, 15
    %v1018 = vand.u32 %v1010, 15
    %v1019 = vand.u32 %v1011, 15
    %v1020 = vcvt.s32.f32 %v1012
    %v1021 = vcvt.s32.f32 %v1013
    %v1022 = vcvt.s32.f32 %v1014
    %v1023 = vcvt.s32.f32 %v1015
    %v1024 = vcvt.s32.f32 %v1016
    %v1025 = vcvt.s32.f32 %v1017
    %v1026 = vcvt.s32.f32 %v1018
    %v1027 = vcvt.s32.f32 %v1019
    %v1028 = vmul.f32 %v1020, %v793
    %v1029 = vmul.f32 %v1021, %v794
    %v1030 = vmul.f32 %v1022, %v795
    %v1031 = vmul.f32 %v1023, %v796
    %v1032 = vmul.f32 %v1024, %v793
    %v1033 = vmul.f32 %v1025, %v794
    %v1034 = vmul.f32 %v1026, %v795
    %v1035 = vmul.f32 %v1027, %v796
    %v1036 = vadd.f32 %v1028, %v812
    %v1037 = vadd.f32 %v1029, %v813
    %v1038 = vadd.f32 %v1030, %v814
    %v1039 = vadd.f32 %v1031, %v815
    %v1040 = vadd.f32 %v1032, %v812
    %v1041 = vadd.f32 %v1033, %v813
    %v1042 = vadd.f32 %v1034, %v814
    %v1043 = vadd.f32 %v1035, %v815
    %v1044 = vpack.c.bf16 %v1037, %v1036
    %v1045 = vpack.c.bf16 %v1039, %v1038
    %v1046 = vpack.c.bf16 %v1041, %v1040
    %v1047 = vpack.c.bf16 %v1043, %v1042
    %1048 = vst [vmem:[#allocation3 + $0x180] sm:$0xff] %v1044
    %1049 = vst [vmem:[#allocation3 + $0x188] sm:$0xff] %v1045
    %1050 = vst [vmem:[#allocation3 + $0x190] sm:$0xff] %v1046
    %1051 = vst [vmem:[#allocation3 + $0x198] sm:$0xff] %v1047
    %v1052 = vshra.s32 %v774, 20
    %v1053 = vshra.s32 %v775, 20
    %v1054 = vshra.s32 %v776, 20
    %v1055 = vshra.s32 %v777, 20
    %v1056 = vshra.s32 %v778, 20
    %v1057 = vshra.s32 %v779, 20
    %v1058 = vshra.s32 %v780, 20
    %v1059 = vshra.s32 %v781, 20
    %v1060 = vand.u32 %v1052, 15
    %v1061 = vand.u32 %v1053, 15
    %v1062 = vand.u32 %v1054, 15
    %v1063 = vand.u32 %v1055, 15
    %v1064 = vand.u32 %v1056, 15
    %v1065 = vand.u32 %v1057, 15
    %v1066 = vand.u32 %v1058, 15
    %v1067 = vand.u32 %v1059, 15
    %v1068 = vcvt.s32.f32 %v1060
    %v1069 = vcvt.s32.f32 %v1061
    %v1070 = vcvt.s32.f32 %v1062
    %v1071 = vcvt.s32.f32 %v1063
    %v1072 = vcvt.s32.f32 %v1064
    %v1073 = vcvt.s32.f32 %v1065
    %v1074 = vcvt.s32.f32 %v1066
    %v1075 = vcvt.s32.f32 %v1067
    %v1076 = vmul.f32 %v1068, %v793
    %v1077 = vmul.f32 %v1069, %v794
    %v1078 = vmul.f32 %v1070, %v795
    %v1079 = vmul.f32 %v1071, %v796
    %v1080 = vmul.f32 %v1072, %v793
    %v1081 = vmul.f32 %v1073, %v794
    %v1082 = vmul.f32 %v1074, %v795
    %v1083 = vmul.f32 %v1075, %v796
    %v1084 = vadd.f32 %v1076, %v812
    %v1085 = vadd.f32 %v1077, %v813
    %v1086 = vadd.f32 %v1078, %v814
    %v1087 = vadd.f32 %v1079, %v815
    %v1088 = vadd.f32 %v1080, %v812
    %v1089 = vadd.f32 %v1081, %v813
    %v1090 = vadd.f32 %v1082, %v814
    %v1091 = vadd.f32 %v1083, %v815
    %v1092 = vpack.c.bf16 %v1085, %v1084
    %v1093 = vpack.c.bf16 %v1087, %v1086
    %v1094 = vpack.c.bf16 %v1089, %v1088
    %v1095 = vpack.c.bf16 %v1091, %v1090
    %1096 = vst [vmem:[#allocation3 + $0x1a0] sm:$0xff] %v1092
    %1097 = vst [vmem:[#allocation3 + $0x1a8] sm:$0xff] %v1093
    %1098 = vst [vmem:[#allocation3 + $0x1b0] sm:$0xff] %v1094
    %1099 = vst [vmem:[#allocation3 + $0x1b8] sm:$0xff] %v1095
    %v1100 = vshra.s32 %v774, 24
    %v1101 = vshra.s32 %v775, 24
    %v1102 = vshra.s32 %v776, 24
    %v1103 = vshra.s32 %v777, 24
    %v1104 = vshra.s32 %v778, 24
    %v1105 = vshra.s32 %v779, 24
    %v1106 = vshra.s32 %v780, 24
    %v1107 = vshra.s32 %v781, 24
    %v1108 = vand.u32 %v1100, 15
    %v1109 = vand.u32 %v1101, 15
    %v1110 = vand.u32 %v1102, 15
    %v1111 = vand.u32 %v1103, 15
    %v1112 = vand.u32 %v1104, 15
    %v1113 = vand.u32 %v1105, 15
    %v1114 = vand.u32 %v1106, 15
    %v1115 = vand.u32 %v1107, 15
    %v1116 = vcvt.s32.f32 %v1108
    %v1117 = vcvt.s32.f32 %v1109
    %v1118 = vcvt.s32.f32 %v1110
    %v1119 = vcvt.s32.f32 %v1111
    %v1120 = vcvt.s32.f32 %v1112
    %v1121 = vcvt.s32.f32 %v1113
    %v1122 = vcvt.s32.f32 %v1114
    %v1123 = vcvt.s32.f32 %v1115
    %v1124 = vmul.f32 %v1116, %v793
    %v1125 = vmul.f32 %v1117, %v794
    %v1126 = vmul.f32 %v1118, %v795
    %v1127 = vmul.f32 %v1119, %v796
    %v1128 = vmul.f32 %v1120, %v793
    %v1129 = vmul.f32 %v1121, %v794
    %v1130 = vmul.f32 %v1122, %v795
    %v1131 = vmul.f32 %v1123, %v796
    %v1132 = vadd.f32 %v1124, %v812
    %v1133 = vadd.f32 %v1125, %v813
    %v1134 = vadd.f32 %v1126, %v814
    %v1135 = vadd.f32 %v1127, %v815
    %v1136 = vadd.f32 %v1128, %v812
    %v1137 = vadd.f32 %v1129, %v813
    %v1138 = vadd.f32 %v1130, %v814
    %v1139 = vadd.f32 %v1131, %v815
    %v1140 = vpack.c.bf16 %v1133, %v1132
    %v1141 = vpack.c.bf16 %v1135, %v1134
    %v1142 = vpack.c.bf16 %v1137, %v1136
    %v1143 = vpack.c.bf16 %v1139, %v1138
    %1144 = vst [vmem:[#allocation3 + $0x1c0] sm:$0xff] %v1140
    %1145 = vst [vmem:[#allocation3 + $0x1c8] sm:$0xff] %v1141
    %1146 = vst [vmem:[#allocation3 + $0x1d0] sm:$0xff] %v1142
    %1147 = vst [vmem:[#allocation3 + $0x1d8] sm:$0xff] %v1143
    %v1148 = vshra.s32 %v774, 28
    %v1149 = vshra.s32 %v775, 28
    %v1150 = vshra.s32 %v776, 28
    %v1151 = vshra.s32 %v777, 28
    %v1152 = vshra.s32 %v778, 28
    %v1153 = vshra.s32 %v779, 28
    %v1154 = vshra.s32 %v780, 28
    %v1155 = vshra.s32 %v781, 28
    %v1156 = vand.u32 %v1148, 15
    %v1157 = vand.u32 %v1149, 15
    %v1158 = vand.u32 %v1150, 15
    %v1159 = vand.u32 %v1151, 15
    %v1160 = vand.u32 %v1152, 15
    %v1161 = vand.u32 %v1153, 15
    %v1162 = vand.u32 %v1154, 15
    %v1163 = vand.u32 %v1155, 15
    %v1164 = vcvt.s32.f32 %v1156
    %v1165 = vcvt.s32.f32 %v1157
    %v1166 = vcvt.s32.f32 %v1158
    %v1167 = vcvt.s32.f32 %v1159
    %v1168 = vcvt.s32.f32 %v1160
    %v1169 = vcvt.s32.f32 %v1161
    %v1170 = vcvt.s32.f32 %v1162
    %v1171 = vcvt.s32.f32 %v1163
    %v1172 = vmul.f32 %v1164, %v793
    %v1173 = vmul.f32 %v1165, %v794
    %v1174 = vmul.f32 %v1166, %v795
    %v1175 = vmul.f32 %v1167, %v796
    %v1176 = vmul.f32 %v1168, %v793
    %v1177 = vmul.f32 %v1169, %v794
    %v1178 = vmul.f32 %v1170, %v795
    %v1179 = vmul.f32 %v1171, %v796
    %v1180 = vadd.f32 %v1172, %v812
    %v1181 = vadd.f32 %v1173, %v813
    %v1182 = vadd.f32 %v1174, %v814
    %v1183 = vadd.f32 %v1175, %v815
    %v1184 = vadd.f32 %v1176, %v812
    %v1185 = vadd.f32 %v1177, %v813
    %v1186 = vadd.f32 %v1178, %v814
    %v1187 = vadd.f32 %v1179, %v815
    %v1188 = vpack.c.bf16 %v1181, %v1180
    %v1189 = vpack.c.bf16 %v1183, %v1182
    %v1190 = vpack.c.bf16 %v1185, %v1184
    %v1191 = vpack.c.bf16 %v1187, %v1186
    %1192 = vst [vmem:[#allocation3 + $0x1e0] sm:$0xff] %v1188
    %1193 = vst [vmem:[#allocation3 + $0x1e8] sm:$0xff] %v1189
    %1194 = vst [vmem:[#allocation3 + $0x1f0] sm:$0xff] %v1190
    %1195 = vst [vmem:[#allocation3 + $0x1f8] sm:$0xff] %v1191
    %v1196 = vld [vmem:[#allocation2] sm:$0xff]
    %v1197 = vld [vmem:[#allocation2 + $0x8] sm:$0xff]
    %v1198 = vld [vmem:[#allocation2 + $0x10] sm:$0xff]
    %v1199 = vld [vmem:[#allocation2 + $0x18] sm:$0xff]
    %v1200 = vld [vmem:[#allocation2 + $0x20] sm:$0xff]
    %v1201 = vld [vmem:[#allocation2 + $0x28] sm:$0xff]
    %v1202 = vld [vmem:[#allocation2 + $0x30] sm:$0xff]
    %v1203 = vld [vmem:[#allocation2 + $0x38] sm:$0xff]
    %v1204 = vld [vmem:[#allocation4 + $0x4] sm:$0xf]
    %v1205 = vld [vmem:[#allocation4 + $0x14] sm:$0xf]
    %v1206 = vld [vmem:[#allocation3 + $0x100] sm:$0xff]
    %v1207 = vld [vmem:[#allocation3 + $0x108] sm:$0xff]
    %v1208 = vld [vmem:[#allocation3 + $0x110] sm:$0xff]
    %v1209 = vld [vmem:[#allocation3 + $0x118] sm:$0xff]
    %v1210 = vld [vmem:[#allocation3 + $0x120] sm:$0xff]
    %v1211 = vld [vmem:[#allocation3 + $0x128] sm:$0xff]
    %v1212 = vld [vmem:[#allocation3 + $0x130] sm:$0xff]
    %v1213 = vld [vmem:[#allocation3 + $0x138] sm:$0xff]
    %v1214 = vld [vmem:[#allocation3 + $0x140] sm:$0xff]
    %v1215 = vld [vmem:[#allocation3 + $0x148] sm:$0xff]
    %v1216 = vld [vmem:[#allocation3 + $0x150] sm:$0xff]
    %v1217 = vld [vmem:[#allocation3 + $0x158] sm:$0xff]
    %v1218 = vld [vmem:[#allocation3 + $0x160] sm:$0xff]
    %v1219 = vld [vmem:[#allocation3 + $0x168] sm:$0xff]
    %v1220 = vld [vmem:[#allocation3 + $0x170] sm:$0xff]
    %v1221 = vld [vmem:[#allocation3 + $0x178] sm:$0xff]
    %v1222 = vld [vmem:[#allocation3 + $0x180] sm:$0xff]
    %v1223 = vld [vmem:[#allocation3 + $0x188] sm:$0xff]
    %v1224 = vld [vmem:[#allocation3 + $0x190] sm:$0xff]
    %v1225 = vld [vmem:[#allocation3 + $0x198] sm:$0xff]
    %v1226 = vld [vmem:[#allocation3 + $0x1a0] sm:$0xff]
    %v1227 = vld [vmem:[#allocation3 + $0x1a8] sm:$0xff]
    %v1228 = vld [vmem:[#allocation3 + $0x1b0] sm:$0xff]
    %v1229 = vld [vmem:[#allocation3 + $0x1b8] sm:$0xff]
    %v1230 = vld [vmem:[#allocation3 + $0x1c0] sm:$0xff]
    %v1231 = vld [vmem:[#allocation3 + $0x1c8] sm:$0xff]
    %v1232 = vld [vmem:[#allocation3 + $0x1d0] sm:$0xff]
    %v1233 = vld [vmem:[#allocation3 + $0x1d8] sm:$0xff]
    %v1234 = vld [vmem:[#allocation3 + $0x1e0] sm:$0xff]
    %v1235 = vld [vmem:[#allocation3 + $0x1e8] sm:$0xff]
    %v1236 = vld [vmem:[#allocation3 + $0x1f0] sm:$0xff]
    %v1237 = vld [vmem:[#allocation3 + $0x1f8] sm:$0xff]
    %v1240 = vunpack.c.l.b16 %v1204
    %v1241 = vunpack.c.l.b16 %v1205
    %v1242 = vpack.c.b16 %v1241, %v1240
    %v1276 = vunpack.c.l.b16 %v1206
    %v1277 = vunpack.c.h.b16 %v1206
    %v1278 = vunpack.c.l.b16 %v1207
    %v1279 = vunpack.c.h.b16 %v1207
    %v1280 = vunpack.c.l.b16 %v1208
    %v1281 = vunpack.c.h.b16 %v1208
    %v1282 = vunpack.c.l.b16 %v1209
    %v1283 = vunpack.c.h.b16 %v1209
    %v1284 = vunpack.c.l.b16 %v1210
    %v1285 = vunpack.c.h.b16 %v1210
    %v1286 = vunpack.c.l.b16 %v1211
    %v1287 = vunpack.c.h.b16 %v1211
    %v1288 = vunpack.c.l.b16 %v1212
    %v1289 = vunpack.c.h.b16 %v1212
    %v1290 = vunpack.c.l.b16 %v1213
    %v1291 = vunpack.c.h.b16 %v1213
    %v1292 = vunpack.c.l.b16 %v1214
    %v1293 = vunpack.c.h.b16 %v1214
    %v1294 = vunpack.c.l.b16 %v1215
    %v1295 = vunpack.c.h.b16 %v1215
    %v1296 = vunpack.c.l.b16 %v1216
    %v1297 = vunpack.c.h.b16 %v1216
    %v1298 = vunpack.c.l.b16 %v1217
    %v1299 = vunpack.c.h.b16 %v1217
    %v1300 = vunpack.c.l.b16 %v1218
    %v1301 = vunpack.c.h.b16 %v1218
    %v1302 = vunpack.c.l.b16 %v1219
    %v1303 = vunpack.c.h.b16 %v1219
    %v1304 = vunpack.c.l.b16 %v1220
    %v1305 = vunpack.c.h.b16 %v1220
    %v1306 = vunpack.c.l.b16 %v1221
    %v1307 = vunpack.c.h.b16 %v1221
    %v1308 = vunpack.c.l.b16 %v1222
    %v1309 = vunpack.c.h.b16 %v1222
    %v1310 = vunpack.c.l.b16 %v1223
    %v1311 = vunpack.c.h.b16 %v1223
    %v1312 = vunpack.c.l.b16 %v1224
    %v1313 = vunpack.c.h.b16 %v1224
    %v1314 = vunpack.c.l.b16 %v1225
    %v1315 = vunpack.c.h.b16 %v1225
    %v1316 = vunpack.c.l.b16 %v1226
    %v1317 = vunpack.c.h.b16 %v1226
    %v1318 = vunpack.c.l.b16 %v1227
    %v1319 = vunpack.c.h.b16 %v1227
    %v1320 = vunpack.c.l.b16 %v1228
    %v1321 = vunpack.c.h.b16 %v1228
    %v1322 = vunpack.c.l.b16 %v1229
    %v1323 = vunpack.c.h.b16 %v1229
    %v1324 = vunpack.c.l.b16 %v1230
    %v1325 = vunpack.c.h.b16 %v1230
    %v1326 = vunpack.c.l.b16 %v1231
    %v1327 = vunpack.c.h.b16 %v1231
    %v1328 = vunpack.c.l.b16 %v1232
    %v1329 = vunpack.c.h.b16 %v1232
    %v1330 = vunpack.c.l.b16 %v1233
    %v1331 = vunpack.c.h.b16 %v1233
    %v1332 = vunpack.c.l.b16 %v1234
    %v1333 = vunpack.c.h.b16 %v1234
    %v1334 = vunpack.c.l.b16 %v1235
    %v1335 = vunpack.c.h.b16 %v1235
    %v1336 = vunpack.c.l.b16 %v1236
    %v1337 = vunpack.c.h.b16 %v1236
    %v1338 = vunpack.c.l.b16 %v1237
    %v1339 = vunpack.c.h.b16 %v1237
    %v1340 = vpack.c.b16 %v1280, %v1276
    %v1341 = vpack.c.b16 %v1281, %v1277
    %v1342 = vpack.c.b16 %v1282, %v1278
    %v1343 = vpack.c.b16 %v1283, %v1279
    %v1344 = vpack.c.b16 %v1288, %v1284
    %v1345 = vpack.c.b16 %v1289, %v1285
    %v1346 = vpack.c.b16 %v1290, %v1286
    %v1347 = vpack.c.b16 %v1291, %v1287
    %v1348 = vpack.c.b16 %v1296, %v1292
    %v1349 = vpack.c.b16 %v1297, %v1293
    %v1350 = vpack.c.b16 %v1298, %v1294
    %v1351 = vpack.c.b16 %v1299, %v1295
    %v1352 = vpack.c.b16 %v1304, %v1300
    %v1353 = vpack.c.b16 %v1305, %v1301
    %v1354 = vpack.c.b16 %v1306, %v1302
    %v1355 = vpack.c.b16 %v1307, %v1303
    %v1356 = vpack.c.b16 %v1312, %v1308
    %v1357 = vpack.c.b16 %v1313, %v1309
    %v1358 = vpack.c.b16 %v1314, %v1310
    %v1359 = vpack.c.b16 %v1315, %v1311
    %v1360 = vpack.c.b16 %v1320, %v1316
    %v1361 = vpack.c.b16 %v1321, %v1317
    %v1362 = vpack.c.b16 %v1322, %v1318
    %v1363 = vpack.c.b16 %v1323, %v1319
    %v1364 = vpack.c.b16 %v1328, %v1324
    %v1365 = vpack.c.b16 %v1329, %v1325
    %v1366 = vpack.c.b16 %v1330, %v1326
    %v1367 = vpack.c.b16 %v1331, %v1327
    %v1368 = vpack.c.b16 %v1336, %v1332
    %v1369 = vpack.c.b16 %v1337, %v1333
    %v1370 = vpack.c.b16 %v1338, %v1334
    %v1371 = vpack.c.b16 %v1339, %v1335
    %1404 = vmatpush.bf16.msra.mxu0 %v1368
    %1405 = vmatpush.bf16.msra.mxu0 %v1364
    %1406 = vmatpush.bf16.msra.mxu0 %v1360
    %1407 = vmatpush.bf16.msra.mxu0 %v1356
    %1408 = vmatpush.bf16.msra.mxu0 %v1352
    %1409 = vmatpush.bf16.msra.mxu0 %v1348
    %1410 = vmatpush.bf16.msra.mxu0 %v1344
    %1411 = vmatpush.bf16.msra.mxu0 %v1340
    %1412 = vmatmul.bf16.gmra.mxu0 %v1242
    %v1413 = vpop.f32.mrf.mxu0
    %v1414 = vadd.f32 0.0, %v1413
    %v1415 = vpop.f32.mrf.mxu0
    %v1416 = vadd.f32 0.0, %v1415
    %1417 = vdwg.mxu0
    %1418 = vmatpush.bf16.msra.mxu0 %v1369
    %1419 = vmatpush.bf16.msra.mxu0 %v1365
    %1420 = vmatpush.bf16.msra.mxu0 %v1361
    %1421 = vmatpush.bf16.msra.mxu0 %v1357
    %1422 = vmatpush.bf16.msra.mxu0 %v1353
    %1423 = vmatpush.bf16.msra.mxu0 %v1349
    %1424 = vmatpush.bf16.msra.mxu0 %v1345
    %1425 = vmatpush.bf16.msra.mxu0 %v1341
    %1426 = vmatmul.bf16.gmra.mxu0 %v1242
    %v1427 = vpop.f32.mrf.mxu0
    %v1428 = vadd.f32 0.0, %v1427
    %v1429 = vpop.f32.mrf.mxu0
    %v1430 = vadd.f32 0.0, %v1429
    %1431 = vdwg.mxu0
    %1432 = vmatpush.bf16.msra.mxu0 %v1370
    %1433 = vmatpush.bf16.msra.mxu0 %v1366
    %1434 = vmatpush.bf16.msra.mxu0 %v1362
    %1435 = vmatpush.bf16.msra.mxu0 %v1358
    %1436 = vmatpush.bf16.msra.mxu0 %v1354
    %1437 = vmatpush.bf16.msra.mxu0 %v1350
    %1438 = vmatpush.bf16.msra.mxu0 %v1346
    %1439 = vmatpush.bf16.msra.mxu0 %v1342
    %1440 = vmatmul.bf16.gmra.mxu0 %v1242
    %v1441 = vpop.f32.mrf.mxu0
    %v1442 = vadd.f32 0.0, %v1441
    %v1443 = vpop.f32.mrf.mxu0
    %v1444 = vadd.f32 0.0, %v1443
    %1445 = vdwg.mxu0
    %1446 = vmatpush.bf16.msra.mxu0 %v1371
    %1447 = vmatpush.bf16.msra.mxu0 %v1367
    %1448 = vmatpush.bf16.msra.mxu0 %v1363
    %1449 = vmatpush.bf16.msra.mxu0 %v1359
    %1450 = vmatpush.bf16.msra.mxu0 %v1355
    %1451 = vmatpush.bf16.msra.mxu0 %v1351
    %1452 = vmatpush.bf16.msra.mxu0 %v1347
    %1453 = vmatpush.bf16.msra.mxu0 %v1343
    %1454 = vmatmul.bf16.gmra.mxu0 %v1242
    %v1455 = vpop.f32.mrf.mxu0
    %v1456 = vadd.f32 0.0, %v1455
    %v1457 = vpop.f32.mrf.mxu0
    %v1458 = vadd.f32 0.0, %v1457
    %1459 = vdwg.mxu0
    %v1460 = vadd.f32 %v1196, %v1414
    %v1461 = vadd.f32 %v1197, %v1428
    %v1462 = vadd.f32 %v1198, %v1442
    %v1463 = vadd.f32 %v1199, %v1456
    %v1464 = vadd.f32 %v1200, %v1416
    %v1465 = vadd.f32 %v1201, %v1430
    %v1466 = vadd.f32 %v1202, %v1444
    %v1467 = vadd.f32 %v1203, %v1458
    %1468 = vst [vmem:[#allocation2] sm:$0xff] %v1460
    %1469 = vst [vmem:[#allocation2 + $0x8] sm:$0xff] %v1461
    %1470 = vst [vmem:[#allocation2 + $0x10] sm:$0xff] %v1462
    %1471 = vst [vmem:[#allocation2 + $0x18] sm:$0xff] %v1463
    %1472 = vst [vmem:[#allocation2 + $0x20] sm:$0xff] %v1464
    %1473 = vst [vmem:[#allocation2 + $0x28] sm:$0xff] %v1465
    %1474 = vst [vmem:[#allocation2 + $0x30] sm:$0xff] %v1466
    %1475 = vst [vmem:[#allocation2 + $0x38] sm:$0xff] %v1467
    %v1476 = vld [vmem:[#allocation7 + $0x80] sm:$0xff]
    %v1477 = vld [vmem:[#allocation7 + $0x88] sm:$0xff]
    %v1478 = vld [vmem:[#allocation7 + $0x90] sm:$0xff]
    %v1479 = vld [vmem:[#allocation7 + $0x98] sm:$0xff]
    %v1480 = vld [vmem:[#allocation7 + $0xa0] sm:$0xff]
    %v1481 = vld [vmem:[#allocation7 + $0xa8] sm:$0xff]
    %v1482 = vld [vmem:[#allocation7 + $0xb0] sm:$0xff]
    %v1483 = vld [vmem:[#allocation7 + $0xb8] sm:$0xff]
    %s1484 = sadd.s32 %s80, 2
    %s1485 = sshra.s32 %s1484, 3
    %s1486 = sand.u32 %s1484, 7
    %s1487 = sshra.s32 %s1484, 3
    %s1488 = sand.u32 %s1484, 7
    %s1489 = smul.u32 %s1485, 4
    %s1490 = smul.u32 %s1489, 8
    %s1491 = sadd.s32 %s1490, %s1488
    %s1492 = scalar_lea.vmem [#allocation9], %s1491
    %v1493 = vld [vmem:[%s1492] ss:$8 sm:$0xf]
    %v1495 = vperm.slane %v1493, 0
    %v1496 = vperm.slane %v1493, 1
    %v1497 = vperm.slane %v1493, 2
    %v1498 = vperm.slane %v1493, 3
    %s1503 = sadd.s32 %s80, 6
    %s1504 = sshra.s32 %s1503, 3
    %s1505 = sand.u32 %s1503, 7
    %s1506 = sshra.s32 %s1503, 3
    %s1507 = sand.u32 %s1503, 7
    %s1508 = smul.u32 %s1504, 4
    %s1509 = smul.u32 %s1508, 8
    %s1510 = sadd.s32 %s1509, %s1507
    %s1511 = scalar_lea.vmem [#allocation9], %s1510
    %v1512 = vld [vmem:[%s1511] ss:$8 sm:$0xf]
    %v1514 = vperm.slane %v1512, 0
    %v1515 = vperm.slane %v1512, 1
    %v1516 = vperm.slane %v1512, 2
    %v1517 = vperm.slane %v1512, 3
    %v1522 = vand.u32 %v1476, 15
    %v1523 = vand.u32 %v1477, 15
    %v1524 = vand.u32 %v1478, 15
    %v1525 = vand.u32 %v1479, 15
    %v1526 = vand.u32 %v1480, 15
    %v1527 = vand.u32 %v1481, 15
    %v1528 = vand.u32 %v1482, 15
    %v1529 = vand.u32 %v1483, 15
    %v1530 = vcvt.s32.f32 %v1522
    %v1531 = vcvt.s32.f32 %v1523
    %v1532 = vcvt.s32.f32 %v1524
    %v1533 = vcvt.s32.f32 %v1525
    %v1534 = vcvt.s32.f32 %v1526
    %v1535 = vcvt.s32.f32 %v1527
    %v1536 = vcvt.s32.f32 %v1528
    %v1537 = vcvt.s32.f32 %v1529
    %v1538 = vmul.f32 %v1530, %v1495
    %v1539 = vmul.f32 %v1531, %v1496
    %v1540 = vmul.f32 %v1532, %v1497
    %v1541 = vmul.f32 %v1533, %v1498
    %v1542 = vmul.f32 %v1534, %v1495
    %v1543 = vmul.f32 %v1535, %v1496
    %v1544 = vmul.f32 %v1536, %v1497
    %v1545 = vmul.f32 %v1537, %v1498
    %v1546 = vadd.f32 %v1538, %v1514
    %v1547 = vadd.f32 %v1539, %v1515
    %v1548 = vadd.f32 %v1540, %v1516
    %v1549 = vadd.f32 %v1541, %v1517
    %v1550 = vadd.f32 %v1542, %v1514
    %v1551 = vadd.f32 %v1543, %v1515
    %v1552 = vadd.f32 %v1544, %v1516
    %v1553 = vadd.f32 %v1545, %v1517
    %v1554 = vpack.c.bf16 %v1547, %v1546
    %v1555 = vpack.c.bf16 %v1549, %v1548
    %v1556 = vpack.c.bf16 %v1551, %v1550
    %v1557 = vpack.c.bf16 %v1553, %v1552
    %1558 = vst [vmem:[#allocation3 + $0x200] sm:$0xff] %v1554
    %1559 = vst [vmem:[#allocation3 + $0x208] sm:$0xff] %v1555
    %1560 = vst [vmem:[#allocation3 + $0x210] sm:$0xff] %v1556
    %1561 = vst [vmem:[#allocation3 + $0x218] sm:$0xff] %v1557
    %v1562 = vshra.s32 %v1476, 4
    %v1563 = vshra.s32 %v1477, 4
    %v1564 = vshra.s32 %v1478, 4
    %v1565 = vshra.s32 %v1479, 4
    %v1566 = vshra.s32 %v1480, 4
    %v1567 = vshra.s32 %v1481, 4
    %v1568 = vshra.s32 %v1482, 4
    %v1569 = vshra.s32 %v1483, 4
    %v1570 = vand.u32 %v1562, 15
    %v1571 = vand.u32 %v1563, 15
    %v1572 = vand.u32 %v1564, 15
    %v1573 = vand.u32 %v1565, 15
    %v1574 = vand.u32 %v1566, 15
    %v1575 = vand.u32 %v1567, 15
    %v1576 = vand.u32 %v1568, 15
    %v1577 = vand.u32 %v1569, 15
    %v1578 = vcvt.s32.f32 %v1570
    %v1579 = vcvt.s32.f32 %v1571
    %v1580 = vcvt.s32.f32 %v1572
    %v1581 = vcvt.s32.f32 %v1573
    %v1582 = vcvt.s32.f32 %v1574
    %v1583 = vcvt.s32.f32 %v1575
    %v1584 = vcvt.s32.f32 %v1576
    %v1585 = vcvt.s32.f32 %v1577
    %v1586 = vmul.f32 %v1578, %v1495
    %v1587 = vmul.f32 %v1579, %v1496
    %v1588 = vmul.f32 %v1580, %v1497
    %v1589 = vmul.f32 %v1581, %v1498
    %v1590 = vmul.f32 %v1582, %v1495
    %v1591 = vmul.f32 %v1583, %v1496
    %v1592 = vmul.f32 %v1584, %v1497
    %v1593 = vmul.f32 %v1585, %v1498
    %v1594 = vadd.f32 %v1586, %v1514
    %v1595 = vadd.f32 %v1587, %v1515
    %v1596 = vadd.f32 %v1588, %v1516
    %v1597 = vadd.f32 %v1589, %v1517
    %v1598 = vadd.f32 %v1590, %v1514
    %v1599 = vadd.f32 %v1591, %v1515
    %v1600 = vadd.f32 %v1592, %v1516
    %v1601 = vadd.f32 %v1593, %v1517
    %v1602 = vpack.c.bf16 %v1595, %v1594
    %v1603 = vpack.c.bf16 %v1597, %v1596
    %v1604 = vpack.c.bf16 %v1599, %v1598
    %v1605 = vpack.c.bf16 %v1601, %v1600
    %1606 = vst [vmem:[#allocation3 + $0x220] sm:$0xff] %v1602
    %1607 = vst [vmem:[#allocation3 + $0x228] sm:$0xff] %v1603
    %1608 = vst [vmem:[#allocation3 + $0x230] sm:$0xff] %v1604
    %1609 = vst [vmem:[#allocation3 + $0x238] sm:$0xff] %v1605
    %v1610 = vshra.s32 %v1476, 8
    %v1611 = vshra.s32 %v1477, 8
    %v1612 = vshra.s32 %v1478, 8
    %v1613 = vshra.s32 %v1479, 8
    %v1614 = vshra.s32 %v1480, 8
    %v1615 = vshra.s32 %v1481, 8
    %v1616 = vshra.s32 %v1482, 8
    %v1617 = vshra.s32 %v1483, 8
    %v1618 = vand.u32 %v1610, 15
    %v1619 = vand.u32 %v1611, 15
    %v1620 = vand.u32 %v1612, 15
    %v1621 = vand.u32 %v1613, 15
    %v1622 = vand.u32 %v1614, 15
    %v1623 = vand.u32 %v1615, 15
    %v1624 = vand.u32 %v1616, 15
    %v1625 = vand.u32 %v1617, 15
    %v1626 = vcvt.s32.f32 %v1618
    %v1627 = vcvt.s32.f32 %v1619
    %v1628 = vcvt.s32.f32 %v1620
    %v1629 = vcvt.s32.f32 %v1621
    %v1630 = vcvt.s32.f32 %v1622
    %v1631 = vcvt.s32.f32 %v1623
    %v1632 = vcvt.s32.f32 %v1624
    %v1633 = vcvt.s32.f32 %v1625
    %v1634 = vmul.f32 %v1626, %v1495
    %v1635 = vmul.f32 %v1627, %v1496
    %v1636 = vmul.f32 %v1628, %v1497
    %v1637 = vmul.f32 %v1629, %v1498
    %v1638 = vmul.f32 %v1630, %v1495
    %v1639 = vmul.f32 %v1631, %v1496
    %v1640 = vmul.f32 %v1632, %v1497
    %v1641 = vmul.f32 %v1633, %v1498
    %v1642 = vadd.f32 %v1634, %v1514
    %v1643 = vadd.f32 %v1635, %v1515
    %v1644 = vadd.f32 %v1636, %v1516
    %v1645 = vadd.f32 %v1637, %v1517
    %v1646 = vadd.f32 %v1638, %v1514
    %v1647 = vadd.f32 %v1639, %v1515
    %v1648 = vadd.f32 %v1640, %v1516
    %v1649 = vadd.f32 %v1641, %v1517
    %v1650 = vpack.c.bf16 %v1643, %v1642
    %v1651 = vpack.c.bf16 %v1645, %v1644
    %v1652 = vpack.c.bf16 %v1647, %v1646
    %v1653 = vpack.c.bf16 %v1649, %v1648
    %1654 = vst [vmem:[#allocation3 + $0x240] sm:$0xff] %v1650
    %1655 = vst [vmem:[#allocation3 + $0x248] sm:$0xff] %v1651
    %1656 = vst [vmem:[#allocation3 + $0x250] sm:$0xff] %v1652
    %1657 = vst [vmem:[#allocation3 + $0x258] sm:$0xff] %v1653
    %v1658 = vshra.s32 %v1476, 12
    %v1659 = vshra.s32 %v1477, 12
    %v1660 = vshra.s32 %v1478, 12
    %v1661 = vshra.s32 %v1479, 12
    %v1662 = vshra.s32 %v1480, 12
    %v1663 = vshra.s32 %v1481, 12
    %v1664 = vshra.s32 %v1482, 12
    %v1665 = vshra.s32 %v1483, 12
    %v1666 = vand.u32 %v1658, 15
    %v1667 = vand.u32 %v1659, 15
    %v1668 = vand.u32 %v1660, 15
    %v1669 = vand.u32 %v1661, 15
    %v1670 = vand.u32 %v1662, 15
    %v1671 = vand.u32 %v1663, 15
    %v1672 = vand.u32 %v1664, 15
    %v1673 = vand.u32 %v1665, 15
    %v1674 = vcvt.s32.f32 %v1666
    %v1675 = vcvt.s32.f32 %v1667
    %v1676 = vcvt.s32.f32 %v1668
    %v1677 = vcvt.s32.f32 %v1669
    %v1678 = vcvt.s32.f32 %v1670
    %v1679 = vcvt.s32.f32 %v1671
    %v1680 = vcvt.s32.f32 %v1672
    %v1681 = vcvt.s32.f32 %v1673
    %v1682 = vmul.f32 %v1674, %v1495
    %v1683 = vmul.f32 %v1675, %v1496
    %v1684 = vmul.f32 %v1676, %v1497
    %v1685 = vmul.f32 %v1677, %v1498
    %v1686 = vmul.f32 %v1678, %v1495
    %v1687 = vmul.f32 %v1679, %v1496
    %v1688 = vmul.f32 %v1680, %v1497
    %v1689 = vmul.f32 %v1681, %v1498
    %v1690 = vadd.f32 %v1682, %v1514
    %v1691 = vadd.f32 %v1683, %v1515
    %v1692 = vadd.f32 %v1684, %v1516
    %v1693 = vadd.f32 %v1685, %v1517
    %v1694 = vadd.f32 %v1686, %v1514
    %v1695 = vadd.f32 %v1687, %v1515
    %v1696 = vadd.f32 %v1688, %v1516
    %v1697 = vadd.f32 %v1689, %v1517
    %v1698 = vpack.c.bf16 %v1691, %v1690
    %v1699 = vpack.c.bf16 %v1693, %v1692
    %v1700 = vpack.c.bf16 %v1695, %v1694
    %v1701 = vpack.c.bf16 %v1697, %v1696
    %1702 = vst [vmem:[#allocation3 + $0x260] sm:$0xff] %v1698
    %1703 = vst [vmem:[#allocation3 + $0x268] sm:$0xff] %v1699
    %1704 = vst [vmem:[#allocation3 + $0x270] sm:$0xff] %v1700
    %1705 = vst [vmem:[#allocation3 + $0x278] sm:$0xff] %v1701
    %v1706 = vshra.s32 %v1476, 16
    %v1707 = vshra.s32 %v1477, 16
    %v1708 = vshra.s32 %v1478, 16
    %v1709 = vshra.s32 %v1479, 16
    %v1710 = vshra.s32 %v1480, 16
    %v1711 = vshra.s32 %v1481, 16
    %v1712 = vshra.s32 %v1482, 16
    %v1713 = vshra.s32 %v1483, 16
    %v1714 = vand.u32 %v1706, 15
    %v1715 = vand.u32 %v1707, 15
    %v1716 = vand.u32 %v1708, 15
    %v1717 = vand.u32 %v1709, 15
    %v1718 = vand.u32 %v1710, 15
    %v1719 = vand.u32 %v1711, 15
    %v1720 = vand.u32 %v1712, 15
    %v1721 = vand.u32 %v1713, 15
    %v1722 = vcvt.s32.f32 %v1714
    %v1723 = vcvt.s32.f32 %v1715
    %v1724 = vcvt.s32.f32 %v1716
    %v1725 = vcvt.s32.f32 %v1717
    %v1726 = vcvt.s32.f32 %v1718
    %v1727 = vcvt.s32.f32 %v1719
    %v1728 = vcvt.s32.f32 %v1720
    %v1729 = vcvt.s32.f32 %v1721
    %v1730 = vmul.f32 %v1722, %v1495
    %v1731 = vmul.f32 %v1723, %v1496
    %v1732 = vmul.f32 %v1724, %v1497
    %v1733 = vmul.f32 %v1725, %v1498
    %v1734 = vmul.f32 %v1726, %v1495
    %v1735 = vmul.f32 %v1727, %v1496
    %v1736 = vmul.f32 %v1728, %v1497
    %v1737 = vmul.f32 %v1729, %v1498
    %v1738 = vadd.f32 %v1730, %v1514
    %v1739 = vadd.f32 %v1731, %v1515
    %v1740 = vadd.f32 %v1732, %v1516
    %v1741 = vadd.f32 %v1733, %v1517
    %v1742 = vadd.f32 %v1734, %v1514
    %v1743 = vadd.f32 %v1735, %v1515
    %v1744 = vadd.f32 %v1736, %v1516
    %v1745 = vadd.f32 %v1737, %v1517
    %v1746 = vpack.c.bf16 %v1739, %v1738
    %v1747 = vpack.c.bf16 %v1741, %v1740
    %v1748 = vpack.c.bf16 %v1743, %v1742
    %v1749 = vpack.c.bf16 %v1745, %v1744
    %1750 = vst [vmem:[#allocation3 + $0x280] sm:$0xff] %v1746
    %1751 = vst [vmem:[#allocation3 + $0x288] sm:$0xff] %v1747
    %1752 = vst [vmem:[#allocation3 + $0x290] sm:$0xff] %v1748
    %1753 = vst [vmem:[#allocation3 + $0x298] sm:$0xff] %v1749
    %v1754 = vshra.s32 %v1476, 20
    %v1755 = vshra.s32 %v1477, 20
    %v1756 = vshra.s32 %v1478, 20
    %v1757 = vshra.s32 %v1479, 20
    %v1758 = vshra.s32 %v1480, 20
    %v1759 = vshra.s32 %v1481, 20
    %v1760 = vshra.s32 %v1482, 20
    %v1761 = vshra.s32 %v1483, 20
    %v1762 = vand.u32 %v1754, 15
    %v1763 = vand.u32 %v1755, 15
    %v1764 = vand.u32 %v1756, 15
    %v1765 = vand.u32 %v1757, 15
    %v1766 = vand.u32 %v1758, 15
    %v1767 = vand.u32 %v1759, 15
    %v1768 = vand.u32 %v1760, 15
    %v1769 = vand.u32 %v1761, 15
    %v1770 = vcvt.s32.f32 %v1762
    %v1771 = vcvt.s32.f32 %v1763
    %v1772 = vcvt.s32.f32 %v1764
    %v1773 = vcvt.s32.f32 %v1765
    %v1774 = vcvt.s32.f32 %v1766
    %v1775 = vcvt.s32.f32 %v1767
    %v1776 = vcvt.s32.f32 %v1768
    %v1777 = vcvt.s32.f32 %v1769
    %v1778 = vmul.f32 %v1770, %v1495
    %v1779 = vmul.f32 %v1771, %v1496
    %v1780 = vmul.f32 %v1772, %v1497
    %v1781 = vmul.f32 %v1773, %v1498
    %v1782 = vmul.f32 %v1774, %v1495
    %v1783 = vmul.f32 %v1775, %v1496
    %v1784 = vmul.f32 %v1776, %v1497
    %v1785 = vmul.f32 %v1777, %v1498
    %v1786 = vadd.f32 %v1778, %v1514
    %v1787 = vadd.f32 %v1779, %v1515
    %v1788 = vadd.f32 %v1780, %v1516
    %v1789 = vadd.f32 %v1781, %v1517
    %v1790 = vadd.f32 %v1782, %v1514
    %v1791 = vadd.f32 %v1783, %v1515
    %v1792 = vadd.f32 %v1784, %v1516
    %v1793 = vadd.f32 %v1785, %v1517
    %v1794 = vpack.c.bf16 %v1787, %v1786
    %v1795 = vpack.c.bf16 %v1789, %v1788
    %v1796 = vpack.c.bf16 %v1791, %v1790
    %v1797 = vpack.c.bf16 %v1793, %v1792
    %1798 = vst [vmem:[#allocation3 + $0x2a0] sm:$0xff] %v1794
    %1799 = vst [vmem:[#allocation3 + $0x2a8] sm:$0xff] %v1795
    %1800 = vst [vmem:[#allocation3 + $0x2b0] sm:$0xff] %v1796
    %1801 = vst [vmem:[#allocation3 + $0x2b8] sm:$0xff] %v1797
    %v1802 = vshra.s32 %v1476, 24
    %v1803 = vshra.s32 %v1477, 24
    %v1804 = vshra.s32 %v1478, 24
    %v1805 = vshra.s32 %v1479, 24
    %v1806 = vshra.s32 %v1480, 24
    %v1807 = vshra.s32 %v1481, 24
    %v1808 = vshra.s32 %v1482, 24
    %v1809 = vshra.s32 %v1483, 24
    %v1810 = vand.u32 %v1802, 15
    %v1811 = vand.u32 %v1803, 15
    %v1812 = vand.u32 %v1804, 15
    %v1813 = vand.u32 %v1805, 15
    %v1814 = vand.u32 %v1806, 15
    %v1815 = vand.u32 %v1807, 15
    %v1816 = vand.u32 %v1808, 15
    %v1817 = vand.u32 %v1809, 15
    %v1818 = vcvt.s32.f32 %v1810
    %v1819 = vcvt.s32.f32 %v1811
    %v1820 = vcvt.s32.f32 %v1812
    %v1821 = vcvt.s32.f32 %v1813
    %v1822 = vcvt.s32.f32 %v1814
    %v1823 = vcvt.s32.f32 %v1815
    %v1824 = vcvt.s32.f32 %v1816
    %v1825 = vcvt.s32.f32 %v1817
    %v1826 = vmul.f32 %v1818, %v1495
    %v1827 = vmul.f32 %v1819, %v1496
    %v1828 = vmul.f32 %v1820, %v1497
    %v1829 = vmul.f32 %v1821, %v1498
    %v1830 = vmul.f32 %v1822, %v1495
    %v1831 = vmul.f32 %v1823, %v1496
    %v1832 = vmul.f32 %v1824, %v1497
    %v1833 = vmul.f32 %v1825, %v1498
    %v1834 = vadd.f32 %v1826, %v1514
    %v1835 = vadd.f32 %v1827, %v1515
    %v1836 = vadd.f32 %v1828, %v1516
    %v1837 = vadd.f32 %v1829, %v1517
    %v1838 = vadd.f32 %v1830, %v1514
    %v1839 = vadd.f32 %v1831, %v1515
    %v1840 = vadd.f32 %v1832, %v1516
    %v1841 = vadd.f32 %v1833, %v1517
    %v1842 = vpack.c.bf16 %v1835, %v1834
    %v1843 = vpack.c.bf16 %v1837, %v1836
    %v1844 = vpack.c.bf16 %v1839, %v1838
    %v1845 = vpack.c.bf16 %v1841, %v1840
    %1846 = vst [vmem:[#allocation3 + $0x2c0] sm:$0xff] %v1842
    %1847 = vst [vmem:[#allocation3 + $0x2c8] sm:$0xff] %v1843
    %1848 = vst [vmem:[#allocation3 + $0x2d0] sm:$0xff] %v1844
    %1849 = vst [vmem:[#allocation3 + $0x2d8] sm:$0xff] %v1845
    %v1850 = vshra.s32 %v1476, 28
    %v1851 = vshra.s32 %v1477, 28
    %v1852 = vshra.s32 %v1478, 28
    %v1853 = vshra.s32 %v1479, 28
    %v1854 = vshra.s32 %v1480, 28
    %v1855 = vshra.s32 %v1481, 28
    %v1856 = vshra.s32 %v1482, 28
    %v1857 = vshra.s32 %v1483, 28
    %v1858 = vand.u32 %v1850, 15
    %v1859 = vand.u32 %v1851, 15
    %v1860 = vand.u32 %v1852, 15
    %v1861 = vand.u32 %v1853, 15
    %v1862 = vand.u32 %v1854, 15
    %v1863 = vand.u32 %v1855, 15
    %v1864 = vand.u32 %v1856, 15
    %v1865 = vand.u32 %v1857, 15
    %v1866 = vcvt.s32.f32 %v1858
    %v1867 = vcvt.s32.f32 %v1859
    %v1868 = vcvt.s32.f32 %v1860
    %v1869 = vcvt.s32.f32 %v1861
    %v1870 = vcvt.s32.f32 %v1862
    %v1871 = vcvt.s32.f32 %v1863
    %v1872 = vcvt.s32.f32 %v1864
    %v1873 = vcvt.s32.f32 %v1865
    %v1874 = vmul.f32 %v1866, %v1495
    %v1875 = vmul.f32 %v1867, %v1496
    %v1876 = vmul.f32 %v1868, %v1497
    %v1877 = vmul.f32 %v1869, %v1498
    %v1878 = vmul.f32 %v1870, %v1495
    %v1879 = vmul.f32 %v1871, %v1496
    %v1880 = vmul.f32 %v1872, %v1497
    %v1881 = vmul.f32 %v1873, %v1498
    %v1882 = vadd.f32 %v1874, %v1514
    %v1883 = vadd.f32 %v1875, %v1515
    %v1884 = vadd.f32 %v1876, %v1516
    %v1885 = vadd.f32 %v1877, %v1517
    %v1886 = vadd.f32 %v1878, %v1514
    %v1887 = vadd.f32 %v1879, %v1515
    %v1888 = vadd.f32 %v1880, %v1516
    %v1889 = vadd.f32 %v1881, %v1517
    %v1890 = vpack.c.bf16 %v1883, %v1882
    %v1891 = vpack.c.bf16 %v1885, %v1884
    %v1892 = vpack.c.bf16 %v1887, %v1886
    %v1893 = vpack.c.bf16 %v1889, %v1888
    %1894 = vst [vmem:[#allocation3 + $0x2e0] sm:$0xff] %v1890
    %1895 = vst [vmem:[#allocation3 + $0x2e8] sm:$0xff] %v1891
    %1896 = vst [vmem:[#allocation3 + $0x2f0] sm:$0xff] %v1892
    %1897 = vst [vmem:[#allocation3 + $0x2f8] sm:$0xff] %v1893
    %v1898 = vld [vmem:[#allocation2] sm:$0xff]
    %v1899 = vld [vmem:[#allocation2 + $0x8] sm:$0xff]
    %v1900 = vld [vmem:[#allocation2 + $0x10] sm:$0xff]
    %v1901 = vld [vmem:[#allocation2 + $0x18] sm:$0xff]
    %v1902 = vld [vmem:[#allocation2 + $0x20] sm:$0xff]
    %v1903 = vld [vmem:[#allocation2 + $0x28] sm:$0xff]
    %v1904 = vld [vmem:[#allocation2 + $0x30] sm:$0xff]
    %v1905 = vld [vmem:[#allocation2 + $0x38] sm:$0xff]
    %v1906 = vld [vmem:[#allocation4 + $0x8] sm:$0xf]
    %v1907 = vld [vmem:[#allocation4 + $0x18] sm:$0xf]
    %v1908 = vld [vmem:[#allocation3 + $0x200] sm:$0xff]
    %v1909 = vld [vmem:[#allocation3 + $0x208] sm:$0xff]
    %v1910 = vld [vmem:[#allocation3 + $0x210] sm:$0xff]
    %v1911 = vld [vmem:[#allocation3 + $0x218] sm:$0xff]
    %v1912 = vld [vmem:[#allocation3 + $0x220] sm:$0xff]
    %v1913 = vld [vmem:[#allocation3 + $0x228] sm:$0xff]
    %v1914 = vld [vmem:[#allocation3 + $0x230] sm:$0xff]
    %v1915 = vld [vmem:[#allocation3 + $0x238] sm:$0xff]
    %v1916 = vld [vmem:[#allocation3 + $0x240] sm:$0xff]
    %v1917 = vld [vmem:[#allocation3 + $0x248] sm:$0xff]
    %v1918 = vld [vmem:[#allocation3 + $0x250] sm:$0xff]
    %v1919 = vld [vmem:[#allocation3 + $0x258] sm:$0xff]
    %v1920 = vld [vmem:[#allocation3 + $0x260] sm:$0xff]
    %v1921 = vld [vmem:[#allocation3 + $0x268] sm:$0xff]
    %v1922 = vld [vmem:[#allocation3 + $0x270] sm:$0xff]
    %v1923 = vld [vmem:[#allocation3 + $0x278] sm:$0xff]
    %v1924 = vld [vmem:[#allocation3 + $0x280] sm:$0xff]
    %v1925 = vld [vmem:[#allocation3 + $0x288] sm:$0xff]
    %v1926 = vld [vmem:[#allocation3 + $0x290] sm:$0xff]
    %v1927 = vld [vmem:[#allocation3 + $0x298] sm:$0xff]
    %v1928 = vld [vmem:[#allocation3 + $0x2a0] sm:$0xff]
    %v1929 = vld [vmem:[#allocation3 + $0x2a8] sm:$0xff]
    %v1930 = vld [vmem:[#allocation3 + $0x2b0] sm:$0xff]
    %v1931 = vld [vmem:[#allocation3 + $0x2b8] sm:$0xff]
    %v1932 = vld [vmem:[#allocation3 + $0x2c0] sm:$0xff]
    %v1933 = vld [vmem:[#allocation3 + $0x2c8] sm:$0xff]
    %v1934 = vld [vmem:[#allocation3 + $0x2d0] sm:$0xff]
    %v1935 = vld [vmem:[#allocation3 + $0x2d8] sm:$0xff]
    %v1936 = vld [vmem:[#allocation3 + $0x2e0] sm:$0xff]
    %v1937 = vld [vmem:[#allocation3 + $0x2e8] sm:$0xff]
    %v1938 = vld [vmem:[#allocation3 + $0x2f0] sm:$0xff]
    %v1939 = vld [vmem:[#allocation3 + $0x2f8] sm:$0xff]
    %v1942 = vunpack.c.l.b16 %v1906
    %v1943 = vunpack.c.l.b16 %v1907
    %v1944 = vpack.c.b16 %v1943, %v1942
    %v1978 = vunpack.c.l.b16 %v1908
    %v1979 = vunpack.c.h.b16 %v1908
    %v1980 = vunpack.c.l.b16 %v1909
    %v1981 = vunpack.c.h.b16 %v1909
    %v1982 = vunpack.c.l.b16 %v1910
    %v1983 = vunpack.c.h.b16 %v1910
    %v1984 = vunpack.c.l.b16 %v1911
    %v1985 = vunpack.c.h.b16 %v1911
    %v1986 = vunpack.c.l.b16 %v1912
    %v1987 = vunpack.c.h.b16 %v1912
    %v1988 = vunpack.c.l.b16 %v1913
    %v1989 = vunpack.c.h.b16 %v1913
    %v1990 = vunpack.c.l.b16 %v1914
    %v1991 = vunpack.c.h.b16 %v1914
    %v1992 = vunpack.c.l.b16 %v1915
    %v1993 = vunpack.c.h.b16 %v1915
    %v1994 = vunpack.c.l.b16 %v1916
    %v1995 = vunpack.c.h.b16 %v1916
    %v1996 = vunpack.c.l.b16 %v1917
    %v1997 = vunpack.c.h.b16 %v1917
    %v1998 = vunpack.c.l.b16 %v1918
    %v1999 = vunpack.c.h.b16 %v1918
    %v2000 = vunpack.c.l.b16 %v1919
    %v2001 = vunpack.c.h.b16 %v1919
    %v2002 = vunpack.c.l.b16 %v1920
    %v2003 = vunpack.c.h.b16 %v1920
    %v2004 = vunpack.c.l.b16 %v1921
    %v2005 = vunpack.c.h.b16 %v1921
    %v2006 = vunpack.c.l.b16 %v1922
    %v2007 = vunpack.c.h.b16 %v1922
    %v2008 = vunpack.c.l.b16 %v1923
    %v2009 = vunpack.c.h.b16 %v1923
    %v2010 = vunpack.c.l.b16 %v1924
    %v2011 = vunpack.c.h.b16 %v1924
    %v2012 = vunpack.c.l.b16 %v1925
    %v2013 = vunpack.c.h.b16 %v1925
    %v2014 = vunpack.c.l.b16 %v1926
    %v2015 = vunpack.c.h.b16 %v1926
    %v2016 = vunpack.c.l.b16 %v1927
    %v2017 = vunpack.c.h.b16 %v1927
    %v2018 = vunpack.c.l.b16 %v1928
    %v2019 = vunpack.c.h.b16 %v1928
    %v2020 = vunpack.c.l.b16 %v1929
    %v2021 = vunpack.c.h.b16 %v1929
    %v2022 = vunpack.c.l.b16 %v1930
    %v2023 = vunpack.c.h.b16 %v1930
    %v2024 = vunpack.c.l.b16 %v1931
    %v2025 = vunpack.c.h.b16 %v1931
    %v2026 = vunpack.c.l.b16 %v1932
    %v2027 = vunpack.c.h.b16 %v1932
    %v2028 = vunpack.c.l.b16 %v1933
    %v2029 = vunpack.c.h.b16 %v1933
    %v2030 = vunpack.c.l.b16 %v1934
    %v2031 = vunpack.c.h.b16 %v1934
    %v2032 = vunpack.c.l.b16 %v1935
    %v2033 = vunpack.c.h.b16 %v1935
    %v2034 = vunpack.c.l.b16 %v1936
    %v2035 = vunpack.c.h.b16 %v1936
    %v2036 = vunpack.c.l.b16 %v1937
    %v2037 = vunpack.c.h.b16 %v1937
    %v2038 = vunpack.c.l.b16 %v1938
    %v2039 = vunpack.c.h.b16 %v1938
    %v2040 = vunpack.c.l.b16 %v1939
    %v2041 = vunpack.c.h.b16 %v1939
    %v2042 = vpack.c.b16 %v1982, %v1978
    %v2043 = vpack.c.b16 %v1983, %v1979
    %v2044 = vpack.c.b16 %v1984, %v1980
    %v2045 = vpack.c.b16 %v1985, %v1981
    %v2046 = vpack.c.b16 %v1990, %v1986
    %v2047 = vpack.c.b16 %v1991, %v1987
    %v2048 = vpack.c.b16 %v1992, %v1988
    %v2049 = vpack.c.b16 %v1993, %v1989
    %v2050 = vpack.c.b16 %v1998, %v1994
    %v2051 = vpack.c.b16 %v1999, %v1995
    %v2052 = vpack.c.b16 %v2000, %v1996
    %v2053 = vpack.c.b16 %v2001, %v1997
    %v2054 = vpack.c.b16 %v2006, %v2002
    %v2055 = vpack.c.b16 %v2007, %v2003
    %v2056 = vpack.c.b16 %v2008, %v2004
    %v2057 = vpack.c.b16 %v2009, %v2005
    %v2058 = vpack.c.b16 %v2014, %v2010
    %v2059 = vpack.c.b16 %v2015, %v2011
    %v2060 = vpack.c.b16 %v2016, %v2012
    %v2061 = vpack.c.b16 %v2017, %v2013
    %v2062 = vpack.c.b16 %v2022, %v2018
    %v2063 = vpack.c.b16 %v2023, %v2019
    %v2064 = vpack.c.b16 %v2024, %v2020
    %v2065 = vpack.c.b16 %v2025, %v2021
    %v2066 = vpack.c.b16 %v2030, %v2026
    %v2067 = vpack.c.b16 %v2031, %v2027
    %v2068 = vpack.c.b16 %v2032, %v2028
    %v2069 = vpack.c.b16 %v2033, %v2029
    %v2070 = vpack.c.b16 %v2038, %v2034
    %v2071 = vpack.c.b16 %v2039, %v2035
    %v2072 = vpack.c.b16 %v2040, %v2036
    %v2073 = vpack.c.b16 %v2041, %v2037
    %2106 = vmatpush.bf16.msra.mxu0 %v2070
    %2107 = vmatpush.bf16.msra.mxu0 %v2066
    %2108 = vmatpush.bf16.msra.mxu0 %v2062
    %2109 = vmatpush.bf16.msra.mxu0 %v2058
    %2110 = vmatpush.bf16.msra.mxu0 %v2054
    %2111 = vmatpush.bf16.msra.mxu0 %v2050
    %2112 = vmatpush.bf16.msra.mxu0 %v2046
    %2113 = vmatpush.bf16.msra.mxu0 %v2042
    %2114 = vmatmul.bf16.gmra.mxu0 %v1944
    %v2115 = vpop.f32.mrf.mxu0
    %v2116 = vadd.f32 0.0, %v2115
    %v2117 = vpop.f32.mrf.mxu0
    %v2118 = vadd.f32 0.0, %v2117
    %2119 = vdwg.mxu0
    %2120 = vmatpush.bf16.msra.mxu0 %v2071
    %2121 = vmatpush.bf16.msra.mxu0 %v2067
    %2122 = vmatpush.bf16.msra.mxu0 %v2063
    %2123 = vmatpush.bf16.msra.mxu0 %v2059
    %2124 = vmatpush.bf16.msra.mxu0 %v2055
    %2125 = vmatpush.bf16.msra.mxu0 %v2051
    %2126 = vmatpush.bf16.msra.mxu0 %v2047
    %2127 = vmatpush.bf16.msra.mxu0 %v2043
    %2128 = vmatmul.bf16.gmra.mxu0 %v1944
    %v2129 = vpop.f32.mrf.mxu0
    %v2130 = vadd.f32 0.0, %v2129
    %v2131 = vpop.f32.mrf.mxu0
    %v2132 = vadd.f32 0.0, %v2131
    %2133 = vdwg.mxu0
    %2134 = vmatpush.bf16.msra.mxu0 %v2072
    %2135 = vmatpush.bf16.msra.mxu0 %v2068
    %2136 = vmatpush.bf16.msra.mxu0 %v2064
    %2137 = vmatpush.bf16.msra.mxu0 %v2060
    %2138 = vmatpush.bf16.msra.mxu0 %v2056
    %2139 = vmatpush.bf16.msra.mxu0 %v2052
    %2140 = vmatpush.bf16.msra.mxu0 %v2048
    %2141 = vmatpush.bf16.msra.mxu0 %v2044
    %2142 = vmatmul.bf16.gmra.mxu0 %v1944
    %v2143 = vpop.f32.mrf.mxu0
    %v2144 = vadd.f32 0.0, %v2143
    %v2145 = vpop.f32.mrf.mxu0
    %v2146 = vadd.f32 0.0, %v2145
    %2147 = vdwg.mxu0
    %2148 = vmatpush.bf16.msra.mxu0 %v2073
    %2149 = vmatpush.bf16.msra.mxu0 %v2069
    %2150 = vmatpush.bf16.msra.mxu0 %v2065
    %2151 = vmatpush.bf16.msra.mxu0 %v2061
    %2152 = vmatpush.bf16.msra.mxu0 %v2057
    %2153 = vmatpush.bf16.msra.mxu0 %v2053
    %2154 = vmatpush.bf16.msra.mxu0 %v2049
    %2155 = vmatpush.bf16.msra.mxu0 %v2045
    %2156 = vmatmul.bf16.gmra.mxu0 %v1944
    %v2157 = vpop.f32.mrf.mxu0
    %v2158 = vadd.f32 0.0, %v2157
    %v2159 = vpop.f32.mrf.mxu0
    %v2160 = vadd.f32 0.0, %v2159
    %2161 = vdwg.mxu0
    %v2162 = vadd.f32 %v1898, %v2116
    %v2163 = vadd.f32 %v1899, %v2130
    %v2164 = vadd.f32 %v1900, %v2144
    %v2165 = vadd.f32 %v1901, %v2158
    %v2166 = vadd.f32 %v1902, %v2118
    %v2167 = vadd.f32 %v1903, %v2132
    %v2168 = vadd.f32 %v1904, %v2146
    %v2169 = vadd.f32 %v1905, %v2160
    %2170 = vst [vmem:[#allocation2] sm:$0xff] %v2162
    %2171 = vst [vmem:[#allocation2 + $0x8] sm:$0xff] %v2163
    %2172 = vst [vmem:[#allocation2 + $0x10] sm:$0xff] %v2164
    %2173 = vst [vmem:[#allocation2 + $0x18] sm:$0xff] %v2165
    %2174 = vst [vmem:[#allocation2 + $0x20] sm:$0xff] %v2166
    %2175 = vst [vmem:[#allocation2 + $0x28] sm:$0xff] %v2167
    %2176 = vst [vmem:[#allocation2 + $0x30] sm:$0xff] %v2168
    %2177 = vst [vmem:[#allocation2 + $0x38] sm:$0xff] %v2169
    %v2178 = vld [vmem:[#allocation7 + $0xc0] sm:$0xff]
    %v2179 = vld [vmem:[#allocation7 + $0xc8] sm:$0xff]
    %v2180 = vld [vmem:[#allocation7 + $0xd0] sm:$0xff]
    %v2181 = vld [vmem:[#allocation7 + $0xd8] sm:$0xff]
    %v2182 = vld [vmem:[#allocation7 + $0xe0] sm:$0xff]
    %v2183 = vld [vmem:[#allocation7 + $0xe8] sm:$0xff]
    %v2184 = vld [vmem:[#allocation7 + $0xf0] sm:$0xff]
    %v2185 = vld [vmem:[#allocation7 + $0xf8] sm:$0xff]
    %s2186 = sadd.s32 %s80, 3
    %s2187 = sshra.s32 %s2186, 3
    %s2188 = sand.u32 %s2186, 7
    %s2189 = sshra.s32 %s2186, 3
    %s2190 = sand.u32 %s2186, 7
    %s2191 = smul.u32 %s2187, 4
    %s2192 = smul.u32 %s2191, 8
    %s2193 = sadd.s32 %s2192, %s2190
    %s2194 = scalar_lea.vmem [#allocation9], %s2193
    %v2195 = vld [vmem:[%s2194] ss:$8 sm:$0xf]
    %v2197 = vperm.slane %v2195, 0
    %v2198 = vperm.slane %v2195, 1
    %v2199 = vperm.slane %v2195, 2
    %v2200 = vperm.slane %v2195, 3
    %s2205 = sadd.s32 %s80, 7
    %s2206 = sshra.s32 %s2205, 3
    %s2207 = sand.u32 %s2205, 7
    %s2208 = sshra.s32 %s2205, 3
    %s2209 = sand.u32 %s2205, 7
    %s2210 = smul.u32 %s2206, 4
    %s2211 = smul.u32 %s2210, 8
    %s2212 = sadd.s32 %s2211, %s2209
    %s2213 = scalar_lea.vmem [#allocation9], %s2212
    %v2214 = vld [vmem:[%s2213] ss:$8 sm:$0xf]
    %v2216 = vperm.slane %v2214, 0
    %v2217 = vperm.slane %v2214, 1
    %v2218 = vperm.slane %v2214, 2
    %v2219 = vperm.slane %v2214, 3
    %v2224 = vand.u32 %v2178, 15
    %v2225 = vand.u32 %v2179, 15
    %v2226 = vand.u32 %v2180, 15
    %v2227 = vand.u32 %v2181, 15
    %v2228 = vand.u32 %v2182, 15
    %v2229 = vand.u32 %v2183, 15
    %v2230 = vand.u32 %v2184, 15
    %v2231 = vand.u32 %v2185, 15
    %v2232 = vcvt.s32.f32 %v2224
    %v2233 = vcvt.s32.f32 %v2225
    %v2234 = vcvt.s32.f32 %v2226
    %v2235 = vcvt.s32.f32 %v2227
    %v2236 = vcvt.s32.f32 %v2228
    %v2237 = vcvt.s32.f32 %v2229
    %v2238 = vcvt.s32.f32 %v2230
    %v2239 = vcvt.s32.f32 %v2231
    %v2240 = vmul.f32 %v2232, %v2197
    %v2241 = vmul.f32 %v2233, %v2198
    %v2242 = vmul.f32 %v2234, %v2199
    %v2243 = vmul.f32 %v2235, %v2200
    %v2244 = vmul.f32 %v2236, %v2197
    %v2245 = vmul.f32 %v2237, %v2198
    %v2246 = vmul.f32 %v2238, %v2199
    %v2247 = vmul.f32 %v2239, %v2200
    %v2248 = vadd.f32 %v2240, %v2216
    %v2249 = vadd.f32 %v2241, %v2217
    %v2250 = vadd.f32 %v2242, %v2218
    %v2251 = vadd.f32 %v2243, %v2219
    %v2252 = vadd.f32 %v2244, %v2216
    %v2253 = vadd.f32 %v2245, %v2217
    %v2254 = vadd.f32 %v2246, %v2218
    %v2255 = vadd.f32 %v2247, %v2219
    %v2256 = vpack.c.bf16 %v2249, %v2248
    %v2257 = vpack.c.bf16 %v2251, %v2250
    %v2258 = vpack.c.bf16 %v2253, %v2252
    %v2259 = vpack.c.bf16 %v2255, %v2254
    %2260 = vst [vmem:[#allocation3 + $0x300] sm:$0xff] %v2256
    %2261 = vst [vmem:[#allocation3 + $0x308] sm:$0xff] %v2257
    %2262 = vst [vmem:[#allocation3 + $0x310] sm:$0xff] %v2258
    %2263 = vst [vmem:[#allocation3 + $0x318] sm:$0xff] %v2259
    %v2264 = vshra.s32 %v2178, 4
    %v2265 = vshra.s32 %v2179, 4
    %v2266 = vshra.s32 %v2180, 4
    %v2267 = vshra.s32 %v2181, 4
    %v2268 = vshra.s32 %v2182, 4
    %v2269 = vshra.s32 %v2183, 4
    %v2270 = vshra.s32 %v2184, 4
    %v2271 = vshra.s32 %v2185, 4
    %v2272 = vand.u32 %v2264, 15
    %v2273 = vand.u32 %v2265, 15
    %v2274 = vand.u32 %v2266, 15
    %v2275 = vand.u32 %v2267, 15
    %v2276 = vand.u32 %v2268, 15
    %v2277 = vand.u32 %v2269, 15
    %v2278 = vand.u32 %v2270, 15
    %v2279 = vand.u32 %v2271, 15
    %v2280 = vcvt.s32.f32 %v2272
    %v2281 = vcvt.s32.f32 %v2273
    %v2282 = vcvt.s32.f32 %v2274
    %v2283 = vcvt.s32.f32 %v2275
    %v2284 = vcvt.s32.f32 %v2276
    %v2285 = vcvt.s32.f32 %v2277
    %v2286 = vcvt.s32.f32 %v2278
    %v2287 = vcvt.s32.f32 %v2279
    %v2288 = vmul.f32 %v2280, %v2197
    %v2289 = vmul.f32 %v2281, %v2198
    %v2290 = vmul.f32 %v2282, %v2199
    %v2291 = vmul.f32 %v2283, %v2200
    %v2292 = vmul.f32 %v2284, %v2197
    %v2293 = vmul.f32 %v2285, %v2198
    %v2294 = vmul.f32 %v2286, %v2199
    %v2295 = vmul.f32 %v2287, %v2200
    %v2296 = vadd.f32 %v2288, %v2216
    %v2297 = vadd.f32 %v2289, %v2217
    %v2298 = vadd.f32 %v2290, %v2218
    %v2299 = vadd.f32 %v2291, %v2219
    %v2300 = vadd.f32 %v2292, %v2216
    %v2301 = vadd.f32 %v2293, %v2217
    %v2302 = vadd.f32 %v2294, %v2218
    %v2303 = vadd.f32 %v2295, %v2219
    %v2304 = vpack.c.bf16 %v2297, %v2296
    %v2305 = vpack.c.bf16 %v2299, %v2298
    %v2306 = vpack.c.bf16 %v2301, %v2300
    %v2307 = vpack.c.bf16 %v2303, %v2302
    %2308 = vst [vmem:[#allocation3 + $0x320] sm:$0xff] %v2304
    %2309 = vst [vmem:[#allocation3 + $0x328] sm:$0xff] %v2305
    %2310 = vst [vmem:[#allocation3 + $0x330] sm:$0xff] %v2306
    %2311 = vst [vmem:[#allocation3 + $0x338] sm:$0xff] %v2307
    %v2312 = vshra.s32 %v2178, 8
    %v2313 = vshra.s32 %v2179, 8
    %v2314 = vshra.s32 %v2180, 8
    %v2315 = vshra.s32 %v2181, 8
    %v2316 = vshra.s32 %v2182, 8
    %v2317 = vshra.s32 %v2183, 8
    %v2318 = vshra.s32 %v2184, 8
    %v2319 = vshra.s32 %v2185, 8
    %v2320 = vand.u32 %v2312, 15
    %v2321 = vand.u32 %v2313, 15
    %v2322 = vand.u32 %v2314, 15
    %v2323 = vand.u32 %v2315, 15
    %v2324 = vand.u32 %v2316, 15
    %v2325 = vand.u32 %v2317, 15
    %v2326 = vand.u32 %v2318, 15
    %v2327 = vand.u32 %v2319, 15
    %v2328 = vcvt.s32.f32 %v2320
    %v2329 = vcvt.s32.f32 %v2321
    %v2330 = vcvt.s32.f32 %v2322
    %v2331 = vcvt.s32.f32 %v2323
    %v2332 = vcvt.s32.f32 %v2324
    %v2333 = vcvt.s32.f32 %v2325
    %v2334 = vcvt.s32.f32 %v2326
    %v2335 = vcvt.s32.f32 %v2327
    %v2336 = vmul.f32 %v2328, %v2197
    %v2337 = vmul.f32 %v2329, %v2198
    %v2338 = vmul.f32 %v2330, %v2199
    %v2339 = vmul.f32 %v2331, %v2200
    %v2340 = vmul.f32 %v2332, %v2197
    %v2341 = vmul.f32 %v2333, %v2198
    %v2342 = vmul.f32 %v2334, %v2199
    %v2343 = vmul.f32 %v2335, %v2200
    %v2344 = vadd.f32 %v2336, %v2216
    %v2345 = vadd.f32 %v2337, %v2217
    %v2346 = vadd.f32 %v2338, %v2218
    %v2347 = vadd.f32 %v2339, %v2219
    %v2348 = vadd.f32 %v2340, %v2216
    %v2349 = vadd.f32 %v2341, %v2217
    %v2350 = vadd.f32 %v2342, %v2218
    %v2351 = vadd.f32 %v2343, %v2219
    %v2352 = vpack.c.bf16 %v2345, %v2344
    %v2353 = vpack.c.bf16 %v2347, %v2346
    %v2354 = vpack.c.bf16 %v2349, %v2348
    %v2355 = vpack.c.bf16 %v2351, %v2350
    %2356 = vst [vmem:[#allocation3 + $0x340] sm:$0xff] %v2352
    %2357 = vst [vmem:[#allocation3 + $0x348] sm:$0xff] %v2353
    %2358 = vst [vmem:[#allocation3 + $0x350] sm:$0xff] %v2354
    %2359 = vst [vmem:[#allocation3 + $0x358] sm:$0xff] %v2355
    %v2360 = vshra.s32 %v2178, 12
    %v2361 = vshra.s32 %v2179, 12
    %v2362 = vshra.s32 %v2180, 12
    %v2363 = vshra.s32 %v2181, 12
    %v2364 = vshra.s32 %v2182, 12
    %v2365 = vshra.s32 %v2183, 12
    %v2366 = vshra.s32 %v2184, 12
    %v2367 = vshra.s32 %v2185, 12
    %v2368 = vand.u32 %v2360, 15
    %v2369 = vand.u32 %v2361, 15
    %v2370 = vand.u32 %v2362, 15
    %v2371 = vand.u32 %v2363, 15
    %v2372 = vand.u32 %v2364, 15
    %v2373 = vand.u32 %v2365, 15
    %v2374 = vand.u32 %v2366, 15
    %v2375 = vand.u32 %v2367, 15
    %v2376 = vcvt.s32.f32 %v2368
    %v2377 = vcvt.s32.f32 %v2369
    %v2378 = vcvt.s32.f32 %v2370
    %v2379 = vcvt.s32.f32 %v2371
    %v2380 = vcvt.s32.f32 %v2372
    %v2381 = vcvt.s32.f32 %v2373
    %v2382 = vcvt.s32.f32 %v2374
    %v2383 = vcvt.s32.f32 %v2375
    %v2384 = vmul.f32 %v2376, %v2197
    %v2385 = vmul.f32 %v2377, %v2198
    %v2386 = vmul.f32 %v2378, %v2199
    %v2387 = vmul.f32 %v2379, %v2200
    %v2388 = vmul.f32 %v2380, %v2197
    %v2389 = vmul.f32 %v2381, %v2198
    %v2390 = vmul.f32 %v2382, %v2199
    %v2391 = vmul.f32 %v2383, %v2200
    %v2392 = vadd.f32 %v2384, %v2216
    %v2393 = vadd.f32 %v2385, %v2217
    %v2394 = vadd.f32 %v2386, %v2218
    %v2395 = vadd.f32 %v2387, %v2219
    %v2396 = vadd.f32 %v2388, %v2216
    %v2397 = vadd.f32 %v2389, %v2217
    %v2398 = vadd.f32 %v2390, %v2218
    %v2399 = vadd.f32 %v2391, %v2219
    %v2400 = vpack.c.bf16 %v2393, %v2392
    %v2401 = vpack.c.bf16 %v2395, %v2394
    %v2402 = vpack.c.bf16 %v2397, %v2396
    %v2403 = vpack.c.bf16 %v2399, %v2398
    %2404 = vst [vmem:[#allocation3 + $0x360] sm:$0xff] %v2400
    %2405 = vst [vmem:[#allocation3 + $0x368] sm:$0xff] %v2401
    %2406 = vst [vmem:[#allocation3 + $0x370] sm:$0xff] %v2402
    %2407 = vst [vmem:[#allocation3 + $0x378] sm:$0xff] %v2403
    %v2408 = vshra.s32 %v2178, 16
    %v2409 = vshra.s32 %v2179, 16
    %v2410 = vshra.s32 %v2180, 16
    %v2411 = vshra.s32 %v2181, 16
    %v2412 = vshra.s32 %v2182, 16
    %v2413 = vshra.s32 %v2183, 16
    %v2414 = vshra.s32 %v2184, 16
    %v2415 = vshra.s32 %v2185, 16
    %v2416 = vand.u32 %v2408, 15
    %v2417 = vand.u32 %v2409, 15
    %v2418 = vand.u32 %v2410, 15
    %v2419 = vand.u32 %v2411, 15
    %v2420 = vand.u32 %v2412, 15
    %v2421 = vand.u32 %v2413, 15
    %v2422 = vand.u32 %v2414, 15
    %v2423 = vand.u32 %v2415, 15
    %v2424 = vcvt.s32.f32 %v2416
    %v2425 = vcvt.s32.f32 %v2417
    %v2426 = vcvt.s32.f32 %v2418
    %v2427 = vcvt.s32.f32 %v2419
    %v2428 = vcvt.s32.f32 %v2420
    %v2429 = vcvt.s32.f32 %v2421
    %v2430 = vcvt.s32.f32 %v2422
    %v2431 = vcvt.s32.f32 %v2423
    %v2432 = vmul.f32 %v2424, %v2197
    %v2433 = vmul.f32 %v2425, %v2198
    %v2434 = vmul.f32 %v2426, %v2199
    %v2435 = vmul.f32 %v2427, %v2200
    %v2436 = vmul.f32 %v2428, %v2197
    %v2437 = vmul.f32 %v2429, %v2198
    %v2438 = vmul.f32 %v2430, %v2199
    %v2439 = vmul.f32 %v2431, %v2200
    %v2440 = vadd.f32 %v2432, %v2216
    %v2441 = vadd.f32 %v2433, %v2217
    %v2442 = vadd.f32 %v2434, %v2218
    %v2443 = vadd.f32 %v2435, %v2219
    %v2444 = vadd.f32 %v2436, %v2216
    %v2445 = vadd.f32 %v2437, %v2217
    %v2446 = vadd.f32 %v2438, %v2218
    %v2447 = vadd.f32 %v2439, %v2219
    %v2448 = vpack.c.bf16 %v2441, %v2440
    %v2449 = vpack.c.bf16 %v2443, %v2442
    %v2450 = vpack.c.bf16 %v2445, %v2444
    %v2451 = vpack.c.bf16 %v2447, %v2446
    %2452 = vst [vmem:[#allocation3 + $0x380] sm:$0xff] %v2448
    %2453 = vst [vmem:[#allocation3 + $0x388] sm:$0xff] %v2449
    %2454 = vst [vmem:[#allocation3 + $0x390] sm:$0xff] %v2450
    %2455 = vst [vmem:[#allocation3 + $0x398] sm:$0xff] %v2451
    %v2456 = vshra.s32 %v2178, 20
    %v2457 = vshra.s32 %v2179, 20
    %v2458 = vshra.s32 %v2180, 20
    %v2459 = vshra.s32 %v2181, 20
    %v2460 = vshra.s32 %v2182, 20
    %v2461 = vshra.s32 %v2183, 20
    %v2462 = vshra.s32 %v2184, 20
    %v2463 = vshra.s32 %v2185, 20
    %v2464 = vand.u32 %v2456, 15
    %v2465 = vand.u32 %v2457, 15
    %v2466 = vand.u32 %v2458, 15
    %v2467 = vand.u32 %v2459, 15
    %v2468 = vand.u32 %v2460, 15
    %v2469 = vand.u32 %v2461, 15
    %v2470 = vand.u32 %v2462, 15
    %v2471 = vand.u32 %v2463, 15
    %v2472 = vcvt.s32.f32 %v2464
    %v2473 = vcvt.s32.f32 %v2465
    %v2474 = vcvt.s32.f32 %v2466
    %v2475 = vcvt.s32.f32 %v2467
    %v2476 = vcvt.s32.f32 %v2468
    %v2477 = vcvt.s32.f32 %v2469
    %v2478 = vcvt.s32.f32 %v2470
    %v2479 = vcvt.s32.f32 %v2471
    %v2480 = vmul.f32 %v2472, %v2197
    %v2481 = vmul.f32 %v2473, %v2198
    %v2482 = vmul.f32 %v2474, %v2199
    %v2483 = vmul.f32 %v2475, %v2200
    %v2484 = vmul.f32 %v2476, %v2197
    %v2485 = vmul.f32 %v2477, %v2198
    %v2486 = vmul.f32 %v2478, %v2199
    %v2487 = vmul.f32 %v2479, %v2200
    %v2488 = vadd.f32 %v2480, %v2216
    %v2489 = vadd.f32 %v2481, %v2217
    %v2490 = vadd.f32 %v2482, %v2218
    %v2491 = vadd.f32 %v2483, %v2219
    %v2492 = vadd.f32 %v2484, %v2216
    %v2493 = vadd.f32 %v2485, %v2217
    %v2494 = vadd.f32 %v2486, %v2218
    %v2495 = vadd.f32 %v2487, %v2219
    %v2496 = vpack.c.bf16 %v2489, %v2488
    %v2497 = vpack.c.bf16 %v2491, %v2490
    %v2498 = vpack.c.bf16 %v2493, %v2492
    %v2499 = vpack.c.bf16 %v2495, %v2494
    %2500 = vst [vmem:[#allocation3 + $0x3a0] sm:$0xff] %v2496
    %2501 = vst [vmem:[#allocation3 + $0x3a8] sm:$0xff] %v2497
    %2502 = vst [vmem:[#allocation3 + $0x3b0] sm:$0xff] %v2498
    %2503 = vst [vmem:[#allocation3 + $0x3b8] sm:$0xff] %v2499
    %v2504 = vshra.s32 %v2178, 24
    %v2505 = vshra.s32 %v2179, 24
    %v2506 = vshra.s32 %v2180, 24
    %v2507 = vshra.s32 %v2181, 24
    %v2508 = vshra.s32 %v2182, 24
    %v2509 = vshra.s32 %v2183, 24
    %v2510 = vshra.s32 %v2184, 24
    %v2511 = vshra.s32 %v2185, 24
    %v2512 = vand.u32 %v2504, 15
    %v2513 = vand.u32 %v2505, 15
    %v2514 = vand.u32 %v2506, 15
    %v2515 = vand.u32 %v2507, 15
    %v2516 = vand.u32 %v2508, 15
    %v2517 = vand.u32 %v2509, 15
    %v2518 = vand.u32 %v2510, 15
    %v2519 = vand.u32 %v2511, 15
    %v2520 = vcvt.s32.f32 %v2512
    %v2521 = vcvt.s32.f32 %v2513
    %v2522 = vcvt.s32.f32 %v2514
    %v2523 = vcvt.s32.f32 %v2515
    %v2524 = vcvt.s32.f32 %v2516
    %v2525 = vcvt.s32.f32 %v2517
    %v2526 = vcvt.s32.f32 %v2518
    %v2527 = vcvt.s32.f32 %v2519
    %v2528 = vmul.f32 %v2520, %v2197
    %v2529 = vmul.f32 %v2521, %v2198
    %v2530 = vmul.f32 %v2522, %v2199
    %v2531 = vmul.f32 %v2523, %v2200
    %v2532 = vmul.f32 %v2524, %v2197
    %v2533 = vmul.f32 %v2525, %v2198
    %v2534 = vmul.f32 %v2526, %v2199
    %v2535 = vmul.f32 %v2527, %v2200
    %v2536 = vadd.f32 %v2528, %v2216
    %v2537 = vadd.f32 %v2529, %v2217
    %v2538 = vadd.f32 %v2530, %v2218
    %v2539 = vadd.f32 %v2531, %v2219
    %v2540 = vadd.f32 %v2532, %v2216
    %v2541 = vadd.f32 %v2533, %v2217
    %v2542 = vadd.f32 %v2534, %v2218
    %v2543 = vadd.f32 %v2535, %v2219
    %v2544 = vpack.c.bf16 %v2537, %v2536
    %v2545 = vpack.c.bf16 %v2539, %v2538
    %v2546 = vpack.c.bf16 %v2541, %v2540
    %v2547 = vpack.c.bf16 %v2543, %v2542
    %2548 = vst [vmem:[#allocation3 + $0x3c0] sm:$0xff] %v2544
    %2549 = vst [vmem:[#allocation3 + $0x3c8] sm:$0xff] %v2545
    %2550 = vst [vmem:[#allocation3 + $0x3d0] sm:$0xff] %v2546
    %2551 = vst [vmem:[#allocation3 + $0x3d8] sm:$0xff] %v2547
    %v2552 = vshra.s32 %v2178, 28
    %v2553 = vshra.s32 %v2179, 28
    %v2554 = vshra.s32 %v2180, 28
    %v2555 = vshra.s32 %v2181, 28
    %v2556 = vshra.s32 %v2182, 28
    %v2557 = vshra.s32 %v2183, 28
    %v2558 = vshra.s32 %v2184, 28
    %v2559 = vshra.s32 %v2185, 28
    %v2560 = vand.u32 %v2552, 15
    %v2561 = vand.u32 %v2553, 15
    %v2562 = vand.u32 %v2554, 15
    %v2563 = vand.u32 %v2555, 15
    %v2564 = vand.u32 %v2556, 15
    %v2565 = vand.u32 %v2557, 15
    %v2566 = vand.u32 %v2558, 15
    %v2567 = vand.u32 %v2559, 15
    %v2568 = vcvt.s32.f32 %v2560
    %v2569 = vcvt.s32.f32 %v2561
    %v2570 = vcvt.s32.f32 %v2562
    %v2571 = vcvt.s32.f32 %v2563
    %v2572 = vcvt.s32.f32 %v2564
    %v2573 = vcvt.s32.f32 %v2565
    %v2574 = vcvt.s32.f32 %v2566
    %v2575 = vcvt.s32.f32 %v2567
    %v2576 = vmul.f32 %v2568, %v2197
    %v2577 = vmul.f32 %v2569, %v2198
    %v2578 = vmul.f32 %v2570, %v2199
    %v2579 = vmul.f32 %v2571, %v2200
    %v2580 = vmul.f32 %v2572, %v2197
    %v2581 = vmul.f32 %v2573, %v2198
    %v2582 = vmul.f32 %v2574, %v2199
    %v2583 = vmul.f32 %v2575, %v2200
    %v2584 = vadd.f32 %v2576, %v2216
    %v2585 = vadd.f32 %v2577, %v2217
    %v2586 = vadd.f32 %v2578, %v2218
    %v2587 = vadd.f32 %v2579, %v2219
    %v2588 = vadd.f32 %v2580, %v2216
    %v2589 = vadd.f32 %v2581, %v2217
    %v2590 = vadd.f32 %v2582, %v2218
    %v2591 = vadd.f32 %v2583, %v2219
    %v2592 = vpack.c.bf16 %v2585, %v2584
    %v2593 = vpack.c.bf16 %v2587, %v2586
    %v2594 = vpack.c.bf16 %v2589, %v2588
    %v2595 = vpack.c.bf16 %v2591, %v2590
    %2596 = vst [vmem:[#allocation3 + $0x3e0] sm:$0xff] %v2592
    %2597 = vst [vmem:[#allocation3 + $0x3e8] sm:$0xff] %v2593
    %2598 = vst [vmem:[#allocation3 + $0x3f0] sm:$0xff] %v2594
    %2599 = vst [vmem:[#allocation3 + $0x3f8] sm:$0xff] %v2595
    %v2600 = vld [vmem:[#allocation2] sm:$0xff]
    %v2601 = vld [vmem:[#allocation2 + $0x8] sm:$0xff]
    %v2602 = vld [vmem:[#allocation2 + $0x10] sm:$0xff]
    %v2603 = vld [vmem:[#allocation2 + $0x18] sm:$0xff]
    %v2604 = vld [vmem:[#allocation2 + $0x20] sm:$0xff]
    %v2605 = vld [vmem:[#allocation2 + $0x28] sm:$0xff]
    %v2606 = vld [vmem:[#allocation2 + $0x30] sm:$0xff]
    %v2607 = vld [vmem:[#allocation2 + $0x38] sm:$0xff]
    %v2608 = vld [vmem:[#allocation4 + $0xc] sm:$0xf]
    %v2609 = vld [vmem:[#allocation4 + $0x1c] sm:$0xf]
    %v2610 = vld [vmem:[#allocation3 + $0x300] sm:$0xff]
    %v2611 = vld [vmem:[#allocation3 + $0x308] sm:$0xff]
    %v2612 = vld [vmem:[#allocation3 + $0x310] sm:$0xff]
    %v2613 = vld [vmem:[#allocation3 + $0x318] sm:$0xff]
    %v2614 = vld [vmem:[#allocation3 + $0x320] sm:$0xff]
    %v2615 = vld [vmem:[#allocation3 + $0x328] sm:$0xff]
    %v2616 = vld [vmem:[#allocation3 + $0x330] sm:$0xff]
    %v2617 = vld [vmem:[#allocation3 + $0x338] sm:$0xff]
    %v2618 = vld [vmem:[#allocation3 + $0x340] sm:$0xff]
    %v2619 = vld [vmem:[#allocation3 + $0x348] sm:$0xff]
    %v2620 = vld [vmem:[#allocation3 + $0x350] sm:$0xff]
    %v2621 = vld [vmem:[#allocation3 + $0x358] sm:$0xff]
    %v2622 = vld [vmem:[#allocation3 + $0x360] sm:$0xff]
    %v2623 = vld [vmem:[#allocation3 + $0x368] sm:$0xff]
    %v2624 = vld [vmem:[#allocation3 + $0x370] sm:$0xff]
    %v2625 = vld [vmem:[#allocation3 + $0x378] sm:$0xff]
    %v2626 = vld [vmem:[#allocation3 + $0x380] sm:$0xff]
    %v2627 = vld [vmem:[#allocation3 + $0x388] sm:$0xff]
    %v2628 = vld [vmem:[#allocation3 + $0x390] sm:$0xff]
    %v2629 = vld [vmem:[#allocation3 + $0x398] sm:$0xff]
    %v2630 = vld [vmem:[#allocation3 + $0x3a0] sm:$0xff]
    %v2631 = vld [vmem:[#allocation3 + $0x3a8] sm:$0xff]
    %v2632 = vld [vmem:[#allocation3 + $0x3b0] sm:$0xff]
    %v2633 = vld [vmem:[#allocation3 + $0x3b8] sm:$0xff]
    %v2634 = vld [vmem:[#allocation3 + $0x3c0] sm:$0xff]
    %v2635 = vld [vmem:[#allocation3 + $0x3c8] sm:$0xff]
    %v2636 = vld [vmem:[#allocation3 + $0x3d0] sm:$0xff]
    %v2637 = vld [vmem:[#allocation3 + $0x3d8] sm:$0xff]
    %v2638 = vld [vmem:[#allocation3 + $0x3e0] sm:$0xff]
    %v2639 = vld [vmem:[#allocation3 + $0x3e8] sm:$0xff]
    %v2640 = vld [vmem:[#allocation3 + $0x3f0] sm:$0xff]
    %v2641 = vld [vmem:[#allocation3 + $0x3f8] sm:$0xff]
    %v2644 = vunpack.c.l.b16 %v2608
    %v2645 = vunpack.c.l.b16 %v2609
    %v2646 = vpack.c.b16 %v2645, %v2644
    %v2680 = vunpack.c.l.b16 %v2610
    %v2681 = vunpack.c.h.b16 %v2610
    %v2682 = vunpack.c.l.b16 %v2611
    %v2683 = vunpack.c.h.b16 %v2611
    %v2684 = vunpack.c.l.b16 %v2612
    %v2685 = vunpack.c.h.b16 %v2612
    %v2686 = vunpack.c.l.b16 %v2613
    %v2687 = vunpack.c.h.b16 %v2613
    %v2688 = vunpack.c.l.b16 %v2614
    %v2689 = vunpack.c.h.b16 %v2614
    %v2690 = vunpack.c.l.b16 %v2615
    %v2691 = vunpack.c.h.b16 %v2615
    %v2692 = vunpack.c.l.b16 %v2616
    %v2693 = vunpack.c.h.b16 %v2616
    %v2694 = vunpack.c.l.b16 %v2617
    %v2695 = vunpack.c.h.b16 %v2617
    %v2696 = vunpack.c.l.b16 %v2618
    %v2697 = vunpack.c.h.b16 %v2618
    %v2698 = vunpack.c.l.b16 %v2619
    %v2699 = vunpack.c.h.b16 %v2619
    %v2700 = vunpack.c.l.b16 %v2620
    %v2701 = vunpack.c.h.b16 %v2620
    %v2702 = vunpack.c.l.b16 %v2621
    %v2703 = vunpack.c.h.b16 %v2621
    %v2704 = vunpack.c.l.b16 %v2622
    %v2705 = vunpack.c.h.b16 %v2622
    %v2706 = vunpack.c.l.b16 %v2623
    %v2707 = vunpack.c.h.b16 %v2623
    %v2708 = vunpack.c.l.b16 %v2624
    %v2709 = vunpack.c.h.b16 %v2624
    %v2710 = vunpack.c.l.b16 %v2625
    %v2711 = vunpack.c.h.b16 %v2625
    %v2712 = vunpack.c.l.b16 %v2626
    %v2713 = vunpack.c.h.b16 %v2626
    %v2714 = vunpack.c.l.b16 %v2627
    %v2715 = vunpack.c.h.b16 %v2627
    %v2716 = vunpack.c.l.b16 %v2628
    %v2717 = vunpack.c.h.b16 %v2628
    %v2718 = vunpack.c.l.b16 %v2629
    %v2719 = vunpack.c.h.b16 %v2629
    %v2720 = vunpack.c.l.b16 %v2630
    %v2721 = vunpack.c.h.b16 %v2630
    %v2722 = vunpack.c.l.b16 %v2631
    %v2723 = vunpack.c.h.b16 %v2631
    %v2724 = vunpack.c.l.b16 %v2632
    %v2725 = vunpack.c.h.b16 %v2632
    %v2726 = vunpack.c.l.b16 %v2633
    %v2727 = vunpack.c.h.b16 %v2633
    %v2728 = vunpack.c.l.b16 %v2634
    %v2729 = vunpack.c.h.b16 %v2634
    %v2730 = vunpack.c.l.b16 %v2635
    %v2731 = vunpack.c.h.b16 %v2635
    %v2732 = vunpack.c.l.b16 %v2636
    %v2733 = vunpack.c.h.b16 %v2636
    %v2734 = vunpack.c.l.b16 %v2637
    %v2735 = vunpack.c.h.b16 %v2637
    %v2736 = vunpack.c.l.b16 %v2638
    %v2737 = vunpack.c.h.b16 %v2638
    %v2738 = vunpack.c.l.b16 %v2639
    %v2739 = vunpack.c.h.b16 %v2639
    %v2740 = vunpack.c.l.b16 %v2640
    %v2741 = vunpack.c.h.b16 %v2640
    %v2742 = vunpack.c.l.b16 %v2641
    %v2743 = vunpack.c.h.b16 %v2641
    %v2744 = vpack.c.b16 %v2684, %v2680
    %v2745 = vpack.c.b16 %v2685, %v2681
    %v2746 = vpack.c.b16 %v2686, %v2682
    %v2747 = vpack.c.b16 %v2687, %v2683
    %v2748 = vpack.c.b16 %v2692, %v2688
    %v2749 = vpack.c.b16 %v2693, %v2689
    %v2750 = vpack.c.b16 %v2694, %v2690
    %v2751 = vpack.c.b16 %v2695, %v2691
    %v2752 = vpack.c.b16 %v2700, %v2696
    %v2753 = vpack.c.b16 %v2701, %v2697
    %v2754 = vpack.c.b16 %v2702, %v2698
    %v2755 = vpack.c.b16 %v2703, %v2699
    %v2756 = vpack.c.b16 %v2708, %v2704
    %v2757 = vpack.c.b16 %v2709, %v2705
    %v2758 = vpack.c.b16 %v2710, %v2706
    %v2759 = vpack.c.b16 %v2711, %v2707
    %v2760 = vpack.c.b16 %v2716, %v2712
    %v2761 = vpack.c.b16 %v2717, %v2713
    %v2762 = vpack.c.b16 %v2718, %v2714
    %v2763 = vpack.c.b16 %v2719, %v2715
    %v2764 = vpack.c.b16 %v2724, %v2720
    %v2765 = vpack.c.b16 %v2725, %v2721
    %v2766 = vpack.c.b16 %v2726, %v2722
    %v2767 = vpack.c.b16 %v2727, %v2723
    %v2768 = vpack.c.b16 %v2732, %v2728
    %v2769 = vpack.c.b16 %v2733, %v2729
    %v2770 = vpack.c.b16 %v2734, %v2730
    %v2771 = vpack.c.b16 %v2735, %v2731
    %v2772 = vpack.c.b16 %v2740, %v2736
    %v2773 = vpack.c.b16 %v2741, %v2737
    %v2774 = vpack.c.b16 %v2742, %v2738
    %v2775 = vpack.c.b16 %v2743, %v2739
    %2808 = vmatpush.bf16.msra.mxu0 %v2772
    %2809 = vmatpush.bf16.msra.mxu0 %v2768
    %2810 = vmatpush.bf16.msra.mxu0 %v2764
    %2811 = vmatpush.bf16.msra.mxu0 %v2760
    %2812 = vmatpush.bf16.msra.mxu0 %v2756
    %2813 = vmatpush.bf16.msra.mxu0 %v2752
    %2814 = vmatpush.bf16.msra.mxu0 %v2748
    %2815 = vmatpush.bf16.msra.mxu0 %v2744
    %2816 = vmatmul.bf16.gmra.mxu0 %v2646
    %v2817 = vpop.f32.mrf.mxu0
    %v2818 = vadd.f32 0.0, %v2817
    %v2819 = vpop.f32.mrf.mxu0
    %v2820 = vadd.f32 0.0, %v2819
    %2821 = vdwg.mxu0
    %2822 = vmatpush.bf16.msra.mxu0 %v2773
    %2823 = vmatpush.bf16.msra.mxu0 %v2769
    %2824 = vmatpush.bf16.msra.mxu0 %v2765
    %2825 = vmatpush.bf16.msra.mxu0 %v2761
    %2826 = vmatpush.bf16.msra.mxu0 %v2757
    %2827 = vmatpush.bf16.msra.mxu0 %v2753
    %2828 = vmatpush.bf16.msra.mxu0 %v2749
    %2829 = vmatpush.bf16.msra.mxu0 %v2745
    %2830 = vmatmul.bf16.gmra.mxu0 %v2646
    %v2831 = vpop.f32.mrf.mxu0
    %v2832 = vadd.f32 0.0, %v2831
    %v2833 = vpop.f32.mrf.mxu0
    %v2834 = vadd.f32 0.0, %v2833
    %2835 = vdwg.mxu0
    %2836 = vmatpush.bf16.msra.mxu0 %v2774
    %2837 = vmatpush.bf16.msra.mxu0 %v2770
    %2838 = vmatpush.bf16.msra.mxu0 %v2766
    %2839 = vmatpush.bf16.msra.mxu0 %v2762
    %2840 = vmatpush.bf16.msra.mxu0 %v2758
    %2841 = vmatpush.bf16.msra.mxu0 %v2754
    %2842 = vmatpush.bf16.msra.mxu0 %v2750
    %2843 = vmatpush.bf16.msra.mxu0 %v2746
    %2844 = vmatmul.bf16.gmra.mxu0 %v2646
    %v2845 = vpop.f32.mrf.mxu0
    %v2846 = vadd.f32 0.0, %v2845
    %v2847 = vpop.f32.mrf.mxu0
    %v2848 = vadd.f32 0.0, %v2847
    %2849 = vdwg.mxu0
    %2850 = vmatpush.bf16.msra.mxu0 %v2775
    %2851 = vmatpush.bf16.msra.mxu0 %v2771
    %2852 = vmatpush.bf16.msra.mxu0 %v2767
    %2853 = vmatpush.bf16.msra.mxu0 %v2763
    %2854 = vmatpush.bf16.msra.mxu0 %v2759
    %2855 = vmatpush.bf16.msra.mxu0 %v2755
    %2856 = vmatpush.bf16.msra.mxu0 %v2751
    %2857 = vmatpush.bf16.msra.mxu0 %v2747
    %2858 = vmatmul.bf16.gmra.mxu0 %v2646
    %v2859 = vpop.f32.mrf.mxu0
    %v2860 = vadd.f32 0.0, %v2859
    %v2861 = vpop.f32.mrf.mxu0
    %v2862 = vadd.f32 0.0, %v2861
    %2863 = vdwg.mxu0
    %v2864 = vadd.f32 %v2600, %v2818
    %v2865 = vadd.f32 %v2601, %v2832
    %v2866 = vadd.f32 %v2602, %v2846
    %v2867 = vadd.f32 %v2603, %v2860
    %v2868 = vadd.f32 %v2604, %v2820
    %v2869 = vadd.f32 %v2605, %v2834
    %v2870 = vadd.f32 %v2606, %v2848
    %v2871 = vadd.f32 %v2607, %v2862
    %2872 = vst [vmem:[#allocation2] sm:$0xff] %v2864
    %2873 = vst [vmem:[#allocation2 + $0x8] sm:$0xff] %v2865
    %2874 = vst [vmem:[#allocation2 + $0x10] sm:$0xff] %v2866
    %2875 = vst [vmem:[#allocation2 + $0x18] sm:$0xff] %v2867
    %2876 = vst [vmem:[#allocation2 + $0x20] sm:$0xff] %v2868
    %2877 = vst [vmem:[#allocation2 + $0x28] sm:$0xff] %v2869
    %2878 = vst [vmem:[#allocation2 + $0x30] sm:$0xff] %v2870
    %2879 = vst [vmem:[#allocation2 + $0x38] sm:$0xff] %v2871
    // Predicated region
    $region30: #{tpu_custom_call.1} parent=1 // pred_check
      %p2880 = pneg %p60
    $region31: #{tpu_custom_call.1} parent=1 // pred_check_branch
      %2882 = sbr.rel (%p2880) target = $region33
    $region32: #{tpu_custom_call.1} parent=1 // pred_region
      %v2883 = vld [vmem:[#allocation2] sm:$0xff]
      %v2884 = vld [vmem:[#allocation2 + $0x8] sm:$0xff]
      %v2885 = vld [vmem:[#allocation2 + $0x10] sm:$0xff]
      %v2886 = vld [vmem:[#allocation2 + $0x18] sm:$0xff]
      %v2887 = vld [vmem:[#allocation2 + $0x20] sm:$0xff]
      %v2888 = vld [vmem:[#allocation2 + $0x28] sm:$0xff]
      %v2889 = vld [vmem:[#allocation2 + $0x30] sm:$0xff]
      %v2890 = vld [vmem:[#allocation2 + $0x38] sm:$0xff]
      %v2891 = vmul.f32 %v2883, %v2883
      %v2892 = vmul.f32 %v2884, %v2884
      %v2893 = vmul.f32 %v2885, %v2885
      %v2894 = vmul.f32 %v2886, %v2886
      %v2895 = vmul.f32 %v2887, %v2887
      %v2896 = vmul.f32 %v2888, %v2888
      %v2897 = vmul.f32 %v2889, %v2889
      %v2898 = vmul.f32 %v2890, %v2890
      %v2899 = vmul.f32 %v2883, %v2891
      %v2900 = vmul.f32 %v2884, %v2892
      %v2901 = vmul.f32 %v2885, %v2893
      %v2902 = vmul.f32 %v2886, %v2894
      %v2903 = vmul.f32 %v2887, %v2895
      %v2904 = vmul.f32 %v2888, %v2896
      %v2905 = vmul.f32 %v2889, %v2897
      %v2906 = vmul.f32 %v2890, %v2898
      %v2907 = vmul.f32 %v2899, 0.044715
      %v2908 = vmul.f32 %v2900, 0.044715
      %v2909 = vmul.f32 %v2901, 0.044715
      %v2910 = vmul.f32 %v2902, 0.044715
      %v2911 = vmul.f32 %v2903, 0.044715
      %v2912 = vmul.f32 %v2904, 0.044715
      %v2913 = vmul.f32 %v2905, 0.044715
      %v2914 = vmul.f32 %v2906, 0.044715
      %v2915 = vadd.f32 %v2883, %v2907
      %v2916 = vadd.f32 %v2884, %v2908
      %v2917 = vadd.f32 %v2885, %v2909
      %v2918 = vadd.f32 %v2886, %v2910
      %v2919 = vadd.f32 %v2887, %v2911
      %v2920 = vadd.f32 %v2888, %v2912
      %v2921 = vadd.f32 %v2889, %v2913
      %v2922 = vadd.f32 %v2890, %v2914
      %v2923 = vmul.f32 %v2915, 0.7978846
      %v2924 = vmul.f32 %v2916, 0.7978846
      %v2925 = vmul.f32 %v2917, 0.7978846
      %v2926 = vmul.f32 %v2918, 0.7978846
      %v2927 = vmul.f32 %v2919, 0.7978846
      %v2928 = vmul.f32 %v2920, 0.7978846
      %v2929 = vmul.f32 %v2921, 0.7978846
      %v2930 = vmul.f32 %v2922, 0.7978846
      %v2931 = vtanh.pop %v2923
      %v2932 = vtanh.pop %v2924
      %v2933 = vtanh.pop %v2925
      %v2934 = vtanh.pop %v2926
      %v2935 = vtanh.pop %v2927
      %v2936 = vtanh.pop %v2928
      %v2937 = vtanh.pop %v2929
      %v2938 = vtanh.pop %v2930
      %v2939 = vadd.f32 %v2931, 1.0
      %v2940 = vadd.f32 %v2932, 1.0
      %v2941 = vadd.f32 %v2933, 1.0
      %v2942 = vadd.f32 %v2934, 1.0
      %v2943 = vadd.f32 %v2935, 1.0
      %v2944 = vadd.f32 %v2936, 1.0
      %v2945 = vadd.f32 %v2937, 1.0
      %v2946 = vadd.f32 %v2938, 1.0
      %v2947 = vmul.f32 %v2939, 0.5
      %v2948 = vmul.f32 %v2940, 0.5
      %v2949 = vmul.f32 %v2941, 0.5
      %v2950 = vmul.f32 %v2942, 0.5
      %v2951 = vmul.f32 %v2943, 0.5
      %v2952 = vmul.f32 %v2944, 0.5
      %v2953 = vmul.f32 %v2945, 0.5
      %v2954 = vmul.f32 %v2946, 0.5
      %v2955 = vmul.f32 %v2883, %v2947
      %v2956 = vmul.f32 %v2884, %v2948
      %v2957 = vmul.f32 %v2885, %v2949
      %v2958 = vmul.f32 %v2886, %v2950
      %v2959 = vmul.f32 %v2887, %v2951
      %v2960 = vmul.f32 %v2888, %v2952
      %v2961 = vmul.f32 %v2889, %v2953
      %v2962 = vmul.f32 %v2890, %v2954
      %v2963 = vpack.c.bf16 %v2956, %v2955
      %v2964 = vpack.c.bf16 %v2958, %v2957
      %v2965 = vpack.c.bf16 %v2960, %v2959
      %v2966 = vpack.c.bf16 %v2962, %v2961
      %2967 = vst [vmem:[#allocation10] sm:$0xff] %v2963
      %2968 = vst [vmem:[#allocation10 + $0x8] sm:$0xff] %v2964
      %2969 = vst [vmem:[#allocation10 + $0x10] sm:$0xff] %v2965
      %2970 = vst [vmem:[#allocation10 + $0x18] sm:$0xff] %v2966
    $region33: #{tpu_custom_call.1} parent=1 // pred_fallthru
      _
    // Predicated region
    $region34: #{tpu_custom_call.1} parent=1 // pred_check
      _
    $region35: #{tpu_custom_call.1} parent=1 // pred_check_branch
      %2972 = sbr.rel (0) target = $region37
    $region36: #{tpu_custom_call.1} parent=1 // pred_region
      %2974 = vsyncadd [#allocation6], 0
      %s2975 = sshll.u32 [#allocation10], 4
      %s2976 = int_to_ptr.vmem [resolvable:$true] %s2975
      %s2977 = sshll.u32 %s3, 4
      %s2978 = int_to_ptr.hbm [resolvable:$true] %s2977
      %2983 = dma.vmem_to_hbm [thread:$0]  %s2976, 512, %s2978, [#allocation6], 256, 256, 16
    $region37: #{tpu_custom_call.1} parent=1 // pred_fallthru
      _
    // Predicated region
    $region38: #{tpu_custom_call.1} parent=1 // pred_check
      _
    $region39: #{tpu_custom_call.1} parent=1 // pred_check_branch
      %2985 = sbr.rel (0) target = $region41
    $region40: #{tpu_custom_call.1} parent=1 // pred_region
      %2987 = dma.done [#allocation6], 512
    $region41: #{tpu_custom_call.1} parent=1 // pred_fallthru
      _
    %2988 = vsyncpa [#allocation5], 1
    %2989 = vsyncpa [#allocation8], 1
    %2990 = vsyncpa [#allocation6], 1

</llo_original>
